<compile_context>
chip_gen: v5e
topology: v5e:2x2
jax: 0.10.0
libtpu: 0.0.40
codegen_flags: <defaults>
</compile_context>

<pallas_src>
import functools

import jax
import jax.numpy as jnp
from jax.experimental import pallas as pl
from jax.experimental.pallas import tpu as pltpu

D = 768            # sbert hidden size
NUM_CLASSES = 2
LANE = 128         # lane-dense padded logits width


def _paraformer_kernel(q_ref, ctx_ref, w_out_ref, b_out_ref, wc_ref, bc_ref,
                       out_ref, *, num_sents):
    # q_ref:     (TB, D)       bf16  query embeddings for this batch block
    # ctx_ref:   (TB, S*D)     bf16  article sentence embeddings (lane-flat)
    # w_out_ref: (2D, D)       bf16  linear_out weight^T ([mix ; q] ordering)
    # b_out_ref: (1, D)        f32   linear_out bias
    # wc_ref:    (D, LANE)     bf16  classifier weight^T, zero-padded cols
    # bc_ref:    (1, LANE)     f32   classifier bias, zero-padded
    # out_ref:   (TB, LANE)    f32   lane-dense logits (cols 0:2 are real)
    q_bf = q_ref[...]                                   # (TB, D) bf16
    q = q_bf.astype(jnp.float32)                        # VPU math in f32

    # ---- attention scores, S-unrolled with (TB, D) working sets only ----
    score_cols = []
    for s in range(num_sents):
        ctx_s = ctx_ref[:, s * D:(s + 1) * D].astype(jnp.float32)   # (TB, D)
        score_cols.append(jnp.sum(q * ctx_s, axis=-1, keepdims=True))
    scores = jnp.concatenate(score_cols, axis=-1)       # (TB, S) f32

    m = jnp.max(scores, axis=-1, keepdims=True)
    p = jnp.exp(scores - m)
    denom = jnp.sum(p, axis=-1, keepdims=True)
    attn = p * pl.reciprocal(denom, approx=True)        # EUP slot, ~free

    # ---- mix = sum_s attn[:, s] * ctx_s, again (TB, D) working sets ----
    mix = jnp.zeros_like(q)
    for s in range(num_sents):
        ctx_s = ctx_ref[:, s * D:(s + 1) * D].astype(jnp.float32)
        mix = mix + attn[:, s:s + 1] * ctx_s            # (TB, D) f32

    # ---- fused Linear(2D -> D): [mix ; q] @ W_out^T as one K=1536 matmul ----
    combined = jnp.concatenate([mix.astype(jnp.bfloat16), q_bf], axis=-1)
    h = jnp.dot(combined, w_out_ref[...],
                preferred_element_type=jnp.float32)     # (TB, D) f32
    h = jnp.tanh(h + b_out_ref[...])

    # ---- classifier Linear(D -> 2), padded to 128 cols (lane-dense store) ----
    logits = jnp.dot(h.astype(jnp.bfloat16), wc_ref[...],
                     preferred_element_type=jnp.float32)
    out_ref[...] = (logits + bc_ref[...]).astype(out_ref.dtype)


def _round_up(x, m):
    return (x + m - 1) // m * m


def paraformer_forward(query_vec, article_vec, params, *, block_b=128):
    """query_vec: (B, D) f32, article_vec: (B, S, D) f32 -> logits (B, 2)."""
    B, d = query_vec.shape
    assert d == D, f"expected hidden size {D}, got {d}"
    S = article_vec.shape[1]

    # Batch tile: multiple of 8 sublanes; for B <= block_b prefer two or more
    # grid steps so both v7x TensorCores get work.  (Raise block_b to 256 for
    # very large batches on v6e/v7x -- the kernel is HBM-bound so it is only a
    # modest win.)
    tb = min(block_b, max(8, _round_up(pl.cdiv(B, 2), 8)))
    B_pad = _round_up(B, tb)

    # bf16 embeddings in HBM (halves the dominant DMA traffic).  Article is
    # lane-flattened to (B, S*D) -- a free row-major reshape -- so each
    # sentence is a contiguous lane-aligned slice inside the kernel.
    q_bf = query_vec.astype(jnp.bfloat16)
    ctx_bf = article_vec.reshape(B, S * D).astype(jnp.bfloat16)
    if B_pad != B:
        q_bf = jnp.pad(q_bf, ((0, B_pad - B), (0, 0)))
        ctx_bf = jnp.pad(ctx_bf, ((0, B_pad - B), (0, 0)))

    # Weight prep (host/XLA side): stacked transposed linear_out weight for a
    # single fused K=2D matmul; classifier lane-padded for dense stores.
    w_out_t = params["w_out"].T.astype(jnp.bfloat16)          # (2D, D)
    b_out = params["b_out"].reshape(1, D).astype(jnp.float32)

    wc_pad = jnp.zeros((D, LANE), jnp.float32)
    wc_pad = wc_pad.at[:, :NUM_CLASSES].set(params["w_cls"].T)
    wc_pad = wc_pad.astype(jnp.bfloat16)                      # (D, LANE)
    bc_pad = jnp.zeros((1, LANE), jnp.float32)
    bc_pad = bc_pad.at[:, :NUM_CLASSES].set(params["b_cls"][None, :])

    grid = (B_pad // tb,)
    kernel = functools.partial(_paraformer_kernel, num_sents=S)

    out = pl.pallas_call(
        kernel,
        out_shape=jax.ShapeDtypeStruct((B_pad, LANE), jnp.float32),
        grid_spec=pltpu.PrefetchScalarGridSpec(
            num_scalar_prefetch=0,
            grid=grid,
            in_specs=[
                pl.BlockSpec((tb, D), lambda b: (b, 0)),       # query block
                pl.BlockSpec((tb, S * D), lambda b: (b, 0)),   # article block
                # Grid-invariant params: whole-array VMEM residents
                # (single copy, no per-step DMA, no double buffer).
                pl.BlockSpec(memory_space=pltpu.MemorySpace.VMEM),  # W_out^T
                pl.BlockSpec(memory_space=pltpu.MemorySpace.VMEM),  # b_out
                pl.BlockSpec(memory_space=pltpu.MemorySpace.VMEM),  # W_cls^T
                pl.BlockSpec(memory_space=pltpu.MemorySpace.VMEM),  # b_cls
            ],
            out_specs=pl.BlockSpec((tb, LANE), lambda b: (b, 0)),
        ),
        compiler_params=pltpu.CompilerParams(
            dimension_semantics=("parallel",),    # megacore-shardable on v7x
            vmem_limit_bytes=32 * 1024 * 1024),
    )(q_bf, ctx_bf, w_out_t, b_out, wc_pad, bc_pad)

    # torch.squeeze(output, 1) equivalent + drop lane padding / batch padding.
    return out[:B, :NUM_CLASSES]


def _reference_forward(query_vec, article_vec, params):
    """Pure-JAX f32 reference on the same bf16-quantized embeddings the
    kernel consumes (isolates kernel numerics from input quantization)."""
    q = query_vec.astype(jnp.bfloat16).astype(jnp.float32)[:, None, :]
    ctx = article_vec.astype(jnp.bfloat16).astype(jnp.float32)
    scores = jnp.einsum("bqd,bsd->bqs", q, ctx)
    attn = jax.nn.softmax(scores, axis=-1)
    mix = jnp.einsum("bqs,bsd->bqd", attn, ctx)
    combined = jnp.concatenate([mix, q], axis=-1)              # (B, 1, 2D)
    h = jnp.tanh(combined @ params["w_out"].T + params["b_out"])
    logits = h @ params["w_cls"].T + params["b_cls"]
    return logits[:, 0, :]


def _init_params(key):
    k1, k2, k3, k4 = jax.random.split(key, 4)
    scale_out = 1.0 / jnp.sqrt(2.0 * D)
    scale_cls = 1.0 / jnp.sqrt(float(D))
    return {
        # Attention.linear_out: nn.Linear(2*D, D)
        "w_out": jax.random.uniform(k1, (D, 2 * D), jnp.float32,
                                    -scale_out, scale_out),
        "b_out": jax.random.uniform(k2, (D,), jnp.float32,
                                    -scale_out, scale_out),
        # classifier: nn.Linear(D, 2)
        "w_cls": jax.random.uniform(k3, (NUM_CLASSES, D), jnp.float32,
                                    -scale_cls, scale_cls),
        "b_cls": jax.random.uniform(k4, (NUM_CLASSES,), jnp.float32,
                                    -scale_cls, scale_cls),
    }


if __name__ == "__main__":
    key = jax.random.PRNGKey(0)
    kp, kq, ka = jax.random.split(key, 3)

    B, S = 2, 8   # small batch of queries, 8 article sentences each
    params = _init_params(kp)
    query_vec = jax.random.normal(kq, (B, D), jnp.float32)
    article_vec = jax.random.normal(ka, (B, S, D), jnp.float32)

    logits = paraformer_forward(query_vec, article_vec, params)
    logits = jax.block_until_ready(logits)

    ref = _reference_forward(query_vec, article_vec, params)
    assert logits.shape == (B, NUM_CLASSES)
    # bf16 MXU operands (f32 accumulation) + approx reciprocal -> relaxed
    # tolerance vs. the f32 reference (same bf16-quantized embeddings).
    assert jnp.allclose(logits, ref, atol=5e-2, rtol=5e-2), (logits, ref)
    assert bool(jnp.all(jnp.isfinite(logits)))

    print("KERNEL_OK")
</pallas_src>

<mosaic_0001>
module attributes {stable_mosaic.version = 11 : i64} {
  func.func @_paraformer_kernel(%arg0: i32, %arg1: memref<8x768xbf16, #tpu.memory_space<vmem>>, %arg2: memref<8x6144xbf16, #tpu.memory_space<vmem>>, %arg3: memref<1536x768xbf16, #tpu.memory_space<vmem>>, %arg4: memref<1x768xf32, #tpu.memory_space<vmem>>, %arg5: memref<768x128xbf16, #tpu.memory_space<vmem>>, %arg6: memref<1x128xf32, #tpu.memory_space<vmem>>, %arg7: memref<8x128xf32, #tpu.memory_space<vmem>>) attributes {dimension_semantics = [#tpu.dimension_semantics<parallel>], iteration_bounds = array<i64: 1>, scalar_prefetch = 0 : i64, scratch_operands = 0 : i64, tpu.core_type = #tpu.core_type<tc>, window_params = [{transform_indices = @transform_0, window_bounds = array<i64: 8, 768>}, {transform_indices = @transform_1, window_bounds = array<i64: 8, 6144>}, {pipeline_mode = #tpu.pipeline_mode<synchronous>, transform_indices = @transform_2, window_bounds = array<i64: 1536, 768>}, {pipeline_mode = #tpu.pipeline_mode<synchronous>, transform_indices = @transform_3, window_bounds = array<i64: 1, 768>}, {pipeline_mode = #tpu.pipeline_mode<synchronous>, transform_indices = @transform_4, window_bounds = array<i64: 768, 128>}, {pipeline_mode = #tpu.pipeline_mode<synchronous>, transform_indices = @transform_5, window_bounds = array<i64: 1, 128>}, {transform_indices = @transform_6, window_bounds = array<i64: 8, 128>}]} {
    %c0 = arith.constant 0 : index
    %c0_0 = arith.constant 0 : index
    %0 = vector.load %arg1[%c0, %c0_0] : memref<8x768xbf16, #tpu.memory_space<vmem>>, vector<8x768xbf16>
    %1 = arith.extf %0 : vector<8x768xbf16> to vector<8x768xf32>
    %c0_1 = arith.constant 0 : index
    %c0_2 = arith.constant 0 : index
    %2 = vector.load %arg2[%c0_1, %c0_2] : memref<8x6144xbf16, #tpu.memory_space<vmem>>, vector<8x768xbf16>
    %3 = arith.extf %2 : vector<8x768xbf16> to vector<8x768xf32>
    %4 = arith.mulf %1, %3 : vector<8x768xf32>
    %cst = arith.constant dense<0.000000e+00> : vector<8xf32>
    %5 = vector.multi_reduction <add>, %4, %cst [1] : vector<8x768xf32> to vector<8xf32>
    %6 = vector.shape_cast %5 : vector<8xf32> to vector<8x1xf32>
    %c0_3 = arith.constant 0 : index
    %c768 = arith.constant 768 : index
    %7 = vector.load %arg2[%c0_3, %c768] : memref<8x6144xbf16, #tpu.memory_space<vmem>>, vector<8x768xbf16>
    %8 = arith.extf %7 : vector<8x768xbf16> to vector<8x768xf32>
    %9 = arith.mulf %1, %8 : vector<8x768xf32>
    %cst_4 = arith.constant dense<0.000000e+00> : vector<8xf32>
    %10 = vector.multi_reduction <add>, %9, %cst_4 [1] : vector<8x768xf32> to vector<8xf32>
    %11 = vector.shape_cast %10 : vector<8xf32> to vector<8x1xf32>
    %c0_5 = arith.constant 0 : index
    %c1536 = arith.constant 1536 : index
    %12 = vector.load %arg2[%c0_5, %c1536] : memref<8x6144xbf16, #tpu.memory_space<vmem>>, vector<8x768xbf16>
    %13 = arith.extf %12 : vector<8x768xbf16> to vector<8x768xf32>
    %14 = arith.mulf %1, %13 : vector<8x768xf32>
    %cst_6 = arith.constant dense<0.000000e+00> : vector<8xf32>
    %15 = vector.multi_reduction <add>, %14, %cst_6 [1] : vector<8x768xf32> to vector<8xf32>
    %16 = vector.shape_cast %15 : vector<8xf32> to vector<8x1xf32>
    %c0_7 = arith.constant 0 : index
    %c2304 = arith.constant 2304 : index
    %17 = vector.load %arg2[%c0_7, %c2304] : memref<8x6144xbf16, #tpu.memory_space<vmem>>, vector<8x768xbf16>
    %18 = arith.extf %17 : vector<8x768xbf16> to vector<8x768xf32>
    %19 = arith.mulf %1, %18 : vector<8x768xf32>
    %cst_8 = arith.constant dense<0.000000e+00> : vector<8xf32>
    %20 = vector.multi_reduction <add>, %19, %cst_8 [1] : vector<8x768xf32> to vector<8xf32>
    %21 = vector.shape_cast %20 : vector<8xf32> to vector<8x1xf32>
    %c0_9 = arith.constant 0 : index
    %c3072 = arith.constant 3072 : index
    %22 = vector.load %arg2[%c0_9, %c3072] : memref<8x6144xbf16, #tpu.memory_space<vmem>>, vector<8x768xbf16>
    %23 = arith.extf %22 : vector<8x768xbf16> to vector<8x768xf32>
    %24 = arith.mulf %1, %23 : vector<8x768xf32>
    %cst_10 = arith.constant dense<0.000000e+00> : vector<8xf32>
    %25 = vector.multi_reduction <add>, %24, %cst_10 [1] : vector<8x768xf32> to vector<8xf32>
    %26 = vector.shape_cast %25 : vector<8xf32> to vector<8x1xf32>
    %c0_11 = arith.constant 0 : index
    %c3840 = arith.constant 3840 : index
    %27 = vector.load %arg2[%c0_11, %c3840] : memref<8x6144xbf16, #tpu.memory_space<vmem>>, vector<8x768xbf16>
    %28 = arith.extf %27 : vector<8x768xbf16> to vector<8x768xf32>
    %29 = arith.mulf %1, %28 : vector<8x768xf32>
    %cst_12 = arith.constant dense<0.000000e+00> : vector<8xf32>
    %30 = vector.multi_reduction <add>, %29, %cst_12 [1] : vector<8x768xf32> to vector<8xf32>
    %31 = vector.shape_cast %30 : vector<8xf32> to vector<8x1xf32>
    %c0_13 = arith.constant 0 : index
    %c4608 = arith.constant 4608 : index
    %32 = vector.load %arg2[%c0_13, %c4608] : memref<8x6144xbf16, #tpu.memory_space<vmem>>, vector<8x768xbf16>
    %33 = arith.extf %32 : vector<8x768xbf16> to vector<8x768xf32>
    %34 = arith.mulf %1, %33 : vector<8x768xf32>
    %cst_14 = arith.constant dense<0.000000e+00> : vector<8xf32>
    %35 = vector.multi_reduction <add>, %34, %cst_14 [1] : vector<8x768xf32> to vector<8xf32>
    %36 = vector.shape_cast %35 : vector<8xf32> to vector<8x1xf32>
    %c0_15 = arith.constant 0 : index
    %c5376 = arith.constant 5376 : index
    %37 = vector.load %arg2[%c0_15, %c5376] : memref<8x6144xbf16, #tpu.memory_space<vmem>>, vector<8x768xbf16>
    %38 = arith.extf %37 : vector<8x768xbf16> to vector<8x768xf32>
    %39 = arith.mulf %1, %38 : vector<8x768xf32>
    %cst_16 = arith.constant dense<0.000000e+00> : vector<8xf32>
    %40 = vector.multi_reduction <add>, %39, %cst_16 [1] : vector<8x768xf32> to vector<8xf32>
    %41 = vector.shape_cast %40 : vector<8xf32> to vector<8x1xf32>
    %42 = tpu.concatenate %6, %11, %16, %21, %26, %31, %36, %41 in 1 : vector<8x1xf32>, vector<8x1xf32>, vector<8x1xf32>, vector<8x1xf32>, vector<8x1xf32>, vector<8x1xf32>, vector<8x1xf32>, vector<8x1xf32> -> vector<8x8xf32>
    %cst_17 = arith.constant dense<0xFF800000> : vector<8xf32>
    %43 = vector.multi_reduction <maximumf>, %42, %cst_17 [1] : vector<8x8xf32> to vector<8xf32>
    %44 = vector.shape_cast %43 : vector<8xf32> to vector<8x1xf32>
    %45 = vector.broadcast %44 : vector<8x1xf32> to vector<8x8xf32>
    %46 = arith.subf %42, %45 : vector<8x8xf32>
    %47 = math.exp %46 : vector<8x8xf32>
    %cst_18 = arith.constant dense<0.000000e+00> : vector<8xf32>
    %48 = vector.multi_reduction <add>, %47, %cst_18 [1] : vector<8x8xf32> to vector<8xf32>
    %49 = vector.shape_cast %48 : vector<8xf32> to vector<8x1xf32>
    %50 = tpu.reciprocal %49 {approx = true} : vector<8x1xf32> -> vector<8x1xf32>
    %51 = vector.broadcast %50 : vector<8x1xf32> to vector<8x8xf32>
    %52 = arith.mulf %47, %51 : vector<8x8xf32>
    %cst_19 = arith.constant 0.000000e+00 : f32
    %53 = vector.broadcast %cst_19 : f32 to vector<8x768xf32>
    %c0_20 = arith.constant 0 : index
    %c0_21 = arith.constant 0 : index
    %54 = vector.load %arg2[%c0_20, %c0_21] : memref<8x6144xbf16, #tpu.memory_space<vmem>>, vector<8x768xbf16>
    %55 = arith.extf %54 : vector<8x768xbf16> to vector<8x768xf32>
    %56 = vector.extract_strided_slice %52 {offsets = [0, 0], sizes = [8, 1], strides = [1, 1]} : vector<8x8xf32> to vector<8x1xf32>
    %57 = vector.broadcast %56 : vector<8x1xf32> to vector<8x768xf32>
    %58 = arith.mulf %57, %55 : vector<8x768xf32>
    %59 = arith.addf %53, %58 : vector<8x768xf32>
    %c0_22 = arith.constant 0 : index
    %c768_23 = arith.constant 768 : index
    %60 = vector.load %arg2[%c0_22, %c768_23] : memref<8x6144xbf16, #tpu.memory_space<vmem>>, vector<8x768xbf16>
    %61 = arith.extf %60 : vector<8x768xbf16> to vector<8x768xf32>
    %62 = vector.extract_strided_slice %52 {offsets = [0, 1], sizes = [8, 1], strides = [1, 1]} : vector<8x8xf32> to vector<8x1xf32>
    %63 = vector.broadcast %62 : vector<8x1xf32> to vector<8x768xf32>
    %64 = arith.mulf %63, %61 : vector<8x768xf32>
    %65 = arith.addf %59, %64 : vector<8x768xf32>
    %c0_24 = arith.constant 0 : index
    %c1536_25 = arith.constant 1536 : index
    %66 = vector.load %arg2[%c0_24, %c1536_25] : memref<8x6144xbf16, #tpu.memory_space<vmem>>, vector<8x768xbf16>
    %67 = arith.extf %66 : vector<8x768xbf16> to vector<8x768xf32>
    %68 = vector.extract_strided_slice %52 {offsets = [0, 2], sizes = [8, 1], strides = [1, 1]} : vector<8x8xf32> to vector<8x1xf32>
    %69 = vector.broadcast %68 : vector<8x1xf32> to vector<8x768xf32>
    %70 = arith.mulf %69, %67 : vector<8x768xf32>
    %71 = arith.addf %65, %70 : vector<8x768xf32>
    %c0_26 = arith.constant 0 : index
    %c2304_27 = arith.constant 2304 : index
    %72 = vector.load %arg2[%c0_26, %c2304_27] : memref<8x6144xbf16, #tpu.memory_space<vmem>>, vector<8x768xbf16>
    %73 = arith.extf %72 : vector<8x768xbf16> to vector<8x768xf32>
    %74 = vector.extract_strided_slice %52 {offsets = [0, 3], sizes = [8, 1], strides = [1, 1]} : vector<8x8xf32> to vector<8x1xf32>
    %75 = vector.broadcast %74 : vector<8x1xf32> to vector<8x768xf32>
    %76 = arith.mulf %75, %73 : vector<8x768xf32>
    %77 = arith.addf %71, %76 : vector<8x768xf32>
    %c0_28 = arith.constant 0 : index
    %c3072_29 = arith.constant 3072 : index
    %78 = vector.load %arg2[%c0_28, %c3072_29] : memref<8x6144xbf16, #tpu.memory_space<vmem>>, vector<8x768xbf16>
    %79 = arith.extf %78 : vector<8x768xbf16> to vector<8x768xf32>
    %80 = vector.extract_strided_slice %52 {offsets = [0, 4], sizes = [8, 1], strides = [1, 1]} : vector<8x8xf32> to vector<8x1xf32>
    %81 = vector.broadcast %80 : vector<8x1xf32> to vector<8x768xf32>
    %82 = arith.mulf %81, %79 : vector<8x768xf32>
    %83 = arith.addf %77, %82 : vector<8x768xf32>
    %c0_30 = arith.constant 0 : index
    %c3840_31 = arith.constant 3840 : index
    %84 = vector.load %arg2[%c0_30, %c3840_31] : memref<8x6144xbf16, #tpu.memory_space<vmem>>, vector<8x768xbf16>
    %85 = arith.extf %84 : vector<8x768xbf16> to vector<8x768xf32>
    %86 = vector.extract_strided_slice %52 {offsets = [0, 5], sizes = [8, 1], strides = [1, 1]} : vector<8x8xf32> to vector<8x1xf32>
    %87 = vector.broadcast %86 : vector<8x1xf32> to vector<8x768xf32>
    %88 = arith.mulf %87, %85 : vector<8x768xf32>
    %89 = arith.addf %83, %88 : vector<8x768xf32>
    %c0_32 = arith.constant 0 : index
    %c4608_33 = arith.constant 4608 : index
    %90 = vector.load %arg2[%c0_32, %c4608_33] : memref<8x6144xbf16, #tpu.memory_space<vmem>>, vector<8x768xbf16>
    %91 = arith.extf %90 : vector<8x768xbf16> to vector<8x768xf32>
    %92 = vector.extract_strided_slice %52 {offsets = [0, 6], sizes = [8, 1], strides = [1, 1]} : vector<8x8xf32> to vector<8x1xf32>
    %93 = vector.broadcast %92 : vector<8x1xf32> to vector<8x768xf32>
    %94 = arith.mulf %93, %91 : vector<8x768xf32>
    %95 = arith.addf %89, %94 : vector<8x768xf32>
    %c0_34 = arith.constant 0 : index
    %c5376_35 = arith.constant 5376 : index
    %96 = vector.load %arg2[%c0_34, %c5376_35] : memref<8x6144xbf16, #tpu.memory_space<vmem>>, vector<8x768xbf16>
    %97 = arith.extf %96 : vector<8x768xbf16> to vector<8x768xf32>
    %98 = vector.extract_strided_slice %52 {offsets = [0, 7], sizes = [8, 1], strides = [1, 1]} : vector<8x8xf32> to vector<8x1xf32>
    %99 = vector.broadcast %98 : vector<8x1xf32> to vector<8x768xf32>
    %100 = arith.mulf %99, %97 : vector<8x768xf32>
    %101 = arith.addf %95, %100 : vector<8x768xf32>
    %102 = arith.truncf %101 : vector<8x768xf32> to vector<8x768xbf16>
    %103 = tpu.concatenate %102, %0 in 1 : vector<8x768xbf16>, vector<8x768xbf16> -> vector<8x1536xbf16>
    %c0_36 = arith.constant 0 : index
    %c0_37 = arith.constant 0 : index
    %104 = vector.load %arg3[%c0_36, %c0_37] : memref<1536x768xbf16, #tpu.memory_space<vmem>>, vector<1536x768xbf16>
    %cst_38 = arith.constant dense<0.000000e+00> : vector<8x768xf32>
    %105 = tpu.matmul %103, %104, %cst_38 {dimension_numbers = #tpu.dot_dimension_numbers<[1], [0], [0], [1], [0, 0, 1, 1], [], []>} : vector<8x1536xbf16>, vector<1536x768xbf16>, vector<8x768xf32> -> vector<8x768xf32>
    %c0_39 = arith.constant 0 : index
    %c0_40 = arith.constant 0 : index
    %106 = vector.load %arg4[%c0_39, %c0_40] : memref<1x768xf32, #tpu.memory_space<vmem>>, vector<1x768xf32>
    %107 = vector.broadcast %106 : vector<1x768xf32> to vector<8x768xf32>
    %108 = arith.addf %105, %107 : vector<8x768xf32>
    %109 = math.tanh %108 : vector<8x768xf32>
    %110 = arith.truncf %109 : vector<8x768xf32> to vector<8x768xbf16>
    %c0_41 = arith.constant 0 : index
    %c0_42 = arith.constant 0 : index
    %111 = vector.load %arg5[%c0_41, %c0_42] : memref<768x128xbf16, #tpu.memory_space<vmem>>, vector<768x128xbf16>
    %cst_43 = arith.constant dense<0.000000e+00> : vector<8x128xf32>
    %112 = tpu.matmul %110, %111, %cst_43 {dimension_numbers = #tpu.dot_dimension_numbers<[1], [0], [0], [1], [0, 0, 1, 1], [], []>} : vector<8x768xbf16>, vector<768x128xbf16>, vector<8x128xf32> -> vector<8x128xf32>
    %c0_44 = arith.constant 0 : index
    %c0_45 = arith.constant 0 : index
    %113 = vector.load %arg6[%c0_44, %c0_45] : memref<1x128xf32, #tpu.memory_space<vmem>>, vector<1x128xf32>
    %114 = vector.broadcast %113 : vector<1x128xf32> to vector<8x128xf32>
    %115 = arith.addf %112, %114 : vector<8x128xf32>
    %c0_46 = arith.constant 0 : index
    %c0_47 = arith.constant 0 : index
    %116 = vector.load %arg7[%c0_46, %c0_47] : memref<8x128xf32, #tpu.memory_space<vmem>>, vector<8x128xf32>
    tpu.vector_store %arg7[%c0_46, %c0_47], %115 {strides = array<i32>} : memref<8x128xf32, #tpu.memory_space<vmem>>, vector<8x128xf32>,
    return
  }
  func.func @transform_0(%arg0: i32) -> (i32, i32) {
    %c0_i32 = arith.constant 0 : i32
    %c0_i32_0 = arith.constant 0 : i32
    return %arg0, %c0_i32 : i32, i32
  }
  func.func @transform_1(%arg0: i32) -> (i32, i32) {
    %c0_i32 = arith.constant 0 : i32
    %c0_i32_0 = arith.constant 0 : i32
    return %arg0, %c0_i32 : i32, i32
  }
  func.func @transform_2(%arg0: i32) -> (i32, i32) {
    %c0_i32 = arith.constant 0 : i32
    %c0_i32_0 = arith.constant 0 : i32
    %c0_i32_1 = arith.constant 0 : i32
    return %c0_i32, %c0_i32_0 : i32, i32
  }
  func.func @transform_3(%arg0: i32) -> (i32, i32) {
    %c0_i32 = arith.constant 0 : i32
    %c0_i32_0 = arith.constant 0 : i32
    %c0_i32_1 = arith.constant 0 : i32
    return %c0_i32, %c0_i32_0 : i32, i32
  }
  func.func @transform_4(%arg0: i32) -> (i32, i32) {
    %c0_i32 = arith.constant 0 : i32
    %c0_i32_0 = arith.constant 0 : i32
    %c0_i32_1 = arith.constant 0 : i32
    return %c0_i32, %c0_i32_0 : i32, i32
  }
  func.func @transform_5(%arg0: i32) -> (i32, i32) {
    %c0_i32 = arith.constant 0 : i32
    %c0_i32_0 = arith.constant 0 : i32
    %c0_i32_1 = arith.constant 0 : i32
    return %c0_i32, %c0_i32_0 : i32, i32
  }
  func.func @transform_6(%arg0: i32) -> (i32, i32) {
    %c0_i32 = arith.constant 0 : i32
    %c0_i32_0 = arith.constant 0 : i32
    return %arg0, %c0_i32 : i32, i32
  }
}

</mosaic_0001>

<llo_original>
// kernel: tpu_custom_call.1
$region0: #{tpu_custom_call.1}
  #allocation0 [shape = 'u32[]', space=smem, size = 0x4, offset = 0x4, fixed_abs, tag = 'smem constant byte address 0x4 - core index']
  #allocation1 [shape = 'u32[72,128]{1,0:T(1,128)}', space=vmem, size = 0x9000, scoped, tag = 'internal scratch']
  %s0 = inlined_call_operand.hbm [shape: bf16[8,768], index: 0, kind: input, shape index: {}]
  %s1 = inlined_call_operand.hbm [shape: bf16[8,6144], index: 1, kind: input, shape index: {}]
  %s2 = inlined_call_operand.hbm [shape: bf16[1536,768], index: 2, kind: input, shape index: {}]
  %s3 = inlined_call_operand.hbm [shape: f32[1,768], index: 3, kind: input, shape index: {}]
  %s4 = inlined_call_operand.hbm [shape: bf16[768,128], index: 4, kind: input, shape index: {}]
  %s5 = inlined_call_operand.hbm [shape: f32[1,128], index: 5, kind: input, shape index: {}]
  %s6 = inlined_call_operand.hbm [shape: f32[8,128], index: 6, kind: output, shape index: {}]
  %s7 = sld [smem:[#allocation0]]
  $region58: #{tpu_custom_call.1} parent=0
    _
  %s9 = ssub.s32 1, %s7
  %s10 = scalar_select 0, %s9, %s7
  $region1: #{tpu_custom_call.1} parent=0
    #allocation2 [shape = 'u8[12288]{0}', space=vmem, size = 0x3000, scoped, tag = 'input window, operand 0, single buffered']
    #allocation3 [shape = 's32[1]{0}', space=sflag, size = 0x4, scoped, tag = 'scoped memory for tpu_custom_call.1']
    #allocation4 [shape = 's32[1]{0}', space=sflag, size = 0x4, scoped, tag = 'scoped memory for tpu_custom_call.1']
    #allocation5 [shape = 'u8[98304]{0}', space=vmem, size = 0x18000, scoped, tag = 'input window, operand 1, single buffered']
    #allocation6 [shape = 's32[1]{0}', space=sflag, size = 0x4, scoped, tag = 'scoped memory for tpu_custom_call.1']
    #allocation7 [shape = 'u8[2359296]{0}', space=vmem, size = 0x240000, scoped, tag = 'input window, operand 2, single buffered']
    #allocation8 [shape = 'u8[3072]{0}', space=vmem, size = 0xc00, scoped, tag = 'input window, operand 3, single buffered']
    #allocation9 [shape = 's32[1]{0}', space=sflag, size = 0x4, scoped, tag = 'scoped memory for tpu_custom_call.1']
    #allocation10 [shape = 'u8[196608]{0}', space=vmem, size = 0x30000, scoped, tag = 'input window, operand 4, single buffered']
    #allocation11 [shape = 'u8[512]{0}', space=vmem, size = 0x400, scoped, tag = 'input window, operand 5, single buffered']
    #allocation12 [shape = 's32[1]{0}', space=sflag, size = 0x4, scoped, tag = 'scoped memory for tpu_custom_call.1']
    #allocation13 [shape = 'u8[4096]{0}', space=vmem, size = 0x1000, scoped, tag = 'output window, operand 0, single buffered']
    %11 = vsyncpa [#allocation3], 0
    %12 = vsyncpa [#allocation6], 0
    %13 = vsyncpa [#allocation9], 0
    %14 = vsyncpa [#allocation12], 0
    %15 = vsyncpa [#allocation4], 0
    // Predicated region
    $region2: #{tpu_custom_call.1} parent=1 // pred_check
      _
    $region3: #{tpu_custom_call.1} parent=1 // pred_check_branch
      %17 = sbr.rel (0) target = $region5
    $region4: #{tpu_custom_call.1} parent=1 // pred_region
      %19 = vsyncadd [#allocation3], 0
      %s21 = sshll.u32 %s0, 4
      %s22 = int_to_ptr.hbm [resolvable:$true] %s21
      %s23 = sshll.u32 [#allocation2], 4
      %s24 = int_to_ptr.vmem [resolvable:$true] %s23
      %26 = dma.hbm_to_vmem [thread:$0]  %s22, 384, %s24, [#allocation3]
    $region5: #{tpu_custom_call.1} parent=1 // pred_fallthru
      _
    // Predicated region
    $region6: #{tpu_custom_call.1} parent=1 // pred_check
      _
    $region7: #{tpu_custom_call.1} parent=1 // pred_check_branch
      %28 = sbr.rel (0) target = $region9
    $region8: #{tpu_custom_call.1} parent=1 // pred_region
      %30 = vsyncadd [#allocation6], 0
      %s32 = sshll.u32 %s1, 4
      %s33 = int_to_ptr.hbm [resolvable:$true] %s32
      %s34 = sshll.u32 [#allocation5], 4
      %s35 = int_to_ptr.vmem [resolvable:$true] %s34
      %37 = dma.hbm_to_vmem [thread:$0]  %s33, 3072, %s35, [#allocation6]
    $region9: #{tpu_custom_call.1} parent=1 // pred_fallthru
      _
    // Predicated region
    $region10: #{tpu_custom_call.1} parent=1 // pred_check
      _
    $region11: #{tpu_custom_call.1} parent=1 // pred_check_branch
      %39 = sbr.rel (0) target = $region13
    $region12: #{tpu_custom_call.1} parent=1 // pred_region
      %41 = vsyncadd [#allocation6], 0
      %s42 = sshll.u32 %s2, 4
      %s43 = int_to_ptr.hbm [resolvable:$true] %s42
      %s44 = sshll.u32 [#allocation7], 4
      %s45 = int_to_ptr.vmem [resolvable:$true] %s44
      %50 = dma.hbm_to_vmem [thread:$0]  %s43, 73728, %s45, [#allocation6], 384, 384, 24
    $region13: #{tpu_custom_call.1} parent=1 // pred_fallthru
      _
    // Predicated region
    $region14: #{tpu_custom_call.1} parent=1 // pred_check
      _
    $region15: #{tpu_custom_call.1} parent=1 // pred_check_branch
      %52 = sbr.rel (0) target = $region17
    $region16: #{tpu_custom_call.1} parent=1 // pred_region
      %54 = vsyncadd [#allocation9], 0
      %s56 = sshll.u32 %s3, 4
      %s57 = int_to_ptr.hbm [resolvable:$true] %s56
      %s58 = sshll.u32 [#allocation8], 4
      %s59 = int_to_ptr.vmem [resolvable:$true] %s58
      %61 = dma.hbm_to_vmem [thread:$0]  %s57, 96, %s59, [#allocation9]
    $region17: #{tpu_custom_call.1} parent=1 // pred_fallthru
      _
    // Predicated region
    $region18: #{tpu_custom_call.1} parent=1 // pred_check
      _
    $region19: #{tpu_custom_call.1} parent=1 // pred_check_branch
      %63 = sbr.rel (0) target = $region21
    $region20: #{tpu_custom_call.1} parent=1 // pred_region
      %65 = vsyncadd [#allocation9], 0
      %s66 = sshll.u32 %s4, 4
      %s67 = int_to_ptr.hbm [resolvable:$true] %s66
      %s68 = sshll.u32 [#allocation10], 4
      %s69 = int_to_ptr.vmem [resolvable:$true] %s68
      %74 = dma.hbm_to_vmem [thread:$0]  %s67, 6144, %s69, [#allocation9], 64, 64, 4
    $region21: #{tpu_custom_call.1} parent=1 // pred_fallthru
      _
    // Predicated region
    $region22: #{tpu_custom_call.1} parent=1 // pred_check
      _
    $region23: #{tpu_custom_call.1} parent=1 // pred_check_branch
      %76 = sbr.rel (0) target = $region25
    $region24: #{tpu_custom_call.1} parent=1 // pred_region
      %78 = vsyncadd [#allocation12], 0
      %s80 = sshll.u32 %s5, 4
      %s81 = int_to_ptr.hbm [resolvable:$true] %s80
      %s82 = sshll.u32 [#allocation11], 4
      %s83 = int_to_ptr.vmem [resolvable:$true] %s82
      %85 = dma.hbm_to_vmem [thread:$0]  %s81, 16, %s83, [#allocation12]
    $region25: #{tpu_custom_call.1} parent=1 // pred_fallthru
      _
    // Predicated region
    $region26: #{tpu_custom_call.1} parent=1 // pred_check
      _
    $region27: #{tpu_custom_call.1} parent=1 // pred_check_branch
      %87 = sbr.rel (0) target = $region29
    $region28: #{tpu_custom_call.1} parent=1 // pred_region
      %89 = dma.done [#allocation3], 384
    $region29: #{tpu_custom_call.1} parent=1 // pred_fallthru
      _
    // Predicated region
    $region30: #{tpu_custom_call.1} parent=1 // pred_check
      _
    $region31: #{tpu_custom_call.1} parent=1 // pred_check_branch
      %91 = sbr.rel (0) target = $region33
    $region32: #{tpu_custom_call.1} parent=1 // pred_region
      %93 = dma.done [#allocation6], 3072
    $region33: #{tpu_custom_call.1} parent=1 // pred_fallthru
      _
    // Predicated region
    $region34: #{tpu_custom_call.1} parent=1 // pred_check
      _
    $region35: #{tpu_custom_call.1} parent=1 // pred_check_branch
      %95 = sbr.rel (0) target = $region37
    $region36: #{tpu_custom_call.1} parent=1 // pred_region
      %97 = dma.done [#allocation6], 73728
    $region37: #{tpu_custom_call.1} parent=1 // pred_fallthru
      _
    // Predicated region
    $region38: #{tpu_custom_call.1} parent=1 // pred_check
      _
    $region39: #{tpu_custom_call.1} parent=1 // pred_check_branch
      %99 = sbr.rel (0) target = $region41
    $region40: #{tpu_custom_call.1} parent=1 // pred_region
      %101 = dma.done [#allocation9], 96
    $region41: #{tpu_custom_call.1} parent=1 // pred_fallthru
      _
    // Predicated region
    $region42: #{tpu_custom_call.1} parent=1 // pred_check
      _
    $region43: #{tpu_custom_call.1} parent=1 // pred_check_branch
      %103 = sbr.rel (0) target = $region45
    $region44: #{tpu_custom_call.1} parent=1 // pred_region
      %105 = dma.done [#allocation9], 6144
    $region45: #{tpu_custom_call.1} parent=1 // pred_fallthru
      _
    // Predicated region
    $region46: #{tpu_custom_call.1} parent=1 // pred_check
      _
    $region47: #{tpu_custom_call.1} parent=1 // pred_check_branch
      %107 = sbr.rel (0) target = $region49
    $region48: #{tpu_custom_call.1} parent=1 // pred_region
      %109 = dma.done [#allocation12], 16
    $region49: #{tpu_custom_call.1} parent=1 // pred_fallthru
      _
    %v110 = vld [vmem:[#allocation2] sm:$0xff]
    %v111 = vld [vmem:[#allocation2 + $0x8] sm:$0xff]
    %v112 = vld [vmem:[#allocation2 + $0x10] sm:$0xff]
    %v113 = vunpack.c.l.bf16 %v110
    %v114 = vunpack.c.h.bf16 %v110
    %v115 = vunpack.c.l.bf16 %v111
    %v116 = vunpack.c.h.bf16 %v111
    %v117 = vunpack.c.l.bf16 %v112
    %v118 = vunpack.c.h.bf16 %v112
    %v119 = vld [vmem:[#allocation5] sm:$0xff]
    %v120 = vld [vmem:[#allocation5 + $0x8] sm:$0xff]
    %v121 = vld [vmem:[#allocation5 + $0x10] sm:$0xff]
    %v122 = vunpack.c.l.bf16 %v119
    %v123 = vunpack.c.h.bf16 %v119
    %v124 = vunpack.c.l.bf16 %v120
    %v125 = vunpack.c.h.bf16 %v120
    %v126 = vunpack.c.l.bf16 %v121
    %v127 = vunpack.c.h.bf16 %v121
    %v128 = vmul.f32 %v113, %v122
    %v129 = vmul.f32 %v114, %v123
    %v130 = vmul.f32 %v115, %v124
    %v131 = vmul.f32 %v116, %v125
    %v132 = vmul.f32 %v117, %v126
    %v133 = vmul.f32 %v118, %v127
    %v134 = vadd.f32 %v128, %v129
    %v135 = vadd.f32 %v134, %v130
    %v136 = vadd.f32 %v135, %v131
    %v137 = vadd.f32 %v136, %v132
    %v138 = vadd.f32 %v137, %v133
    %139 = vadd.xlane.f32.xlu0 %v138
    %v140 = vpop.xlane.xlu0 %139
    %v141 = vld [vmem:[#allocation5 + $0x18] sm:$0xff]
    %v142 = vld [vmem:[#allocation5 + $0x20] sm:$0xff]
    %v143 = vld [vmem:[#allocation5 + $0x28] sm:$0xff]
    %v144 = vunpack.c.l.bf16 %v141
    %v145 = vunpack.c.h.bf16 %v141
    %v146 = vunpack.c.l.bf16 %v142
    %v147 = vunpack.c.h.bf16 %v142
    %v148 = vunpack.c.l.bf16 %v143
    %v149 = vunpack.c.h.bf16 %v143
    %v150 = vmul.f32 %v113, %v144
    %v151 = vmul.f32 %v114, %v145
    %v152 = vmul.f32 %v115, %v146
    %v153 = vmul.f32 %v116, %v147
    %v154 = vmul.f32 %v117, %v148
    %v155 = vmul.f32 %v118, %v149
    %v156 = vadd.f32 %v150, %v151
    %v157 = vadd.f32 %v156, %v152
    %v158 = vadd.f32 %v157, %v153
    %v159 = vadd.f32 %v158, %v154
    %v160 = vadd.f32 %v159, %v155
    %161 = vadd.xlane.f32.xlu0 %v160
    %v162 = vpop.xlane.xlu0 %161
    %v163 = vld [vmem:[#allocation5 + $0x30] sm:$0xff]
    %v164 = vld [vmem:[#allocation5 + $0x38] sm:$0xff]
    %v165 = vld [vmem:[#allocation5 + $0x40] sm:$0xff]
    %v166 = vunpack.c.l.bf16 %v163
    %v167 = vunpack.c.h.bf16 %v163
    %v168 = vunpack.c.l.bf16 %v164
    %v169 = vunpack.c.h.bf16 %v164
    %v170 = vunpack.c.l.bf16 %v165
    %v171 = vunpack.c.h.bf16 %v165
    %v172 = vmul.f32 %v113, %v166
    %v173 = vmul.f32 %v114, %v167
    %v174 = vmul.f32 %v115, %v168
    %v175 = vmul.f32 %v116, %v169
    %v176 = vmul.f32 %v117, %v170
    %v177 = vmul.f32 %v118, %v171
    %v178 = vadd.f32 %v172, %v173
    %v179 = vadd.f32 %v178, %v174
    %v180 = vadd.f32 %v179, %v175
    %v181 = vadd.f32 %v180, %v176
    %v182 = vadd.f32 %v181, %v177
    %183 = vadd.xlane.f32.xlu0 %v182
    %v184 = vpop.xlane.xlu0 %183
    %v185 = vld [vmem:[#allocation5 + $0x48] sm:$0xff]
    %v186 = vld [vmem:[#allocation5 + $0x50] sm:$0xff]
    %v187 = vld [vmem:[#allocation5 + $0x58] sm:$0xff]
    %v188 = vunpack.c.l.bf16 %v185
    %v189 = vunpack.c.h.bf16 %v185
    %v190 = vunpack.c.l.bf16 %v186
    %v191 = vunpack.c.h.bf16 %v186
    %v192 = vunpack.c.l.bf16 %v187
    %v193 = vunpack.c.h.bf16 %v187
    %v194 = vmul.f32 %v113, %v188
    %v195 = vmul.f32 %v114, %v189
    %v196 = vmul.f32 %v115, %v190
    %v197 = vmul.f32 %v116, %v191
    %v198 = vmul.f32 %v117, %v192
    %v199 = vmul.f32 %v118, %v193
    %v200 = vadd.f32 %v194, %v195
    %v201 = vadd.f32 %v200, %v196
    %v202 = vadd.f32 %v201, %v197
    %v203 = vadd.f32 %v202, %v198
    %v204 = vadd.f32 %v203, %v199
    %205 = vadd.xlane.f32.xlu0 %v204
    %v206 = vpop.xlane.xlu0 %205
    %v207 = vld [vmem:[#allocation5 + $0x60] sm:$0xff]
    %v208 = vld [vmem:[#allocation5 + $0x68] sm:$0xff]
    %v209 = vld [vmem:[#allocation5 + $0x70] sm:$0xff]
    %v210 = vunpack.c.l.bf16 %v207
    %v211 = vunpack.c.h.bf16 %v207
    %v212 = vunpack.c.l.bf16 %v208
    %v213 = vunpack.c.h.bf16 %v208
    %v214 = vunpack.c.l.bf16 %v209
    %v215 = vunpack.c.h.bf16 %v209
    %v216 = vmul.f32 %v113, %v210
    %v217 = vmul.f32 %v114, %v211
    %v218 = vmul.f32 %v115, %v212
    %v219 = vmul.f32 %v116, %v213
    %v220 = vmul.f32 %v117, %v214
    %v221 = vmul.f32 %v118, %v215
    %v222 = vadd.f32 %v216, %v217
    %v223 = vadd.f32 %v222, %v218
    %v224 = vadd.f32 %v223, %v219
    %v225 = vadd.f32 %v224, %v220
    %v226 = vadd.f32 %v225, %v221
    %227 = vadd.xlane.f32.xlu0 %v226
    %v228 = vpop.xlane.xlu0 %227
    %v229 = vld [vmem:[#allocation5 + $0x78] sm:$0xff]
    %v230 = vld [vmem:[#allocation5 + $0x80] sm:$0xff]
    %v231 = vld [vmem:[#allocation5 + $0x88] sm:$0xff]
    %v232 = vunpack.c.l.bf16 %v229
    %v233 = vunpack.c.h.bf16 %v229
    %v234 = vunpack.c.l.bf16 %v230
    %v235 = vunpack.c.h.bf16 %v230
    %v236 = vunpack.c.l.bf16 %v231
    %v237 = vunpack.c.h.bf16 %v231
    %v238 = vmul.f32 %v113, %v232
    %v239 = vmul.f32 %v114, %v233
    %v240 = vmul.f32 %v115, %v234
    %v241 = vmul.f32 %v116, %v235
    %v242 = vmul.f32 %v117, %v236
    %v243 = vmul.f32 %v118, %v237
    %v244 = vadd.f32 %v238, %v239
    %v245 = vadd.f32 %v244, %v240
    %v246 = vadd.f32 %v245, %v241
    %v247 = vadd.f32 %v246, %v242
    %v248 = vadd.f32 %v247, %v243
    %249 = vadd.xlane.f32.xlu0 %v248
    %v250 = vpop.xlane.xlu0 %249
    %v251 = vld [vmem:[#allocation5 + $0x90] sm:$0xff]
    %v252 = vld [vmem:[#allocation5 + $0x98] sm:$0xff]
    %v253 = vld [vmem:[#allocation5 + $0xa0] sm:$0xff]
    %v254 = vunpack.c.l.bf16 %v251
    %v255 = vunpack.c.h.bf16 %v251
    %v256 = vunpack.c.l.bf16 %v252
    %v257 = vunpack.c.h.bf16 %v252
    %v258 = vunpack.c.l.bf16 %v253
    %v259 = vunpack.c.h.bf16 %v253
    %v260 = vmul.f32 %v113, %v254
    %v261 = vmul.f32 %v114, %v255
    %v262 = vmul.f32 %v115, %v256
    %v263 = vmul.f32 %v116, %v257
    %v264 = vmul.f32 %v117, %v258
    %v265 = vmul.f32 %v118, %v259
    %v266 = vadd.f32 %v260, %v261
    %v267 = vadd.f32 %v266, %v262
    %v268 = vadd.f32 %v267, %v263
    %v269 = vadd.f32 %v268, %v264
    %v270 = vadd.f32 %v269, %v265
    %271 = vadd.xlane.f32.xlu0 %v270
    %v272 = vpop.xlane.xlu0 %271
    %v273 = vld [vmem:[#allocation5 + $0xa8] sm:$0xff]
    %v274 = vld [vmem:[#allocation5 + $0xb0] sm:$0xff]
    %v275 = vld [vmem:[#allocation5 + $0xb8] sm:$0xff]
    %v276 = vunpack.c.l.bf16 %v273
    %v277 = vunpack.c.h.bf16 %v273
    %v278 = vunpack.c.l.bf16 %v274
    %v279 = vunpack.c.h.bf16 %v274
    %v280 = vunpack.c.l.bf16 %v275
    %v281 = vunpack.c.h.bf16 %v275
    %v282 = vmul.f32 %v113, %v276
    %v283 = vmul.f32 %v114, %v277
    %v284 = vmul.f32 %v115, %v278
    %v285 = vmul.f32 %v116, %v279
    %v286 = vmul.f32 %v117, %v280
    %v287 = vmul.f32 %v118, %v281
    %v288 = vadd.f32 %v282, %v283
    %v289 = vadd.f32 %v288, %v284
    %v290 = vadd.f32 %v289, %v285
    %v291 = vadd.f32 %v290, %v286
    %v292 = vadd.f32 %v291, %v287
    %293 = vadd.xlane.f32.xlu0 %v292
    %v294 = vpop.xlane.xlu0 %293
    %vm295 = vcmask 7168
    %v296 = vsel %vm295, %v140, %v162
    %vm297 = vcmask 15360
    %v298 = vsel %vm297, %v296, %v184
    %vm299 = vcmask 23552
    %v300 = vsel %vm299, %v298, %v206
    %vm301 = vcmask 31744
    %v302 = vsel %vm301, %v300, %v228
    %vm303 = vcmask 39936
    %v304 = vsel %vm303, %v302, %v250
    %vm305 = vcmask 48128
    %v306 = vsel %vm305, %v304, %v272
    %vm307 = vcmask 56320
    %v308 = vsel %vm307, %v306, %v294
    %vm309 = vcmask 64512
    %v310 = vsel %vm309, %v308, -inf
    %311 = vmax.xlane.f32.xlu0 %v310
    %v312 = vpop.xlane.xlu0 %311
    %v313 = vsub.f32 %v308, %v312
    %v314 = vmul.f32 %v313, 1.442695
    %v315 = vpow.pop %v314
    %v316 = vsel %vm309, %v315, 0.0
    %317 = vadd.xlane.f32.xlu0 %v316
    %v318 = vpop.xlane.xlu0 %317
    %v319 = vrcp.pop %v318
    %v320 = vmul.f32 %v315, %v319
    %322 = vset.pattern.permute.xlu0 0
    %323 = vperm.xlu0 %322, %v320
    %v324 = vpop.permute.xlu0 %323
    %v326 = vmul.f32 %v324, %v122
    %v327 = vmul.f32 %v324, %v123
    %v328 = vmul.f32 %v324, %v124
    %v329 = vmul.f32 %v324, %v125
    %v330 = vmul.f32 %v324, %v126
    %v331 = vmul.f32 %v324, %v127
    %v332 = vadd.f32 %v326, 0.0
    %v333 = vadd.f32 %v327, 0.0
    %v334 = vadd.f32 %v328, 0.0
    %v335 = vadd.f32 %v329, 0.0
    %v336 = vadd.f32 %v330, 0.0
    %v337 = vadd.f32 %v331, 0.0
    %338 = vset.pattern.permute.xlu0 1
    %339 = vperm.xlu0 %338, %v320
    %v340 = vpop.permute.xlu0 %339
    %v342 = vmul.f32 %v340, %v144
    %v343 = vmul.f32 %v340, %v145
    %v344 = vmul.f32 %v340, %v146
    %v345 = vmul.f32 %v340, %v147
    %v346 = vmul.f32 %v340, %v148
    %v347 = vmul.f32 %v340, %v149
    %v348 = vadd.f32 %v332, %v342
    %v349 = vadd.f32 %v333, %v343
    %v350 = vadd.f32 %v334, %v344
    %v351 = vadd.f32 %v335, %v345
    %v352 = vadd.f32 %v336, %v346
    %v353 = vadd.f32 %v337, %v347
    %354 = vset.pattern.permute.xlu0 2
    %355 = vperm.xlu0 %354, %v320
    %v356 = vpop.permute.xlu0 %355
    %v358 = vmul.f32 %v356, %v166
    %v359 = vmul.f32 %v356, %v167
    %v360 = vmul.f32 %v356, %v168
    %v361 = vmul.f32 %v356, %v169
    %v362 = vmul.f32 %v356, %v170
    %v363 = vmul.f32 %v356, %v171
    %v364 = vadd.f32 %v348, %v358
    %v365 = vadd.f32 %v349, %v359
    %v366 = vadd.f32 %v350, %v360
    %v367 = vadd.f32 %v351, %v361
    %v368 = vadd.f32 %v352, %v362
    %v369 = vadd.f32 %v353, %v363
    %370 = vset.pattern.permute.xlu0 3
    %371 = vperm.xlu0 %370, %v320
    %v372 = vpop.permute.xlu0 %371
    %v374 = vmul.f32 %v372, %v188
    %v375 = vmul.f32 %v372, %v189
    %v376 = vmul.f32 %v372, %v190
    %v377 = vmul.f32 %v372, %v191
    %v378 = vmul.f32 %v372, %v192
    %v379 = vmul.f32 %v372, %v193
    %v380 = vadd.f32 %v364, %v374
    %v381 = vadd.f32 %v365, %v375
    %v382 = vadd.f32 %v366, %v376
    %v383 = vadd.f32 %v367, %v377
    %v384 = vadd.f32 %v368, %v378
    %v385 = vadd.f32 %v369, %v379
    %386 = vset.pattern.permute.xlu0 4
    %387 = vperm.xlu0 %386, %v320
    %v388 = vpop.permute.xlu0 %387
    %v390 = vmul.f32 %v388, %v210
    %v391 = vmul.f32 %v388, %v211
    %v392 = vmul.f32 %v388, %v212
    %v393 = vmul.f32 %v388, %v213
    %v394 = vmul.f32 %v388, %v214
    %v395 = vmul.f32 %v388, %v215
    %v396 = vadd.f32 %v380, %v390
    %v397 = vadd.f32 %v381, %v391
    %v398 = vadd.f32 %v382, %v392
    %v399 = vadd.f32 %v383, %v393
    %v400 = vadd.f32 %v384, %v394
    %v401 = vadd.f32 %v385, %v395
    %402 = vset.pattern.permute.xlu0 5
    %403 = vperm.xlu0 %402, %v320
    %v404 = vpop.permute.xlu0 %403
    %v406 = vmul.f32 %v404, %v232
    %v407 = vmul.f32 %v404, %v233
    %v408 = vmul.f32 %v404, %v234
    %v409 = vmul.f32 %v404, %v235
    %v410 = vmul.f32 %v404, %v236
    %v411 = vmul.f32 %v404, %v237
    %v412 = vadd.f32 %v396, %v406
    %v413 = vadd.f32 %v397, %v407
    %v414 = vadd.f32 %v398, %v408
    %v415 = vadd.f32 %v399, %v409
    %v416 = vadd.f32 %v400, %v410
    %v417 = vadd.f32 %v401, %v411
    %418 = vset.pattern.permute.xlu0 6
    %419 = vperm.xlu0 %418, %v320
    %v420 = vpop.permute.xlu0 %419
    %v422 = vmul.f32 %v420, %v254
    %v423 = vmul.f32 %v420, %v255
    %v424 = vmul.f32 %v420, %v256
    %v425 = vmul.f32 %v420, %v257
    %v426 = vmul.f32 %v420, %v258
    %v427 = vmul.f32 %v420, %v259
    %v428 = vadd.f32 %v412, %v422
    %v429 = vadd.f32 %v413, %v423
    %v430 = vadd.f32 %v414, %v424
    %v431 = vadd.f32 %v415, %v425
    %v432 = vadd.f32 %v416, %v426
    %v433 = vadd.f32 %v417, %v427
    %434 = vset.pattern.permute.xlu0 7
    %435 = vperm.xlu0 %434, %v320
    %v436 = vpop.permute.xlu0 %435
    %v438 = vmul.f32 %v436, %v276
    %v439 = vmul.f32 %v436, %v277
    %v440 = vmul.f32 %v436, %v278
    %v441 = vmul.f32 %v436, %v279
    %v442 = vmul.f32 %v436, %v280
    %v443 = vmul.f32 %v436, %v281
    %v444 = vadd.f32 %v428, %v438
    %v445 = vadd.f32 %v429, %v439
    %v446 = vadd.f32 %v430, %v440
    %v447 = vadd.f32 %v431, %v441
    %v448 = vadd.f32 %v432, %v442
    %v449 = vadd.f32 %v433, %v443
    %v450 = vpack.c.bf16 %v445, %v444
    %v451 = vpack.c.bf16 %v447, %v446
    %v452 = vpack.c.bf16 %v449, %v448
    %v456 = vunpack.c.l.b16 %v450
    %v457 = vunpack.c.h.b16 %v450
    %v458 = vunpack.c.l.b16 %v451
    %v459 = vunpack.c.h.b16 %v451
    %v460 = vunpack.c.l.b16 %v452
    %v461 = vunpack.c.h.b16 %v452
    %v462 = vpack.c.b16 %v456, %v456
    %v463 = vpack.c.b16 %v457, %v457
    %v464 = vpack.c.b16 %v458, %v458
    %v465 = vpack.c.b16 %v459, %v459
    %v466 = vpack.c.b16 %v460, %v460
    %v467 = vpack.c.b16 %v461, %v461
    %v477 = vunpack.c.l.b16 %v110
    %v478 = vunpack.c.h.b16 %v110
    %v479 = vunpack.c.l.b16 %v111
    %v480 = vunpack.c.h.b16 %v111
    %v481 = vunpack.c.l.b16 %v112
    %v482 = vunpack.c.h.b16 %v112
    %v483 = vpack.c.b16 %v477, %v477
    %v484 = vpack.c.b16 %v478, %v478
    %v485 = vpack.c.b16 %v479, %v479
    %v486 = vpack.c.b16 %v480, %v480
    %v487 = vpack.c.b16 %v481, %v481
    %v488 = vpack.c.b16 %v482, %v482
    %v495 = vld [vmem:[#allocation7] sm:$0xff]
    %v496 = vld [vmem:[#allocation7 + $0x8] sm:$0xff]
    %v497 = vld [vmem:[#allocation7 + $0x10] sm:$0xff]
    %v498 = vld [vmem:[#allocation7 + $0x18] sm:$0xff]
    %v499 = vld [vmem:[#allocation7 + $0x20] sm:$0xff]
    %v500 = vld [vmem:[#allocation7 + $0x28] sm:$0xff]
    %v501 = vld [vmem:[#allocation7 + $0x30] sm:$0xff]
    %v502 = vld [vmem:[#allocation7 + $0x38] sm:$0xff]
    %v503 = vld [vmem:[#allocation7 + $0x40] sm:$0xff]
    %v504 = vld [vmem:[#allocation7 + $0x48] sm:$0xff]
    %v505 = vld [vmem:[#allocation7 + $0x50] sm:$0xff]
    %v506 = vld [vmem:[#allocation7 + $0x58] sm:$0xff]
    %v507 = vld [vmem:[#allocation7 + $0x60] sm:$0xff]
    %v508 = vld [vmem:[#allocation7 + $0x68] sm:$0xff]
    %v509 = vld [vmem:[#allocation7 + $0x70] sm:$0xff]
    %v510 = vld [vmem:[#allocation7 + $0x78] sm:$0xff]
    %v511 = vld [vmem:[#allocation7 + $0x80] sm:$0xff]
    %v512 = vld [vmem:[#allocation7 + $0x88] sm:$0xff]
    %v513 = vld [vmem:[#allocation7 + $0x90] sm:$0xff]
    %v514 = vld [vmem:[#allocation7 + $0x98] sm:$0xff]
    %v515 = vld [vmem:[#allocation7 + $0xa0] sm:$0xff]
    %v516 = vld [vmem:[#allocation7 + $0xa8] sm:$0xff]
    %v517 = vld [vmem:[#allocation7 + $0xb0] sm:$0xff]
    %v518 = vld [vmem:[#allocation7 + $0xb8] sm:$0xff]
    %v519 = vld [vmem:[#allocation7 + $0xc0] sm:$0xff]
    %v520 = vld [vmem:[#allocation7 + $0xc8] sm:$0xff]
    %v521 = vld [vmem:[#allocation7 + $0xd0] sm:$0xff]
    %v522 = vld [vmem:[#allocation7 + $0xd8] sm:$0xff]
    %v523 = vld [vmem:[#allocation7 + $0xe0] sm:$0xff]
    %v524 = vld [vmem:[#allocation7 + $0xe8] sm:$0xff]
    %v525 = vld [vmem:[#allocation7 + $0xf0] sm:$0xff]
    %v526 = vld [vmem:[#allocation7 + $0xf8] sm:$0xff]
    %v527 = vld [vmem:[#allocation7 + $0x100] sm:$0xff]
    %v528 = vld [vmem:[#allocation7 + $0x108] sm:$0xff]
    %v529 = vld [vmem:[#allocation7 + $0x110] sm:$0xff]
    %v530 = vld [vmem:[#allocation7 + $0x118] sm:$0xff]
    %v531 = vld [vmem:[#allocation7 + $0x120] sm:$0xff]
    %v532 = vld [vmem:[#allocation7 + $0x128] sm:$0xff]
    %v533 = vld [vmem:[#allocation7 + $0x130] sm:$0xff]
    %v534 = vld [vmem:[#allocation7 + $0x138] sm:$0xff]
    %v535 = vld [vmem:[#allocation7 + $0x140] sm:$0xff]
    %v536 = vld [vmem:[#allocation7 + $0x148] sm:$0xff]
    %v537 = vld [vmem:[#allocation7 + $0x150] sm:$0xff]
    %v538 = vld [vmem:[#allocation7 + $0x158] sm:$0xff]
    %v539 = vld [vmem:[#allocation7 + $0x160] sm:$0xff]
    %v540 = vld [vmem:[#allocation7 + $0x168] sm:$0xff]
    %v541 = vld [vmem:[#allocation7 + $0x170] sm:$0xff]
    %v542 = vld [vmem:[#allocation7 + $0x178] sm:$0xff]
    %v543 = vld [vmem:[#allocation7 + $0x180] sm:$0xff]
    %v544 = vld [vmem:[#allocation7 + $0x188] sm:$0xff]
    %v545 = vld [vmem:[#allocation7 + $0x190] sm:$0xff]
    %v546 = vld [vmem:[#allocation7 + $0x198] sm:$0xff]
    %v547 = vld [vmem:[#allocation7 + $0x1a0] sm:$0xff]
    %v548 = vld [vmem:[#allocation7 + $0x1a8] sm:$0xff]
    %v549 = vld [vmem:[#allocation7 + $0x1b0] sm:$0xff]
    %v550 = vld [vmem:[#allocation7 + $0x1b8] sm:$0xff]
    %v551 = vld [vmem:[#allocation7 + $0x1c0] sm:$0xff]
    %v552 = vld [vmem:[#allocation7 + $0x1c8] sm:$0xff]
    %v553 = vld [vmem:[#allocation7 + $0x1d0] sm:$0xff]
    %v554 = vld [vmem:[#allocation7 + $0x1d8] sm:$0xff]
    %v555 = vld [vmem:[#allocation7 + $0x1e0] sm:$0xff]
    %v556 = vld [vmem:[#allocation7 + $0x1e8] sm:$0xff]
    %v557 = vld [vmem:[#allocation7 + $0x1f0] sm:$0xff]
    %v558 = vld [vmem:[#allocation7 + $0x1f8] sm:$0xff]
    %v559 = vld [vmem:[#allocation7 + $0x200] sm:$0xff]
    %v560 = vld [vmem:[#allocation7 + $0x208] sm:$0xff]
    %v561 = vld [vmem:[#allocation7 + $0x210] sm:$0xff]
    %v562 = vld [vmem:[#allocation7 + $0x218] sm:$0xff]
    %v563 = vld [vmem:[#allocation7 + $0x220] sm:$0xff]
    %v564 = vld [vmem:[#allocation7 + $0x228] sm:$0xff]
    %v565 = vld [vmem:[#allocation7 + $0x230] sm:$0xff]
    %v566 = vld [vmem:[#allocation7 + $0x238] sm:$0xff]
    %v567 = vld [vmem:[#allocation7 + $0x240] sm:$0xff]
    %v568 = vld [vmem:[#allocation7 + $0x248] sm:$0xff]
    %v569 = vld [vmem:[#allocation7 + $0x250] sm:$0xff]
    %v570 = vld [vmem:[#allocation7 + $0x258] sm:$0xff]
    %v571 = vld [vmem:[#allocation7 + $0x260] sm:$0xff]
    %v572 = vld [vmem:[#allocation7 + $0x268] sm:$0xff]
    %v573 = vld [vmem:[#allocation7 + $0x270] sm:$0xff]
    %v574 = vld [vmem:[#allocation7 + $0x278] sm:$0xff]
    %v575 = vld [vmem:[#allocation7 + $0x280] sm:$0xff]
    %v576 = vld [vmem:[#allocation7 + $0x288] sm:$0xff]
    %v577 = vld [vmem:[#allocation7 + $0x290] sm:$0xff]
    %v578 = vld [vmem:[#allocation7 + $0x298] sm:$0xff]
    %v579 = vld [vmem:[#allocation7 + $0x2a0] sm:$0xff]
    %v580 = vld [vmem:[#allocation7 + $0x2a8] sm:$0xff]
    %v581 = vld [vmem:[#allocation7 + $0x2b0] sm:$0xff]
    %v582 = vld [vmem:[#allocation7 + $0x2b8] sm:$0xff]
    %v583 = vld [vmem:[#allocation7 + $0x2c0] sm:$0xff]
    %v584 = vld [vmem:[#allocation7 + $0x2c8] sm:$0xff]
    %v585 = vld [vmem:[#allocation7 + $0x2d0] sm:$0xff]
    %v586 = vld [vmem:[#allocation7 + $0x2d8] sm:$0xff]
    %v587 = vld [vmem:[#allocation7 + $0x2e0] sm:$0xff]
    %v588 = vld [vmem:[#allocation7 + $0x2e8] sm:$0xff]
    %v589 = vld [vmem:[#allocation7 + $0x2f0] sm:$0xff]
    %v590 = vld [vmem:[#allocation7 + $0x2f8] sm:$0xff]
    %v591 = vld [vmem:[#allocation7 + $0x300] sm:$0xff]
    %v592 = vld [vmem:[#allocation7 + $0x308] sm:$0xff]
    %v593 = vld [vmem:[#allocation7 + $0x310] sm:$0xff]
    %v594 = vld [vmem:[#allocation7 + $0x318] sm:$0xff]
    %v595 = vld [vmem:[#allocation7 + $0x320] sm:$0xff]
    %v596 = vld [vmem:[#allocation7 + $0x328] sm:$0xff]
    %v597 = vld [vmem:[#allocation7 + $0x330] sm:$0xff]
    %v598 = vld [vmem:[#allocation7 + $0x338] sm:$0xff]
    %v599 = vld [vmem:[#allocation7 + $0x340] sm:$0xff]
    %v600 = vld [vmem:[#allocation7 + $0x348] sm:$0xff]
    %v601 = vld [vmem:[#allocation7 + $0x350] sm:$0xff]
    %v602 = vld [vmem:[#allocation7 + $0x358] sm:$0xff]
    %v603 = vld [vmem:[#allocation7 + $0x360] sm:$0xff]
    %v604 = vld [vmem:[#allocation7 + $0x368] sm:$0xff]
    %v605 = vld [vmem:[#allocation7 + $0x370] sm:$0xff]
    %v606 = vld [vmem:[#allocation7 + $0x378] sm:$0xff]
    %v607 = vld [vmem:[#allocation7 + $0x380] sm:$0xff]
    %v608 = vld [vmem:[#allocation7 + $0x388] sm:$0xff]
    %v609 = vld [vmem:[#allocation7 + $0x390] sm:$0xff]
    %v610 = vld [vmem:[#allocation7 + $0x398] sm:$0xff]
    %v611 = vld [vmem:[#allocation7 + $0x3a0] sm:$0xff]
    %v612 = vld [vmem:[#allocation7 + $0x3a8] sm:$0xff]
    %v613 = vld [vmem:[#allocation7 + $0x3b0] sm:$0xff]
    %v614 = vld [vmem:[#allocation7 + $0x3b8] sm:$0xff]
    %v615 = vld [vmem:[#allocation7 + $0x3c0] sm:$0xff]
    %v616 = vld [vmem:[#allocation7 + $0x3c8] sm:$0xff]
    %v617 = vld [vmem:[#allocation7 + $0x3d0] sm:$0xff]
    %v618 = vld [vmem:[#allocation7 + $0x3d8] sm:$0xff]
    %v619 = vld [vmem:[#allocation7 + $0x3e0] sm:$0xff]
    %v620 = vld [vmem:[#allocation7 + $0x3e8] sm:$0xff]
    %v621 = vld [vmem:[#allocation7 + $0x3f0] sm:$0xff]
    %v622 = vld [vmem:[#allocation7 + $0x3f8] sm:$0xff]
    %v623 = vld [vmem:[#allocation7 + $0x400] sm:$0xff]
    %v624 = vld [vmem:[#allocation7 + $0x408] sm:$0xff]
    %v625 = vld [vmem:[#allocation7 + $0x410] sm:$0xff]
    %v626 = vld [vmem:[#allocation7 + $0x418] sm:$0xff]
    %v627 = vld [vmem:[#allocation7 + $0x420] sm:$0xff]
    %v628 = vld [vmem:[#allocation7 + $0x428] sm:$0xff]
    %v629 = vld [vmem:[#allocation7 + $0x430] sm:$0xff]
    %v630 = vld [vmem:[#allocation7 + $0x438] sm:$0xff]
    %v631 = vld [vmem:[#allocation7 + $0x440] sm:$0xff]
    %v632 = vld [vmem:[#allocation7 + $0x448] sm:$0xff]
    %v633 = vld [vmem:[#allocation7 + $0x450] sm:$0xff]
    %v634 = vld [vmem:[#allocation7 + $0x458] sm:$0xff]
    %v635 = vld [vmem:[#allocation7 + $0x460] sm:$0xff]
    %v636 = vld [vmem:[#allocation7 + $0x468] sm:$0xff]
    %v637 = vld [vmem:[#allocation7 + $0x470] sm:$0xff]
    %v638 = vld [vmem:[#allocation7 + $0x478] sm:$0xff]
    %v639 = vld [vmem:[#allocation7 + $0x480] sm:$0xff]
    %v640 = vld [vmem:[#allocation7 + $0x488] sm:$0xff]
    %v641 = vld [vmem:[#allocation7 + $0x490] sm:$0xff]
    %v642 = vld [vmem:[#allocation7 + $0x498] sm:$0xff]
    %v643 = vld [vmem:[#allocation7 + $0x4a0] sm:$0xff]
    %v644 = vld [vmem:[#allocation7 + $0x4a8] sm:$0xff]
    %v645 = vld [vmem:[#allocation7 + $0x4b0] sm:$0xff]
    %v646 = vld [vmem:[#allocation7 + $0x4b8] sm:$0xff]
    %v647 = vld [vmem:[#allocation7 + $0x4c0] sm:$0xff]
    %v648 = vld [vmem:[#allocation7 + $0x4c8] sm:$0xff]
    %v649 = vld [vmem:[#allocation7 + $0x4d0] sm:$0xff]
    %v650 = vld [vmem:[#allocation7 + $0x4d8] sm:$0xff]
    %v651 = vld [vmem:[#allocation7 + $0x4e0] sm:$0xff]
    %v652 = vld [vmem:[#allocation7 + $0x4e8] sm:$0xff]
    %v653 = vld [vmem:[#allocation7 + $0x4f0] sm:$0xff]
    %v654 = vld [vmem:[#allocation7 + $0x4f8] sm:$0xff]
    %v655 = vld [vmem:[#allocation7 + $0x500] sm:$0xff]
    %v656 = vld [vmem:[#allocation7 + $0x508] sm:$0xff]
    %v657 = vld [vmem:[#allocation7 + $0x510] sm:$0xff]
    %v658 = vld [vmem:[#allocation7 + $0x518] sm:$0xff]
    %v659 = vld [vmem:[#allocation7 + $0x520] sm:$0xff]
    %v660 = vld [vmem:[#allocation7 + $0x528] sm:$0xff]
    %v661 = vld [vmem:[#allocation7 + $0x530] sm:$0xff]
    %v662 = vld [vmem:[#allocation7 + $0x538] sm:$0xff]
    %v663 = vld [vmem:[#allocation7 + $0x540] sm:$0xff]
    %v664 = vld [vmem:[#allocation7 + $0x548] sm:$0xff]
    %v665 = vld [vmem:[#allocation7 + $0x550] sm:$0xff]
    %v666 = vld [vmem:[#allocation7 + $0x558] sm:$0xff]
    %v667 = vld [vmem:[#allocation7 + $0x560] sm:$0xff]
    %v668 = vld [vmem:[#allocation7 + $0x568] sm:$0xff]
    %v669 = vld [vmem:[#allocation7 + $0x570] sm:$0xff]
    %v670 = vld [vmem:[#allocation7 + $0x578] sm:$0xff]
    %v671 = vld [vmem:[#allocation7 + $0x580] sm:$0xff]
    %v672 = vld [vmem:[#allocation7 + $0x588] sm:$0xff]
    %v673 = vld [vmem:[#allocation7 + $0x590] sm:$0xff]
    %v674 = vld [vmem:[#allocation7 + $0x598] sm:$0xff]
    %v675 = vld [vmem:[#allocation7 + $0x5a0] sm:$0xff]
    %v676 = vld [vmem:[#allocation7 + $0x5a8] sm:$0xff]
    %v677 = vld [vmem:[#allocation7 + $0x5b0] sm:$0xff]
    %v678 = vld [vmem:[#allocation7 + $0x5b8] sm:$0xff]
    %v679 = vld [vmem:[#allocation7 + $0x5c0] sm:$0xff]
    %v680 = vld [vmem:[#allocation7 + $0x5c8] sm:$0xff]
    %v681 = vld [vmem:[#allocation7 + $0x5d0] sm:$0xff]
    %v682 = vld [vmem:[#allocation7 + $0x5d8] sm:$0xff]
    %v683 = vld [vmem:[#allocation7 + $0x5e0] sm:$0xff]
    %v684 = vld [vmem:[#allocation7 + $0x5e8] sm:$0xff]
    %v685 = vld [vmem:[#allocation7 + $0x5f0] sm:$0xff]
    %v686 = vld [vmem:[#allocation7 + $0x5f8] sm:$0xff]
    %v687 = vld [vmem:[#allocation7 + $0x600] sm:$0xff]
    %v688 = vld [vmem:[#allocation7 + $0x608] sm:$0xff]
    %v689 = vld [vmem:[#allocation7 + $0x610] sm:$0xff]
    %v690 = vld [vmem:[#allocation7 + $0x618] sm:$0xff]
    %v691 = vld [vmem:[#allocation7 + $0x620] sm:$0xff]
    %v692 = vld [vmem:[#allocation7 + $0x628] sm:$0xff]
    %v693 = vld [vmem:[#allocation7 + $0x630] sm:$0xff]
    %v694 = vld [vmem:[#allocation7 + $0x638] sm:$0xff]
    %v695 = vld [vmem:[#allocation7 + $0x640] sm:$0xff]
    %v696 = vld [vmem:[#allocation7 + $0x648] sm:$0xff]
    %v697 = vld [vmem:[#allocation7 + $0x650] sm:$0xff]
    %v698 = vld [vmem:[#allocation7 + $0x658] sm:$0xff]
    %v699 = vld [vmem:[#allocation7 + $0x660] sm:$0xff]
    %v700 = vld [vmem:[#allocation7 + $0x668] sm:$0xff]
    %v701 = vld [vmem:[#allocation7 + $0x670] sm:$0xff]
    %v702 = vld [vmem:[#allocation7 + $0x678] sm:$0xff]
    %v703 = vld [vmem:[#allocation7 + $0x680] sm:$0xff]
    %v704 = vld [vmem:[#allocation7 + $0x688] sm:$0xff]
    %v705 = vld [vmem:[#allocation7 + $0x690] sm:$0xff]
    %v706 = vld [vmem:[#allocation7 + $0x698] sm:$0xff]
    %v707 = vld [vmem:[#allocation7 + $0x6a0] sm:$0xff]
    %v708 = vld [vmem:[#allocation7 + $0x6a8] sm:$0xff]
    %v709 = vld [vmem:[#allocation7 + $0x6b0] sm:$0xff]
    %v710 = vld [vmem:[#allocation7 + $0x6b8] sm:$0xff]
    %v711 = vld [vmem:[#allocation7 + $0x6c0] sm:$0xff]
    %v712 = vld [vmem:[#allocation7 + $0x6c8] sm:$0xff]
    %v713 = vld [vmem:[#allocation7 + $0x6d0] sm:$0xff]
    %v714 = vld [vmem:[#allocation7 + $0x6d8] sm:$0xff]
    %v715 = vld [vmem:[#allocation7 + $0x6e0] sm:$0xff]
    %v716 = vld [vmem:[#allocation7 + $0x6e8] sm:$0xff]
    %v717 = vld [vmem:[#allocation7 + $0x6f0] sm:$0xff]
    %v718 = vld [vmem:[#allocation7 + $0x6f8] sm:$0xff]
    %v719 = vld [vmem:[#allocation7 + $0x700] sm:$0xff]
    %v720 = vld [vmem:[#allocation7 + $0x708] sm:$0xff]
    %v721 = vld [vmem:[#allocation7 + $0x710] sm:$0xff]
    %v722 = vld [vmem:[#allocation7 + $0x718] sm:$0xff]
    %v723 = vld [vmem:[#allocation7 + $0x720] sm:$0xff]
    %v724 = vld [vmem:[#allocation7 + $0x728] sm:$0xff]
    %v725 = vld [vmem:[#allocation7 + $0x730] sm:$0xff]
    %v726 = vld [vmem:[#allocation7 + $0x738] sm:$0xff]
    %v727 = vld [vmem:[#allocation7 + $0x740] sm:$0xff]
    %v728 = vld [vmem:[#allocation7 + $0x748] sm:$0xff]
    %v729 = vld [vmem:[#allocation7 + $0x750] sm:$0xff]
    %v730 = vld [vmem:[#allocation7 + $0x758] sm:$0xff]
    %v731 = vld [vmem:[#allocation7 + $0x760] sm:$0xff]
    %v732 = vld [vmem:[#allocation7 + $0x768] sm:$0xff]
    %v733 = vld [vmem:[#allocation7 + $0x770] sm:$0xff]
    %v734 = vld [vmem:[#allocation7 + $0x778] sm:$0xff]
    %v735 = vld [vmem:[#allocation7 + $0x780] sm:$0xff]
    %v736 = vld [vmem:[#allocation7 + $0x788] sm:$0xff]
    %v737 = vld [vmem:[#allocation7 + $0x790] sm:$0xff]
    %v738 = vld [vmem:[#allocation7 + $0x798] sm:$0xff]
    %v739 = vld [vmem:[#allocation7 + $0x7a0] sm:$0xff]
    %v740 = vld [vmem:[#allocation7 + $0x7a8] sm:$0xff]
    %v741 = vld [vmem:[#allocation7 + $0x7b0] sm:$0xff]
    %v742 = vld [vmem:[#allocation7 + $0x7b8] sm:$0xff]
    %v743 = vld [vmem:[#allocation7 + $0x7c0] sm:$0xff]
    %v744 = vld [vmem:[#allocation7 + $0x7c8] sm:$0xff]
    %v745 = vld [vmem:[#allocation7 + $0x7d0] sm:$0xff]
    %v746 = vld [vmem:[#allocation7 + $0x7d8] sm:$0xff]
    %v747 = vld [vmem:[#allocation7 + $0x7e0] sm:$0xff]
    %v748 = vld [vmem:[#allocation7 + $0x7e8] sm:$0xff]
    %v749 = vld [vmem:[#allocation7 + $0x7f0] sm:$0xff]
    %v750 = vld [vmem:[#allocation7 + $0x7f8] sm:$0xff]
    %v751 = vld [vmem:[#allocation7 + $0x800] sm:$0xff]
    %v752 = vld [vmem:[#allocation7 + $0x808] sm:$0xff]
    %v753 = vld [vmem:[#allocation7 + $0x810] sm:$0xff]
    %v754 = vld [vmem:[#allocation7 + $0x818] sm:$0xff]
    %v755 = vld [vmem:[#allocation7 + $0x820] sm:$0xff]
    %v756 = vld [vmem:[#allocation7 + $0x828] sm:$0xff]
    %v757 = vld [vmem:[#allocation7 + $0x830] sm:$0xff]
    %v758 = vld [vmem:[#allocation7 + $0x838] sm:$0xff]
    %v759 = vld [vmem:[#allocation7 + $0x840] sm:$0xff]
    %v760 = vld [vmem:[#allocation7 + $0x848] sm:$0xff]
    %v761 = vld [vmem:[#allocation7 + $0x850] sm:$0xff]
    %v762 = vld [vmem:[#allocation7 + $0x858] sm:$0xff]
    %v763 = vld [vmem:[#allocation7 + $0x860] sm:$0xff]
    %v764 = vld [vmem:[#allocation7 + $0x868] sm:$0xff]
    %v765 = vld [vmem:[#allocation7 + $0x870] sm:$0xff]
    %v766 = vld [vmem:[#allocation7 + $0x878] sm:$0xff]
    %v767 = vld [vmem:[#allocation7 + $0x880] sm:$0xff]
    %v768 = vld [vmem:[#allocation7 + $0x888] sm:$0xff]
    %v769 = vld [vmem:[#allocation7 + $0x890] sm:$0xff]
    %v770 = vld [vmem:[#allocation7 + $0x898] sm:$0xff]
    %v771 = vld [vmem:[#allocation7 + $0x8a0] sm:$0xff]
    %v772 = vld [vmem:[#allocation7 + $0x8a8] sm:$0xff]
    %v773 = vld [vmem:[#allocation7 + $0x8b0] sm:$0xff]
    %v774 = vld [vmem:[#allocation7 + $0x8b8] sm:$0xff]
    %v775 = vld [vmem:[#allocation7 + $0x8c0] sm:$0xff]
    %v776 = vld [vmem:[#allocation7 + $0x8c8] sm:$0xff]
    %v777 = vld [vmem:[#allocation7 + $0x8d0] sm:$0xff]
    %v778 = vld [vmem:[#allocation7 + $0x8d8] sm:$0xff]
    %v779 = vld [vmem:[#allocation7 + $0x8e0] sm:$0xff]
    %v780 = vld [vmem:[#allocation7 + $0x8e8] sm:$0xff]
    %v781 = vld [vmem:[#allocation7 + $0x8f0] sm:$0xff]
    %v782 = vld [vmem:[#allocation7 + $0x8f8] sm:$0xff]
    %v783 = vld [vmem:[#allocation7 + $0x900] sm:$0xff]
    %v784 = vld [vmem:[#allocation7 + $0x908] sm:$0xff]
    %v785 = vld [vmem:[#allocation7 + $0x910] sm:$0xff]
    %v786 = vld [vmem:[#allocation7 + $0x918] sm:$0xff]
    %v787 = vld [vmem:[#allocation7 + $0x920] sm:$0xff]
    %v788 = vld [vmem:[#allocation7 + $0x928] sm:$0xff]
    %v789 = vld [vmem:[#allocation7 + $0x930] sm:$0xff]
    %v790 = vld [vmem:[#allocation7 + $0x938] sm:$0xff]
    %v791 = vld [vmem:[#allocation7 + $0x940] sm:$0xff]
    %v792 = vld [vmem:[#allocation7 + $0x948] sm:$0xff]
    %v793 = vld [vmem:[#allocation7 + $0x950] sm:$0xff]
    %v794 = vld [vmem:[#allocation7 + $0x958] sm:$0xff]
    %v795 = vld [vmem:[#allocation7 + $0x960] sm:$0xff]
    %v796 = vld [vmem:[#allocation7 + $0x968] sm:$0xff]
    %v797 = vld [vmem:[#allocation7 + $0x970] sm:$0xff]
    %v798 = vld [vmem:[#allocation7 + $0x978] sm:$0xff]
    %v799 = vld [vmem:[#allocation7 + $0x980] sm:$0xff]
    %v800 = vld [vmem:[#allocation7 + $0x988] sm:$0xff]
    %v801 = vld [vmem:[#allocation7 + $0x990] sm:$0xff]
    %v802 = vld [vmem:[#allocation7 + $0x998] sm:$0xff]
    %v803 = vld [vmem:[#allocation7 + $0x9a0] sm:$0xff]
    %v804 = vld [vmem:[#allocation7 + $0x9a8] sm:$0xff]
    %v805 = vld [vmem:[#allocation7 + $0x9b0] sm:$0xff]
    %v806 = vld [vmem:[#allocation7 + $0x9b8] sm:$0xff]
    %v807 = vld [vmem:[#allocation7 + $0x9c0] sm:$0xff]
    %v808 = vld [vmem:[#allocation7 + $0x9c8] sm:$0xff]
    %v809 = vld [vmem:[#allocation7 + $0x9d0] sm:$0xff]
    %v810 = vld [vmem:[#allocation7 + $0x9d8] sm:$0xff]
    %v811 = vld [vmem:[#allocation7 + $0x9e0] sm:$0xff]
    %v812 = vld [vmem:[#allocation7 + $0x9e8] sm:$0xff]
    %v813 = vld [vmem:[#allocation7 + $0x9f0] sm:$0xff]
    %v814 = vld [vmem:[#allocation7 + $0x9f8] sm:$0xff]
    %v815 = vld [vmem:[#allocation7 + $0xa00] sm:$0xff]
    %v816 = vld [vmem:[#allocation7 + $0xa08] sm:$0xff]
    %v817 = vld [vmem:[#allocation7 + $0xa10] sm:$0xff]
    %v818 = vld [vmem:[#allocation7 + $0xa18] sm:$0xff]
    %v819 = vld [vmem:[#allocation7 + $0xa20] sm:$0xff]
    %v820 = vld [vmem:[#allocation7 + $0xa28] sm:$0xff]
    %v821 = vld [vmem:[#allocation7 + $0xa30] sm:$0xff]
    %v822 = vld [vmem:[#allocation7 + $0xa38] sm:$0xff]
    %v823 = vld [vmem:[#allocation7 + $0xa40] sm:$0xff]
    %v824 = vld [vmem:[#allocation7 + $0xa48] sm:$0xff]
    %v825 = vld [vmem:[#allocation7 + $0xa50] sm:$0xff]
    %v826 = vld [vmem:[#allocation7 + $0xa58] sm:$0xff]
    %v827 = vld [vmem:[#allocation7 + $0xa60] sm:$0xff]
    %v828 = vld [vmem:[#allocation7 + $0xa68] sm:$0xff]
    %v829 = vld [vmem:[#allocation7 + $0xa70] sm:$0xff]
    %v830 = vld [vmem:[#allocation7 + $0xa78] sm:$0xff]
    %v831 = vld [vmem:[#allocation7 + $0xa80] sm:$0xff]
    %v832 = vld [vmem:[#allocation7 + $0xa88] sm:$0xff]
    %v833 = vld [vmem:[#allocation7 + $0xa90] sm:$0xff]
    %v834 = vld [vmem:[#allocation7 + $0xa98] sm:$0xff]
    %v835 = vld [vmem:[#allocation7 + $0xaa0] sm:$0xff]
    %v836 = vld [vmem:[#allocation7 + $0xaa8] sm:$0xff]
    %v837 = vld [vmem:[#allocation7 + $0xab0] sm:$0xff]
    %v838 = vld [vmem:[#allocation7 + $0xab8] sm:$0xff]
    %v839 = vld [vmem:[#allocation7 + $0xac0] sm:$0xff]
    %v840 = vld [vmem:[#allocation7 + $0xac8] sm:$0xff]
    %v841 = vld [vmem:[#allocation7 + $0xad0] sm:$0xff]
    %v842 = vld [vmem:[#allocation7 + $0xad8] sm:$0xff]
    %v843 = vld [vmem:[#allocation7 + $0xae0] sm:$0xff]
    %v844 = vld [vmem:[#allocation7 + $0xae8] sm:$0xff]
    %v845 = vld [vmem:[#allocation7 + $0xaf0] sm:$0xff]
    %v846 = vld [vmem:[#allocation7 + $0xaf8] sm:$0xff]
    %v847 = vld [vmem:[#allocation7 + $0xb00] sm:$0xff]
    %v848 = vld [vmem:[#allocation7 + $0xb08] sm:$0xff]
    %v849 = vld [vmem:[#allocation7 + $0xb10] sm:$0xff]
    %v850 = vld [vmem:[#allocation7 + $0xb18] sm:$0xff]
    %v851 = vld [vmem:[#allocation7 + $0xb20] sm:$0xff]
    %v852 = vld [vmem:[#allocation7 + $0xb28] sm:$0xff]
    %v853 = vld [vmem:[#allocation7 + $0xb30] sm:$0xff]
    %v854 = vld [vmem:[#allocation7 + $0xb38] sm:$0xff]
    %v855 = vld [vmem:[#allocation7 + $0xb40] sm:$0xff]
    %v856 = vld [vmem:[#allocation7 + $0xb48] sm:$0xff]
    %v857 = vld [vmem:[#allocation7 + $0xb50] sm:$0xff]
    %v858 = vld [vmem:[#allocation7 + $0xb58] sm:$0xff]
    %v859 = vld [vmem:[#allocation7 + $0xb60] sm:$0xff]
    %v860 = vld [vmem:[#allocation7 + $0xb68] sm:$0xff]
    %v861 = vld [vmem:[#allocation7 + $0xb70] sm:$0xff]
    %v862 = vld [vmem:[#allocation7 + $0xb78] sm:$0xff]
    %v863 = vld [vmem:[#allocation7 + $0xb80] sm:$0xff]
    %v864 = vld [vmem:[#allocation7 + $0xb88] sm:$0xff]
    %v865 = vld [vmem:[#allocation7 + $0xb90] sm:$0xff]
    %v866 = vld [vmem:[#allocation7 + $0xb98] sm:$0xff]
    %v867 = vld [vmem:[#allocation7 + $0xba0] sm:$0xff]
    %v868 = vld [vmem:[#allocation7 + $0xba8] sm:$0xff]
    %v869 = vld [vmem:[#allocation7 + $0xbb0] sm:$0xff]
    %v870 = vld [vmem:[#allocation7 + $0xbb8] sm:$0xff]
    %v871 = vld [vmem:[#allocation7 + $0xbc0] sm:$0xff]
    %v872 = vld [vmem:[#allocation7 + $0xbc8] sm:$0xff]
    %v873 = vld [vmem:[#allocation7 + $0xbd0] sm:$0xff]
    %v874 = vld [vmem:[#allocation7 + $0xbd8] sm:$0xff]
    %v875 = vld [vmem:[#allocation7 + $0xbe0] sm:$0xff]
    %v876 = vld [vmem:[#allocation7 + $0xbe8] sm:$0xff]
    %v877 = vld [vmem:[#allocation7 + $0xbf0] sm:$0xff]
    %v878 = vld [vmem:[#allocation7 + $0xbf8] sm:$0xff]
    %v879 = vld [vmem:[#allocation7 + $0xc00] sm:$0xff]
    %v880 = vld [vmem:[#allocation7 + $0xc08] sm:$0xff]
    %v881 = vld [vmem:[#allocation7 + $0xc10] sm:$0xff]
    %v882 = vld [vmem:[#allocation7 + $0xc18] sm:$0xff]
    %v883 = vld [vmem:[#allocation7 + $0xc20] sm:$0xff]
    %v884 = vld [vmem:[#allocation7 + $0xc28] sm:$0xff]
    %v885 = vld [vmem:[#allocation7 + $0xc30] sm:$0xff]
    %v886 = vld [vmem:[#allocation7 + $0xc38] sm:$0xff]
    %v887 = vld [vmem:[#allocation7 + $0xc40] sm:$0xff]
    %v888 = vld [vmem:[#allocation7 + $0xc48] sm:$0xff]
    %v889 = vld [vmem:[#allocation7 + $0xc50] sm:$0xff]
    %v890 = vld [vmem:[#allocation7 + $0xc58] sm:$0xff]
    %v891 = vld [vmem:[#allocation7 + $0xc60] sm:$0xff]
    %v892 = vld [vmem:[#allocation7 + $0xc68] sm:$0xff]
    %v893 = vld [vmem:[#allocation7 + $0xc70] sm:$0xff]
    %v894 = vld [vmem:[#allocation7 + $0xc78] sm:$0xff]
    %v895 = vld [vmem:[#allocation7 + $0xc80] sm:$0xff]
    %v896 = vld [vmem:[#allocation7 + $0xc88] sm:$0xff]
    %v897 = vld [vmem:[#allocation7 + $0xc90] sm:$0xff]
    %v898 = vld [vmem:[#allocation7 + $0xc98] sm:$0xff]
    %v899 = vld [vmem:[#allocation7 + $0xca0] sm:$0xff]
    %v900 = vld [vmem:[#allocation7 + $0xca8] sm:$0xff]
    %v901 = vld [vmem:[#allocation7 + $0xcb0] sm:$0xff]
    %v902 = vld [vmem:[#allocation7 + $0xcb8] sm:$0xff]
    %v903 = vld [vmem:[#allocation7 + $0xcc0] sm:$0xff]
    %v904 = vld [vmem:[#allocation7 + $0xcc8] sm:$0xff]
    %v905 = vld [vmem:[#allocation7 + $0xcd0] sm:$0xff]
    %v906 = vld [vmem:[#allocation7 + $0xcd8] sm:$0xff]
    %v907 = vld [vmem:[#allocation7 + $0xce0] sm:$0xff]
    %v908 = vld [vmem:[#allocation7 + $0xce8] sm:$0xff]
    %v909 = vld [vmem:[#allocation7 + $0xcf0] sm:$0xff]
    %v910 = vld [vmem:[#allocation7 + $0xcf8] sm:$0xff]
    %v911 = vld [vmem:[#allocation7 + $0xd00] sm:$0xff]
    %v912 = vld [vmem:[#allocation7 + $0xd08] sm:$0xff]
    %v913 = vld [vmem:[#allocation7 + $0xd10] sm:$0xff]
    %v914 = vld [vmem:[#allocation7 + $0xd18] sm:$0xff]
    %v915 = vld [vmem:[#allocation7 + $0xd20] sm:$0xff]
    %v916 = vld [vmem:[#allocation7 + $0xd28] sm:$0xff]
    %v917 = vld [vmem:[#allocation7 + $0xd30] sm:$0xff]
    %v918 = vld [vmem:[#allocation7 + $0xd38] sm:$0xff]
    %v919 = vld [vmem:[#allocation7 + $0xd40] sm:$0xff]
    %v920 = vld [vmem:[#allocation7 + $0xd48] sm:$0xff]
    %v921 = vld [vmem:[#allocation7 + $0xd50] sm:$0xff]
    %v922 = vld [vmem:[#allocation7 + $0xd58] sm:$0xff]
    %v923 = vld [vmem:[#allocation7 + $0xd60] sm:$0xff]
    %v924 = vld [vmem:[#allocation7 + $0xd68] sm:$0xff]
    %v925 = vld [vmem:[#allocation7 + $0xd70] sm:$0xff]
    %v926 = vld [vmem:[#allocation7 + $0xd78] sm:$0xff]
    %v927 = vld [vmem:[#allocation7 + $0xd80] sm:$0xff]
    %v928 = vld [vmem:[#allocation7 + $0xd88] sm:$0xff]
    %v929 = vld [vmem:[#allocation7 + $0xd90] sm:$0xff]
    %v930 = vld [vmem:[#allocation7 + $0xd98] sm:$0xff]
    %v931 = vld [vmem:[#allocation7 + $0xda0] sm:$0xff]
    %v932 = vld [vmem:[#allocation7 + $0xda8] sm:$0xff]
    %v933 = vld [vmem:[#allocation7 + $0xdb0] sm:$0xff]
    %v934 = vld [vmem:[#allocation7 + $0xdb8] sm:$0xff]
    %v935 = vld [vmem:[#allocation7 + $0xdc0] sm:$0xff]
    %v936 = vld [vmem:[#allocation7 + $0xdc8] sm:$0xff]
    %v937 = vld [vmem:[#allocation7 + $0xdd0] sm:$0xff]
    %v938 = vld [vmem:[#allocation7 + $0xdd8] sm:$0xff]
    %v939 = vld [vmem:[#allocation7 + $0xde0] sm:$0xff]
    %v940 = vld [vmem:[#allocation7 + $0xde8] sm:$0xff]
    %v941 = vld [vmem:[#allocation7 + $0xdf0] sm:$0xff]
    %v942 = vld [vmem:[#allocation7 + $0xdf8] sm:$0xff]
    %v943 = vld [vmem:[#allocation7 + $0xe00] sm:$0xff]
    %v944 = vld [vmem:[#allocation7 + $0xe08] sm:$0xff]
    %v945 = vld [vmem:[#allocation7 + $0xe10] sm:$0xff]
    %v946 = vld [vmem:[#allocation7 + $0xe18] sm:$0xff]
    %v947 = vld [vmem:[#allocation7 + $0xe20] sm:$0xff]
    %v948 = vld [vmem:[#allocation7 + $0xe28] sm:$0xff]
    %v949 = vld [vmem:[#allocation7 + $0xe30] sm:$0xff]
    %v950 = vld [vmem:[#allocation7 + $0xe38] sm:$0xff]
    %v951 = vld [vmem:[#allocation7 + $0xe40] sm:$0xff]
    %v952 = vld [vmem:[#allocation7 + $0xe48] sm:$0xff]
    %v953 = vld [vmem:[#allocation7 + $0xe50] sm:$0xff]
    %v954 = vld [vmem:[#allocation7 + $0xe58] sm:$0xff]
    %v955 = vld [vmem:[#allocation7 + $0xe60] sm:$0xff]
    %v956 = vld [vmem:[#allocation7 + $0xe68] sm:$0xff]
    %v957 = vld [vmem:[#allocation7 + $0xe70] sm:$0xff]
    %v958 = vld [vmem:[#allocation7 + $0xe78] sm:$0xff]
    %v959 = vld [vmem:[#allocation7 + $0xe80] sm:$0xff]
    %v960 = vld [vmem:[#allocation7 + $0xe88] sm:$0xff]
    %v961 = vld [vmem:[#allocation7 + $0xe90] sm:$0xff]
    %v962 = vld [vmem:[#allocation7 + $0xe98] sm:$0xff]
    %v963 = vld [vmem:[#allocation7 + $0xea0] sm:$0xff]
    %v964 = vld [vmem:[#allocation7 + $0xea8] sm:$0xff]
    %v965 = vld [vmem:[#allocation7 + $0xeb0] sm:$0xff]
    %v966 = vld [vmem:[#allocation7 + $0xeb8] sm:$0xff]
    %v967 = vld [vmem:[#allocation7 + $0xec0] sm:$0xff]
    %v968 = vld [vmem:[#allocation7 + $0xec8] sm:$0xff]
    %v969 = vld [vmem:[#allocation7 + $0xed0] sm:$0xff]
    %v970 = vld [vmem:[#allocation7 + $0xed8] sm:$0xff]
    %v971 = vld [vmem:[#allocation7 + $0xee0] sm:$0xff]
    %v972 = vld [vmem:[#allocation7 + $0xee8] sm:$0xff]
    %v973 = vld [vmem:[#allocation7 + $0xef0] sm:$0xff]
    %v974 = vld [vmem:[#allocation7 + $0xef8] sm:$0xff]
    %v975 = vld [vmem:[#allocation7 + $0xf00] sm:$0xff]
    %v976 = vld [vmem:[#allocation7 + $0xf08] sm:$0xff]
    %v977 = vld [vmem:[#allocation7 + $0xf10] sm:$0xff]
    %v978 = vld [vmem:[#allocation7 + $0xf18] sm:$0xff]
    %v979 = vld [vmem:[#allocation7 + $0xf20] sm:$0xff]
    %v980 = vld [vmem:[#allocation7 + $0xf28] sm:$0xff]
    %v981 = vld [vmem:[#allocation7 + $0xf30] sm:$0xff]
    %v982 = vld [vmem:[#allocation7 + $0xf38] sm:$0xff]
    %v983 = vld [vmem:[#allocation7 + $0xf40] sm:$0xff]
    %v984 = vld [vmem:[#allocation7 + $0xf48] sm:$0xff]
    %v985 = vld [vmem:[#allocation7 + $0xf50] sm:$0xff]
    %v986 = vld [vmem:[#allocation7 + $0xf58] sm:$0xff]
    %v987 = vld [vmem:[#allocation7 + $0xf60] sm:$0xff]
    %v988 = vld [vmem:[#allocation7 + $0xf68] sm:$0xff]
    %v989 = vld [vmem:[#allocation7 + $0xf70] sm:$0xff]
    %v990 = vld [vmem:[#allocation7 + $0xf78] sm:$0xff]
    %v991 = vld [vmem:[#allocation7 + $0xf80] sm:$0xff]
    %v992 = vld [vmem:[#allocation7 + $0xf88] sm:$0xff]
    %v993 = vld [vmem:[#allocation7 + $0xf90] sm:$0xff]
    %v994 = vld [vmem:[#allocation7 + $0xf98] sm:$0xff]
    %v995 = vld [vmem:[#allocation7 + $0xfa0] sm:$0xff]
    %v996 = vld [vmem:[#allocation7 + $0xfa8] sm:$0xff]
    %v997 = vld [vmem:[#allocation7 + $0xfb0] sm:$0xff]
    %v998 = vld [vmem:[#allocation7 + $0xfb8] sm:$0xff]
    %v999 = vld [vmem:[#allocation7 + $0xfc0] sm:$0xff]
    %v1000 = vld [vmem:[#allocation7 + $0xfc8] sm:$0xff]
    %v1001 = vld [vmem:[#allocation7 + $0xfd0] sm:$0xff]
    %v1002 = vld [vmem:[#allocation7 + $0xfd8] sm:$0xff]
    %v1003 = vld [vmem:[#allocation7 + $0xfe0] sm:$0xff]
    %v1004 = vld [vmem:[#allocation7 + $0xfe8] sm:$0xff]
    %v1005 = vld [vmem:[#allocation7 + $0xff0] sm:$0xff]
    %v1006 = vld [vmem:[#allocation7 + $0xff8] sm:$0xff]
    %v1007 = vld [vmem:[#allocation7 + $0x1000] sm:$0xff]
    %v1008 = vld [vmem:[#allocation7 + $0x1008] sm:$0xff]
    %v1009 = vld [vmem:[#allocation7 + $0x1010] sm:$0xff]
    %v1010 = vld [vmem:[#allocation7 + $0x1018] sm:$0xff]
    %v1011 = vld [vmem:[#allocation7 + $0x1020] sm:$0xff]
    %v1012 = vld [vmem:[#allocation7 + $0x1028] sm:$0xff]
    %v1013 = vld [vmem:[#allocation7 + $0x1030] sm:$0xff]
    %v1014 = vld [vmem:[#allocation7 + $0x1038] sm:$0xff]
    %v1015 = vld [vmem:[#allocation7 + $0x1040] sm:$0xff]
    %v1016 = vld [vmem:[#allocation7 + $0x1048] sm:$0xff]
    %v1017 = vld [vmem:[#allocation7 + $0x1050] sm:$0xff]
    %v1018 = vld [vmem:[#allocation7 + $0x1058] sm:$0xff]
    %v1019 = vld [vmem:[#allocation7 + $0x1060] sm:$0xff]
    %v1020 = vld [vmem:[#allocation7 + $0x1068] sm:$0xff]
    %v1021 = vld [vmem:[#allocation7 + $0x1070] sm:$0xff]
    %v1022 = vld [vmem:[#allocation7 + $0x1078] sm:$0xff]
    %v1023 = vld [vmem:[#allocation7 + $0x1080] sm:$0xff]
    %v1024 = vld [vmem:[#allocation7 + $0x1088] sm:$0xff]
    %v1025 = vld [vmem:[#allocation7 + $0x1090] sm:$0xff]
    %v1026 = vld [vmem:[#allocation7 + $0x1098] sm:$0xff]
    %v1027 = vld [vmem:[#allocation7 + $0x10a0] sm:$0xff]
    %v1028 = vld [vmem:[#allocation7 + $0x10a8] sm:$0xff]
    %v1029 = vld [vmem:[#allocation7 + $0x10b0] sm:$0xff]
    %v1030 = vld [vmem:[#allocation7 + $0x10b8] sm:$0xff]
    %v1031 = vld [vmem:[#allocation7 + $0x10c0] sm:$0xff]
    %v1032 = vld [vmem:[#allocation7 + $0x10c8] sm:$0xff]
    %v1033 = vld [vmem:[#allocation7 + $0x10d0] sm:$0xff]
    %v1034 = vld [vmem:[#allocation7 + $0x10d8] sm:$0xff]
    %v1035 = vld [vmem:[#allocation7 + $0x10e0] sm:$0xff]
    %v1036 = vld [vmem:[#allocation7 + $0x10e8] sm:$0xff]
    %v1037 = vld [vmem:[#allocation7 + $0x10f0] sm:$0xff]
    %v1038 = vld [vmem:[#allocation7 + $0x10f8] sm:$0xff]
    %v1039 = vld [vmem:[#allocation7 + $0x1100] sm:$0xff]
    %v1040 = vld [vmem:[#allocation7 + $0x1108] sm:$0xff]
    %v1041 = vld [vmem:[#allocation7 + $0x1110] sm:$0xff]
    %v1042 = vld [vmem:[#allocation7 + $0x1118] sm:$0xff]
    %v1043 = vld [vmem:[#allocation7 + $0x1120] sm:$0xff]
    %v1044 = vld [vmem:[#allocation7 + $0x1128] sm:$0xff]
    %v1045 = vld [vmem:[#allocation7 + $0x1130] sm:$0xff]
    %v1046 = vld [vmem:[#allocation7 + $0x1138] sm:$0xff]
    %v1047 = vld [vmem:[#allocation7 + $0x1140] sm:$0xff]
    %v1048 = vld [vmem:[#allocation7 + $0x1148] sm:$0xff]
    %v1049 = vld [vmem:[#allocation7 + $0x1150] sm:$0xff]
    %v1050 = vld [vmem:[#allocation7 + $0x1158] sm:$0xff]
    %v1051 = vld [vmem:[#allocation7 + $0x1160] sm:$0xff]
    %v1052 = vld [vmem:[#allocation7 + $0x1168] sm:$0xff]
    %v1053 = vld [vmem:[#allocation7 + $0x1170] sm:$0xff]
    %v1054 = vld [vmem:[#allocation7 + $0x1178] sm:$0xff]
    %v1055 = vld [vmem:[#allocation7 + $0x1180] sm:$0xff]
    %v1056 = vld [vmem:[#allocation7 + $0x1188] sm:$0xff]
    %v1057 = vld [vmem:[#allocation7 + $0x1190] sm:$0xff]
    %v1058 = vld [vmem:[#allocation7 + $0x1198] sm:$0xff]
    %v1059 = vld [vmem:[#allocation7 + $0x11a0] sm:$0xff]
    %v1060 = vld [vmem:[#allocation7 + $0x11a8] sm:$0xff]
    %v1061 = vld [vmem:[#allocation7 + $0x11b0] sm:$0xff]
    %v1062 = vld [vmem:[#allocation7 + $0x11b8] sm:$0xff]
    %v1063 = vld [vmem:[#allocation7 + $0x11c0] sm:$0xff]
    %v1064 = vld [vmem:[#allocation7 + $0x11c8] sm:$0xff]
    %v1065 = vld [vmem:[#allocation7 + $0x11d0] sm:$0xff]
    %v1066 = vld [vmem:[#allocation7 + $0x11d8] sm:$0xff]
    %v1067 = vld [vmem:[#allocation7 + $0x11e0] sm:$0xff]
    %v1068 = vld [vmem:[#allocation7 + $0x11e8] sm:$0xff]
    %v1069 = vld [vmem:[#allocation7 + $0x11f0] sm:$0xff]
    %v1070 = vld [vmem:[#allocation7 + $0x11f8] sm:$0xff]
    %v1071 = vld [vmem:[#allocation8] sm:$0x3f]
    %v1073 = vperm.slane %v1071, 0
    %v1074 = vperm.slane %v1071, 1
    %v1075 = vperm.slane %v1071, 2
    %v1076 = vperm.slane %v1071, 3
    %v1077 = vperm.slane %v1071, 4
    %v1078 = vperm.slane %v1071, 5
    %v1661 = vunpack.c.l.b16 %v495
    %v1662 = vunpack.c.h.b16 %v495
    %v1663 = vunpack.c.l.b16 %v496
    %v1664 = vunpack.c.h.b16 %v496
    %v1665 = vunpack.c.l.b16 %v497
    %v1666 = vunpack.c.h.b16 %v497
    %v1667 = vunpack.c.l.b16 %v498
    %v1668 = vunpack.c.h.b16 %v498
    %v1669 = vunpack.c.l.b16 %v499
    %v1670 = vunpack.c.h.b16 %v499
    %v1671 = vunpack.c.l.b16 %v500
    %v1672 = vunpack.c.h.b16 %v500
    %v1673 = vunpack.c.l.b16 %v501
    %v1674 = vunpack.c.h.b16 %v501
    %v1675 = vunpack.c.l.b16 %v502
    %v1676 = vunpack.c.h.b16 %v502
    %v1677 = vunpack.c.l.b16 %v503
    %v1678 = vunpack.c.h.b16 %v503
    %v1679 = vunpack.c.l.b16 %v504
    %v1680 = vunpack.c.h.b16 %v504
    %v1681 = vunpack.c.l.b16 %v505
    %v1682 = vunpack.c.h.b16 %v505
    %v1683 = vunpack.c.l.b16 %v506
    %v1684 = vunpack.c.h.b16 %v506
    %v1685 = vunpack.c.l.b16 %v507
    %v1686 = vunpack.c.h.b16 %v507
    %v1687 = vunpack.c.l.b16 %v508
    %v1688 = vunpack.c.h.b16 %v508
    %v1689 = vunpack.c.l.b16 %v509
    %v1690 = vunpack.c.h.b16 %v509
    %v1691 = vunpack.c.l.b16 %v510
    %v1692 = vunpack.c.h.b16 %v510
    %v1693 = vunpack.c.l.b16 %v511
    %v1694 = vunpack.c.h.b16 %v511
    %v1695 = vunpack.c.l.b16 %v512
    %v1696 = vunpack.c.h.b16 %v512
    %v1697 = vunpack.c.l.b16 %v513
    %v1698 = vunpack.c.h.b16 %v513
    %v1699 = vunpack.c.l.b16 %v514
    %v1700 = vunpack.c.h.b16 %v514
    %v1701 = vunpack.c.l.b16 %v515
    %v1702 = vunpack.c.h.b16 %v515
    %v1703 = vunpack.c.l.b16 %v516
    %v1704 = vunpack.c.h.b16 %v516
    %v1705 = vunpack.c.l.b16 %v517
    %v1706 = vunpack.c.h.b16 %v517
    %v1707 = vunpack.c.l.b16 %v518
    %v1708 = vunpack.c.h.b16 %v518
    %v1709 = vunpack.c.l.b16 %v519
    %v1710 = vunpack.c.h.b16 %v519
    %v1711 = vunpack.c.l.b16 %v520
    %v1712 = vunpack.c.h.b16 %v520
    %v1713 = vunpack.c.l.b16 %v521
    %v1714 = vunpack.c.h.b16 %v521
    %v1715 = vunpack.c.l.b16 %v522
    %v1716 = vunpack.c.h.b16 %v522
    %v1717 = vunpack.c.l.b16 %v523
    %v1718 = vunpack.c.h.b16 %v523
    %v1719 = vunpack.c.l.b16 %v524
    %v1720 = vunpack.c.h.b16 %v524
    %v1721 = vunpack.c.l.b16 %v525
    %v1722 = vunpack.c.h.b16 %v525
    %v1723 = vunpack.c.l.b16 %v526
    %v1724 = vunpack.c.h.b16 %v526
    %v1725 = vunpack.c.l.b16 %v527
    %v1726 = vunpack.c.h.b16 %v527
    %v1727 = vunpack.c.l.b16 %v528
    %v1728 = vunpack.c.h.b16 %v528
    %v1729 = vunpack.c.l.b16 %v529
    %v1730 = vunpack.c.h.b16 %v529
    %v1731 = vunpack.c.l.b16 %v530
    %v1732 = vunpack.c.h.b16 %v530
    %v1733 = vunpack.c.l.b16 %v531
    %v1734 = vunpack.c.h.b16 %v531
    %v1735 = vunpack.c.l.b16 %v532
    %v1736 = vunpack.c.h.b16 %v532
    %v1737 = vunpack.c.l.b16 %v533
    %v1738 = vunpack.c.h.b16 %v533
    %v1739 = vunpack.c.l.b16 %v534
    %v1740 = vunpack.c.h.b16 %v534
    %v1741 = vunpack.c.l.b16 %v535
    %v1742 = vunpack.c.h.b16 %v535
    %v1743 = vunpack.c.l.b16 %v536
    %v1744 = vunpack.c.h.b16 %v536
    %v1745 = vunpack.c.l.b16 %v537
    %v1746 = vunpack.c.h.b16 %v537
    %v1747 = vunpack.c.l.b16 %v538
    %v1748 = vunpack.c.h.b16 %v538
    %v1749 = vunpack.c.l.b16 %v539
    %v1750 = vunpack.c.h.b16 %v539
    %v1751 = vunpack.c.l.b16 %v540
    %v1752 = vunpack.c.h.b16 %v540
    %v1753 = vunpack.c.l.b16 %v541
    %v1754 = vunpack.c.h.b16 %v541
    %v1755 = vunpack.c.l.b16 %v542
    %v1756 = vunpack.c.h.b16 %v542
    %v1757 = vunpack.c.l.b16 %v543
    %v1758 = vunpack.c.h.b16 %v543
    %v1759 = vunpack.c.l.b16 %v544
    %v1760 = vunpack.c.h.b16 %v544
    %v1761 = vunpack.c.l.b16 %v545
    %v1762 = vunpack.c.h.b16 %v545
    %v1763 = vunpack.c.l.b16 %v546
    %v1764 = vunpack.c.h.b16 %v546
    %v1765 = vunpack.c.l.b16 %v547
    %v1766 = vunpack.c.h.b16 %v547
    %v1767 = vunpack.c.l.b16 %v548
    %v1768 = vunpack.c.h.b16 %v548
    %v1769 = vunpack.c.l.b16 %v549
    %v1770 = vunpack.c.h.b16 %v549
    %v1771 = vunpack.c.l.b16 %v550
    %v1772 = vunpack.c.h.b16 %v550
    %v1773 = vunpack.c.l.b16 %v551
    %v1774 = vunpack.c.h.b16 %v551
    %v1775 = vunpack.c.l.b16 %v552
    %v1776 = vunpack.c.h.b16 %v552
    %v1777 = vunpack.c.l.b16 %v553
    %v1778 = vunpack.c.h.b16 %v553
    %v1779 = vunpack.c.l.b16 %v554
    %v1780 = vunpack.c.h.b16 %v554
    %v1781 = vunpack.c.l.b16 %v555
    %v1782 = vunpack.c.h.b16 %v555
    %v1783 = vunpack.c.l.b16 %v556
    %v1784 = vunpack.c.h.b16 %v556
    %v1785 = vunpack.c.l.b16 %v557
    %v1786 = vunpack.c.h.b16 %v557
    %v1787 = vunpack.c.l.b16 %v558
    %v1788 = vunpack.c.h.b16 %v558
    %v1789 = vunpack.c.l.b16 %v559
    %v1790 = vunpack.c.h.b16 %v559
    %v1791 = vunpack.c.l.b16 %v560
    %v1792 = vunpack.c.h.b16 %v560
    %v1793 = vunpack.c.l.b16 %v561
    %v1794 = vunpack.c.h.b16 %v561
    %v1795 = vunpack.c.l.b16 %v562
    %v1796 = vunpack.c.h.b16 %v562
    %v1797 = vunpack.c.l.b16 %v563
    %v1798 = vunpack.c.h.b16 %v563
    %v1799 = vunpack.c.l.b16 %v564
    %v1800 = vunpack.c.h.b16 %v564
    %v1801 = vunpack.c.l.b16 %v565
    %v1802 = vunpack.c.h.b16 %v565
    %v1803 = vunpack.c.l.b16 %v566
    %v1804 = vunpack.c.h.b16 %v566
    %v1805 = vunpack.c.l.b16 %v567
    %v1806 = vunpack.c.h.b16 %v567
    %v1807 = vunpack.c.l.b16 %v568
    %v1808 = vunpack.c.h.b16 %v568
    %v1809 = vunpack.c.l.b16 %v569
    %v1810 = vunpack.c.h.b16 %v569
    %v1811 = vunpack.c.l.b16 %v570
    %v1812 = vunpack.c.h.b16 %v570
    %v1813 = vunpack.c.l.b16 %v571
    %v1814 = vunpack.c.h.b16 %v571
    %v1815 = vunpack.c.l.b16 %v572
    %v1816 = vunpack.c.h.b16 %v572
    %v1817 = vunpack.c.l.b16 %v573
    %v1818 = vunpack.c.h.b16 %v573
    %v1819 = vunpack.c.l.b16 %v574
    %v1820 = vunpack.c.h.b16 %v574
    %v1821 = vunpack.c.l.b16 %v575
    %v1822 = vunpack.c.h.b16 %v575
    %v1823 = vunpack.c.l.b16 %v576
    %v1824 = vunpack.c.h.b16 %v576
    %v1825 = vunpack.c.l.b16 %v577
    %v1826 = vunpack.c.h.b16 %v577
    %v1827 = vunpack.c.l.b16 %v578
    %v1828 = vunpack.c.h.b16 %v578
    %v1829 = vunpack.c.l.b16 %v579
    %v1830 = vunpack.c.h.b16 %v579
    %v1831 = vunpack.c.l.b16 %v580
    %v1832 = vunpack.c.h.b16 %v580
    %v1833 = vunpack.c.l.b16 %v581
    %v1834 = vunpack.c.h.b16 %v581
    %v1835 = vunpack.c.l.b16 %v582
    %v1836 = vunpack.c.h.b16 %v582
    %v1837 = vunpack.c.l.b16 %v583
    %v1838 = vunpack.c.h.b16 %v583
    %v1839 = vunpack.c.l.b16 %v584
    %v1840 = vunpack.c.h.b16 %v584
    %v1841 = vunpack.c.l.b16 %v585
    %v1842 = vunpack.c.h.b16 %v585
    %v1843 = vunpack.c.l.b16 %v586
    %v1844 = vunpack.c.h.b16 %v586
    %v1845 = vunpack.c.l.b16 %v587
    %v1846 = vunpack.c.h.b16 %v587
    %v1847 = vunpack.c.l.b16 %v588
    %v1848 = vunpack.c.h.b16 %v588
    %v1849 = vunpack.c.l.b16 %v589
    %v1850 = vunpack.c.h.b16 %v589
    %v1851 = vunpack.c.l.b16 %v590
    %v1852 = vunpack.c.h.b16 %v590
    %v1853 = vunpack.c.l.b16 %v591
    %v1854 = vunpack.c.h.b16 %v591
    %v1855 = vunpack.c.l.b16 %v592
    %v1856 = vunpack.c.h.b16 %v592
    %v1857 = vunpack.c.l.b16 %v593
    %v1858 = vunpack.c.h.b16 %v593
    %v1859 = vunpack.c.l.b16 %v594
    %v1860 = vunpack.c.h.b16 %v594
    %v1861 = vunpack.c.l.b16 %v595
    %v1862 = vunpack.c.h.b16 %v595
    %v1863 = vunpack.c.l.b16 %v596
    %v1864 = vunpack.c.h.b16 %v596
    %v1865 = vunpack.c.l.b16 %v597
    %v1866 = vunpack.c.h.b16 %v597
    %v1867 = vunpack.c.l.b16 %v598
    %v1868 = vunpack.c.h.b16 %v598
    %v1869 = vunpack.c.l.b16 %v599
    %v1870 = vunpack.c.h.b16 %v599
    %v1871 = vunpack.c.l.b16 %v600
    %v1872 = vunpack.c.h.b16 %v600
    %v1873 = vunpack.c.l.b16 %v601
    %v1874 = vunpack.c.h.b16 %v601
    %v1875 = vunpack.c.l.b16 %v602
    %v1876 = vunpack.c.h.b16 %v602
    %v1877 = vunpack.c.l.b16 %v603
    %v1878 = vunpack.c.h.b16 %v603
    %v1879 = vunpack.c.l.b16 %v604
    %v1880 = vunpack.c.h.b16 %v604
    %v1881 = vunpack.c.l.b16 %v605
    %v1882 = vunpack.c.h.b16 %v605
    %v1883 = vunpack.c.l.b16 %v606
    %v1884 = vunpack.c.h.b16 %v606
    %v1885 = vunpack.c.l.b16 %v607
    %v1886 = vunpack.c.h.b16 %v607
    %v1887 = vunpack.c.l.b16 %v608
    %v1888 = vunpack.c.h.b16 %v608
    %v1889 = vunpack.c.l.b16 %v609
    %v1890 = vunpack.c.h.b16 %v609
    %v1891 = vunpack.c.l.b16 %v610
    %v1892 = vunpack.c.h.b16 %v610
    %v1893 = vunpack.c.l.b16 %v611
    %v1894 = vunpack.c.h.b16 %v611
    %v1895 = vunpack.c.l.b16 %v612
    %v1896 = vunpack.c.h.b16 %v612
    %v1897 = vunpack.c.l.b16 %v613
    %v1898 = vunpack.c.h.b16 %v613
    %v1899 = vunpack.c.l.b16 %v614
    %v1900 = vunpack.c.h.b16 %v614
    %v1901 = vunpack.c.l.b16 %v615
    %v1902 = vunpack.c.h.b16 %v615
    %v1903 = vunpack.c.l.b16 %v616
    %v1904 = vunpack.c.h.b16 %v616
    %v1905 = vunpack.c.l.b16 %v617
    %v1906 = vunpack.c.h.b16 %v617
    %v1907 = vunpack.c.l.b16 %v618
    %v1908 = vunpack.c.h.b16 %v618
    %v1909 = vunpack.c.l.b16 %v619
    %v1910 = vunpack.c.h.b16 %v619
    %v1911 = vunpack.c.l.b16 %v620
    %v1912 = vunpack.c.h.b16 %v620
    %v1913 = vunpack.c.l.b16 %v621
    %v1914 = vunpack.c.h.b16 %v621
    %v1915 = vunpack.c.l.b16 %v622
    %v1916 = vunpack.c.h.b16 %v622
    %v1917 = vunpack.c.l.b16 %v623
    %v1918 = vunpack.c.h.b16 %v623
    %v1919 = vunpack.c.l.b16 %v624
    %v1920 = vunpack.c.h.b16 %v624
    %v1921 = vunpack.c.l.b16 %v625
    %v1922 = vunpack.c.h.b16 %v625
    %v1923 = vunpack.c.l.b16 %v626
    %v1924 = vunpack.c.h.b16 %v626
    %v1925 = vunpack.c.l.b16 %v627
    %v1926 = vunpack.c.h.b16 %v627
    %v1927 = vunpack.c.l.b16 %v628
    %v1928 = vunpack.c.h.b16 %v628
    %v1929 = vunpack.c.l.b16 %v629
    %v1930 = vunpack.c.h.b16 %v629
    %v1931 = vunpack.c.l.b16 %v630
    %v1932 = vunpack.c.h.b16 %v630
    %v1933 = vunpack.c.l.b16 %v631
    %v1934 = vunpack.c.h.b16 %v631
    %v1935 = vunpack.c.l.b16 %v632
    %v1936 = vunpack.c.h.b16 %v632
    %v1937 = vunpack.c.l.b16 %v633
    %v1938 = vunpack.c.h.b16 %v633
    %v1939 = vunpack.c.l.b16 %v634
    %v1940 = vunpack.c.h.b16 %v634
    %v1941 = vunpack.c.l.b16 %v635
    %v1942 = vunpack.c.h.b16 %v635
    %v1943 = vunpack.c.l.b16 %v636
    %v1944 = vunpack.c.h.b16 %v636
    %v1945 = vunpack.c.l.b16 %v637
    %v1946 = vunpack.c.h.b16 %v637
    %v1947 = vunpack.c.l.b16 %v638
    %v1948 = vunpack.c.h.b16 %v638
    %v1949 = vunpack.c.l.b16 %v639
    %v1950 = vunpack.c.h.b16 %v639
    %v1951 = vunpack.c.l.b16 %v640
    %v1952 = vunpack.c.h.b16 %v640
    %v1953 = vunpack.c.l.b16 %v641
    %v1954 = vunpack.c.h.b16 %v641
    %v1955 = vunpack.c.l.b16 %v642
    %v1956 = vunpack.c.h.b16 %v642
    %v1957 = vunpack.c.l.b16 %v643
    %v1958 = vunpack.c.h.b16 %v643
    %v1959 = vunpack.c.l.b16 %v644
    %v1960 = vunpack.c.h.b16 %v644
    %v1961 = vunpack.c.l.b16 %v645
    %v1962 = vunpack.c.h.b16 %v645
    %v1963 = vunpack.c.l.b16 %v646
    %v1964 = vunpack.c.h.b16 %v646
    %v1965 = vunpack.c.l.b16 %v647
    %v1966 = vunpack.c.h.b16 %v647
    %v1967 = vunpack.c.l.b16 %v648
    %v1968 = vunpack.c.h.b16 %v648
    %v1969 = vunpack.c.l.b16 %v649
    %v1970 = vunpack.c.h.b16 %v649
    %v1971 = vunpack.c.l.b16 %v650
    %v1972 = vunpack.c.h.b16 %v650
    %v1973 = vunpack.c.l.b16 %v651
    %v1974 = vunpack.c.h.b16 %v651
    %v1975 = vunpack.c.l.b16 %v652
    %v1976 = vunpack.c.h.b16 %v652
    %v1977 = vunpack.c.l.b16 %v653
    %v1978 = vunpack.c.h.b16 %v653
    %v1979 = vunpack.c.l.b16 %v654
    %v1980 = vunpack.c.h.b16 %v654
    %v1981 = vunpack.c.l.b16 %v655
    %v1982 = vunpack.c.h.b16 %v655
    %v1983 = vunpack.c.l.b16 %v656
    %v1984 = vunpack.c.h.b16 %v656
    %v1985 = vunpack.c.l.b16 %v657
    %v1986 = vunpack.c.h.b16 %v657
    %v1987 = vunpack.c.l.b16 %v658
    %v1988 = vunpack.c.h.b16 %v658
    %v1989 = vunpack.c.l.b16 %v659
    %v1990 = vunpack.c.h.b16 %v659
    %v1991 = vunpack.c.l.b16 %v660
    %v1992 = vunpack.c.h.b16 %v660
    %v1993 = vunpack.c.l.b16 %v661
    %v1994 = vunpack.c.h.b16 %v661
    %v1995 = vunpack.c.l.b16 %v662
    %v1996 = vunpack.c.h.b16 %v662
    %v1997 = vunpack.c.l.b16 %v663
    %v1998 = vunpack.c.h.b16 %v663
    %v1999 = vunpack.c.l.b16 %v664
    %v2000 = vunpack.c.h.b16 %v664
    %v2001 = vunpack.c.l.b16 %v665
    %v2002 = vunpack.c.h.b16 %v665
    %v2003 = vunpack.c.l.b16 %v666
    %v2004 = vunpack.c.h.b16 %v666
    %v2005 = vunpack.c.l.b16 %v667
    %v2006 = vunpack.c.h.b16 %v667
    %v2007 = vunpack.c.l.b16 %v668
    %v2008 = vunpack.c.h.b16 %v668
    %v2009 = vunpack.c.l.b16 %v669
    %v2010 = vunpack.c.h.b16 %v669
    %v2011 = vunpack.c.l.b16 %v670
    %v2012 = vunpack.c.h.b16 %v670
    %v2013 = vunpack.c.l.b16 %v671
    %v2014 = vunpack.c.h.b16 %v671
    %v2015 = vunpack.c.l.b16 %v672
    %v2016 = vunpack.c.h.b16 %v672
    %v2017 = vunpack.c.l.b16 %v673
    %v2018 = vunpack.c.h.b16 %v673
    %v2019 = vunpack.c.l.b16 %v674
    %v2020 = vunpack.c.h.b16 %v674
    %v2021 = vunpack.c.l.b16 %v675
    %v2022 = vunpack.c.h.b16 %v675
    %v2023 = vunpack.c.l.b16 %v676
    %v2024 = vunpack.c.h.b16 %v676
    %v2025 = vunpack.c.l.b16 %v677
    %v2026 = vunpack.c.h.b16 %v677
    %v2027 = vunpack.c.l.b16 %v678
    %v2028 = vunpack.c.h.b16 %v678
    %v2029 = vunpack.c.l.b16 %v679
    %v2030 = vunpack.c.h.b16 %v679
    %v2031 = vunpack.c.l.b16 %v680
    %v2032 = vunpack.c.h.b16 %v680
    %v2033 = vunpack.c.l.b16 %v681
    %v2034 = vunpack.c.h.b16 %v681
    %v2035 = vunpack.c.l.b16 %v682
    %v2036 = vunpack.c.h.b16 %v682
    %v2037 = vunpack.c.l.b16 %v683
    %v2038 = vunpack.c.h.b16 %v683
    %v2039 = vunpack.c.l.b16 %v684
    %v2040 = vunpack.c.h.b16 %v684
    %v2041 = vunpack.c.l.b16 %v685
    %v2042 = vunpack.c.h.b16 %v685
    %v2043 = vunpack.c.l.b16 %v686
    %v2044 = vunpack.c.h.b16 %v686
    %v2045 = vunpack.c.l.b16 %v687
    %v2046 = vunpack.c.h.b16 %v687
    %v2047 = vunpack.c.l.b16 %v688
    %v2048 = vunpack.c.h.b16 %v688
    %v2049 = vunpack.c.l.b16 %v689
    %v2050 = vunpack.c.h.b16 %v689
    %v2051 = vunpack.c.l.b16 %v690
    %v2052 = vunpack.c.h.b16 %v690
    %v2053 = vunpack.c.l.b16 %v691
    %v2054 = vunpack.c.h.b16 %v691
    %v2055 = vunpack.c.l.b16 %v692
    %v2056 = vunpack.c.h.b16 %v692
    %v2057 = vunpack.c.l.b16 %v693
    %v2058 = vunpack.c.h.b16 %v693
    %v2059 = vunpack.c.l.b16 %v694
    %v2060 = vunpack.c.h.b16 %v694
    %v2061 = vunpack.c.l.b16 %v695
    %v2062 = vunpack.c.h.b16 %v695
    %v2063 = vunpack.c.l.b16 %v696
    %v2064 = vunpack.c.h.b16 %v696
    %v2065 = vunpack.c.l.b16 %v697
    %v2066 = vunpack.c.h.b16 %v697
    %v2067 = vunpack.c.l.b16 %v698
    %v2068 = vunpack.c.h.b16 %v698
    %v2069 = vunpack.c.l.b16 %v699
    %v2070 = vunpack.c.h.b16 %v699
    %v2071 = vunpack.c.l.b16 %v700
    %v2072 = vunpack.c.h.b16 %v700
    %v2073 = vunpack.c.l.b16 %v701
    %v2074 = vunpack.c.h.b16 %v701
    %v2075 = vunpack.c.l.b16 %v702
    %v2076 = vunpack.c.h.b16 %v702
    %v2077 = vunpack.c.l.b16 %v703
    %v2078 = vunpack.c.h.b16 %v703
    %v2079 = vunpack.c.l.b16 %v704
    %v2080 = vunpack.c.h.b16 %v704
    %v2081 = vunpack.c.l.b16 %v705
    %v2082 = vunpack.c.h.b16 %v705
    %v2083 = vunpack.c.l.b16 %v706
    %v2084 = vunpack.c.h.b16 %v706
    %v2085 = vunpack.c.l.b16 %v707
    %v2086 = vunpack.c.h.b16 %v707
    %v2087 = vunpack.c.l.b16 %v708
    %v2088 = vunpack.c.h.b16 %v708
    %v2089 = vunpack.c.l.b16 %v709
    %v2090 = vunpack.c.h.b16 %v709
    %v2091 = vunpack.c.l.b16 %v710
    %v2092 = vunpack.c.h.b16 %v710
    %v2093 = vunpack.c.l.b16 %v711
    %v2094 = vunpack.c.h.b16 %v711
    %v2095 = vunpack.c.l.b16 %v712
    %v2096 = vunpack.c.h.b16 %v712
    %v2097 = vunpack.c.l.b16 %v713
    %v2098 = vunpack.c.h.b16 %v713
    %v2099 = vunpack.c.l.b16 %v714
    %v2100 = vunpack.c.h.b16 %v714
    %v2101 = vunpack.c.l.b16 %v715
    %v2102 = vunpack.c.h.b16 %v715
    %v2103 = vunpack.c.l.b16 %v716
    %v2104 = vunpack.c.h.b16 %v716
    %v2105 = vunpack.c.l.b16 %v717
    %v2106 = vunpack.c.h.b16 %v717
    %v2107 = vunpack.c.l.b16 %v718
    %v2108 = vunpack.c.h.b16 %v718
    %v2109 = vunpack.c.l.b16 %v719
    %v2110 = vunpack.c.h.b16 %v719
    %v2111 = vunpack.c.l.b16 %v720
    %v2112 = vunpack.c.h.b16 %v720
    %v2113 = vunpack.c.l.b16 %v721
    %v2114 = vunpack.c.h.b16 %v721
    %v2115 = vunpack.c.l.b16 %v722
    %v2116 = vunpack.c.h.b16 %v722
    %v2117 = vunpack.c.l.b16 %v723
    %v2118 = vunpack.c.h.b16 %v723
    %v2119 = vunpack.c.l.b16 %v724
    %v2120 = vunpack.c.h.b16 %v724
    %v2121 = vunpack.c.l.b16 %v725
    %v2122 = vunpack.c.h.b16 %v725
    %v2123 = vunpack.c.l.b16 %v726
    %v2124 = vunpack.c.h.b16 %v726
    %v2125 = vunpack.c.l.b16 %v727
    %v2126 = vunpack.c.h.b16 %v727
    %v2127 = vunpack.c.l.b16 %v728
    %v2128 = vunpack.c.h.b16 %v728
    %v2129 = vunpack.c.l.b16 %v729
    %v2130 = vunpack.c.h.b16 %v729
    %v2131 = vunpack.c.l.b16 %v730
    %v2132 = vunpack.c.h.b16 %v730
    %v2133 = vunpack.c.l.b16 %v731
    %v2134 = vunpack.c.h.b16 %v731
    %v2135 = vunpack.c.l.b16 %v732
    %v2136 = vunpack.c.h.b16 %v732
    %v2137 = vunpack.c.l.b16 %v733
    %v2138 = vunpack.c.h.b16 %v733
    %v2139 = vunpack.c.l.b16 %v734
    %v2140 = vunpack.c.h.b16 %v734
    %v2141 = vunpack.c.l.b16 %v735
    %v2142 = vunpack.c.h.b16 %v735
    %v2143 = vunpack.c.l.b16 %v736
    %v2144 = vunpack.c.h.b16 %v736
    %v2145 = vunpack.c.l.b16 %v737
    %v2146 = vunpack.c.h.b16 %v737
    %v2147 = vunpack.c.l.b16 %v738
    %v2148 = vunpack.c.h.b16 %v738
    %v2149 = vunpack.c.l.b16 %v739
    %v2150 = vunpack.c.h.b16 %v739
    %v2151 = vunpack.c.l.b16 %v740
    %v2152 = vunpack.c.h.b16 %v740
    %v2153 = vunpack.c.l.b16 %v741
    %v2154 = vunpack.c.h.b16 %v741
    %v2155 = vunpack.c.l.b16 %v742
    %v2156 = vunpack.c.h.b16 %v742
    %v2157 = vunpack.c.l.b16 %v743
    %v2158 = vunpack.c.h.b16 %v743
    %v2159 = vunpack.c.l.b16 %v744
    %v2160 = vunpack.c.h.b16 %v744
    %v2161 = vunpack.c.l.b16 %v745
    %v2162 = vunpack.c.h.b16 %v745
    %v2163 = vunpack.c.l.b16 %v746
    %v2164 = vunpack.c.h.b16 %v746
    %v2165 = vunpack.c.l.b16 %v747
    %v2166 = vunpack.c.h.b16 %v747
    %v2167 = vunpack.c.l.b16 %v748
    %v2168 = vunpack.c.h.b16 %v748
    %v2169 = vunpack.c.l.b16 %v749
    %v2170 = vunpack.c.h.b16 %v749
    %v2171 = vunpack.c.l.b16 %v750
    %v2172 = vunpack.c.h.b16 %v750
    %v2173 = vunpack.c.l.b16 %v751
    %v2174 = vunpack.c.h.b16 %v751
    %v2175 = vunpack.c.l.b16 %v752
    %v2176 = vunpack.c.h.b16 %v752
    %v2177 = vunpack.c.l.b16 %v753
    %v2178 = vunpack.c.h.b16 %v753
    %v2179 = vunpack.c.l.b16 %v754
    %v2180 = vunpack.c.h.b16 %v754
    %v2181 = vunpack.c.l.b16 %v755
    %v2182 = vunpack.c.h.b16 %v755
    %v2183 = vunpack.c.l.b16 %v756
    %v2184 = vunpack.c.h.b16 %v756
    %v2185 = vunpack.c.l.b16 %v757
    %v2186 = vunpack.c.h.b16 %v757
    %v2187 = vunpack.c.l.b16 %v758
    %v2188 = vunpack.c.h.b16 %v758
    %v2189 = vunpack.c.l.b16 %v759
    %v2190 = vunpack.c.h.b16 %v759
    %v2191 = vunpack.c.l.b16 %v760
    %v2192 = vunpack.c.h.b16 %v760
    %v2193 = vunpack.c.l.b16 %v761
    %v2194 = vunpack.c.h.b16 %v761
    %v2195 = vunpack.c.l.b16 %v762
    %v2196 = vunpack.c.h.b16 %v762
    %v2197 = vunpack.c.l.b16 %v763
    %v2198 = vunpack.c.h.b16 %v763
    %v2199 = vunpack.c.l.b16 %v764
    %v2200 = vunpack.c.h.b16 %v764
    %v2201 = vunpack.c.l.b16 %v765
    %v2202 = vunpack.c.h.b16 %v765
    %v2203 = vunpack.c.l.b16 %v766
    %v2204 = vunpack.c.h.b16 %v766
    %v2205 = vunpack.c.l.b16 %v767
    %v2206 = vunpack.c.h.b16 %v767
    %v2207 = vunpack.c.l.b16 %v768
    %v2208 = vunpack.c.h.b16 %v768
    %v2209 = vunpack.c.l.b16 %v769
    %v2210 = vunpack.c.h.b16 %v769
    %v2211 = vunpack.c.l.b16 %v770
    %v2212 = vunpack.c.h.b16 %v770
    %v2213 = vunpack.c.l.b16 %v771
    %v2214 = vunpack.c.h.b16 %v771
    %v2215 = vunpack.c.l.b16 %v772
    %v2216 = vunpack.c.h.b16 %v772
    %v2217 = vunpack.c.l.b16 %v773
    %v2218 = vunpack.c.h.b16 %v773
    %v2219 = vunpack.c.l.b16 %v774
    %v2220 = vunpack.c.h.b16 %v774
    %v2221 = vunpack.c.l.b16 %v775
    %v2222 = vunpack.c.h.b16 %v775
    %v2223 = vunpack.c.l.b16 %v776
    %v2224 = vunpack.c.h.b16 %v776
    %v2225 = vunpack.c.l.b16 %v777
    %v2226 = vunpack.c.h.b16 %v777
    %v2227 = vunpack.c.l.b16 %v778
    %v2228 = vunpack.c.h.b16 %v778
    %v2229 = vunpack.c.l.b16 %v779
    %v2230 = vunpack.c.h.b16 %v779
    %v2231 = vunpack.c.l.b16 %v780
    %v2232 = vunpack.c.h.b16 %v780
    %v2233 = vunpack.c.l.b16 %v781
    %v2234 = vunpack.c.h.b16 %v781
    %v2235 = vunpack.c.l.b16 %v782
    %v2236 = vunpack.c.h.b16 %v782
    %v2237 = vunpack.c.l.b16 %v783
    %v2238 = vunpack.c.h.b16 %v783
    %v2239 = vunpack.c.l.b16 %v784
    %v2240 = vunpack.c.h.b16 %v784
    %v2241 = vunpack.c.l.b16 %v785
    %v2242 = vunpack.c.h.b16 %v785
    %v2243 = vunpack.c.l.b16 %v786
    %v2244 = vunpack.c.h.b16 %v786
    %v2245 = vunpack.c.l.b16 %v787
    %v2246 = vunpack.c.h.b16 %v787
    %v2247 = vunpack.c.l.b16 %v788
    %v2248 = vunpack.c.h.b16 %v788
    %v2249 = vunpack.c.l.b16 %v789
    %v2250 = vunpack.c.h.b16 %v789
    %v2251 = vunpack.c.l.b16 %v790
    %v2252 = vunpack.c.h.b16 %v790
    %v2253 = vunpack.c.l.b16 %v791
    %v2254 = vunpack.c.h.b16 %v791
    %v2255 = vunpack.c.l.b16 %v792
    %v2256 = vunpack.c.h.b16 %v792
    %v2257 = vunpack.c.l.b16 %v793
    %v2258 = vunpack.c.h.b16 %v793
    %v2259 = vunpack.c.l.b16 %v794
    %v2260 = vunpack.c.h.b16 %v794
    %v2261 = vunpack.c.l.b16 %v795
    %v2262 = vunpack.c.h.b16 %v795
    %v2263 = vunpack.c.l.b16 %v796
    %v2264 = vunpack.c.h.b16 %v796
    %v2265 = vunpack.c.l.b16 %v797
    %v2266 = vunpack.c.h.b16 %v797
    %v2267 = vunpack.c.l.b16 %v798
    %v2268 = vunpack.c.h.b16 %v798
    %v2269 = vunpack.c.l.b16 %v799
    %v2270 = vunpack.c.h.b16 %v799
    %v2271 = vunpack.c.l.b16 %v800
    %v2272 = vunpack.c.h.b16 %v800
    %v2273 = vunpack.c.l.b16 %v801
    %v2274 = vunpack.c.h.b16 %v801
    %v2275 = vunpack.c.l.b16 %v802
    %v2276 = vunpack.c.h.b16 %v802
    %v2277 = vunpack.c.l.b16 %v803
    %v2278 = vunpack.c.h.b16 %v803
    %v2279 = vunpack.c.l.b16 %v804
    %v2280 = vunpack.c.h.b16 %v804
    %v2281 = vunpack.c.l.b16 %v805
    %v2282 = vunpack.c.h.b16 %v805
    %v2283 = vunpack.c.l.b16 %v806
    %v2284 = vunpack.c.h.b16 %v806
    %v2285 = vunpack.c.l.b16 %v807
    %v2286 = vunpack.c.h.b16 %v807
    %v2287 = vunpack.c.l.b16 %v808
    %v2288 = vunpack.c.h.b16 %v808
    %v2289 = vunpack.c.l.b16 %v809
    %v2290 = vunpack.c.h.b16 %v809
    %v2291 = vunpack.c.l.b16 %v810
    %v2292 = vunpack.c.h.b16 %v810
    %v2293 = vunpack.c.l.b16 %v811
    %v2294 = vunpack.c.h.b16 %v811
    %v2295 = vunpack.c.l.b16 %v812
    %v2296 = vunpack.c.h.b16 %v812
    %v2297 = vunpack.c.l.b16 %v813
    %v2298 = vunpack.c.h.b16 %v813
    %v2299 = vunpack.c.l.b16 %v814
    %v2300 = vunpack.c.h.b16 %v814
    %v2301 = vunpack.c.l.b16 %v815
    %v2302 = vunpack.c.h.b16 %v815
    %v2303 = vunpack.c.l.b16 %v816
    %v2304 = vunpack.c.h.b16 %v816
    %v2305 = vunpack.c.l.b16 %v817
    %v2306 = vunpack.c.h.b16 %v817
    %v2307 = vunpack.c.l.b16 %v818
    %v2308 = vunpack.c.h.b16 %v818
    %v2309 = vunpack.c.l.b16 %v819
    %v2310 = vunpack.c.h.b16 %v819
    %v2311 = vunpack.c.l.b16 %v820
    %v2312 = vunpack.c.h.b16 %v820
    %v2313 = vunpack.c.l.b16 %v821
    %v2314 = vunpack.c.h.b16 %v821
    %v2315 = vunpack.c.l.b16 %v822
    %v2316 = vunpack.c.h.b16 %v822
    %v2317 = vunpack.c.l.b16 %v823
    %v2318 = vunpack.c.h.b16 %v823
    %v2319 = vunpack.c.l.b16 %v824
    %v2320 = vunpack.c.h.b16 %v824
    %v2321 = vunpack.c.l.b16 %v825
    %v2322 = vunpack.c.h.b16 %v825
    %v2323 = vunpack.c.l.b16 %v826
    %v2324 = vunpack.c.h.b16 %v826
    %v2325 = vunpack.c.l.b16 %v827
    %v2326 = vunpack.c.h.b16 %v827
    %v2327 = vunpack.c.l.b16 %v828
    %v2328 = vunpack.c.h.b16 %v828
    %v2329 = vunpack.c.l.b16 %v829
    %v2330 = vunpack.c.h.b16 %v829
    %v2331 = vunpack.c.l.b16 %v830
    %v2332 = vunpack.c.h.b16 %v830
    %v2333 = vunpack.c.l.b16 %v831
    %v2334 = vunpack.c.h.b16 %v831
    %v2335 = vunpack.c.l.b16 %v832
    %v2336 = vunpack.c.h.b16 %v832
    %v2337 = vunpack.c.l.b16 %v833
    %v2338 = vunpack.c.h.b16 %v833
    %v2339 = vunpack.c.l.b16 %v834
    %v2340 = vunpack.c.h.b16 %v834
    %v2341 = vunpack.c.l.b16 %v835
    %v2342 = vunpack.c.h.b16 %v835
    %v2343 = vunpack.c.l.b16 %v836
    %v2344 = vunpack.c.h.b16 %v836
    %v2345 = vunpack.c.l.b16 %v837
    %v2346 = vunpack.c.h.b16 %v837
    %v2347 = vunpack.c.l.b16 %v838
    %v2348 = vunpack.c.h.b16 %v838
    %v2349 = vunpack.c.l.b16 %v839
    %v2350 = vunpack.c.h.b16 %v839
    %v2351 = vunpack.c.l.b16 %v840
    %v2352 = vunpack.c.h.b16 %v840
    %v2353 = vunpack.c.l.b16 %v841
    %v2354 = vunpack.c.h.b16 %v841
    %v2355 = vunpack.c.l.b16 %v842
    %v2356 = vunpack.c.h.b16 %v842
    %v2357 = vunpack.c.l.b16 %v843
    %v2358 = vunpack.c.h.b16 %v843
    %v2359 = vunpack.c.l.b16 %v844
    %v2360 = vunpack.c.h.b16 %v844
    %v2361 = vunpack.c.l.b16 %v845
    %v2362 = vunpack.c.h.b16 %v845
    %v2363 = vunpack.c.l.b16 %v846
    %v2364 = vunpack.c.h.b16 %v846
    %v2365 = vunpack.c.l.b16 %v847
    %v2366 = vunpack.c.h.b16 %v847
    %v2367 = vunpack.c.l.b16 %v848
    %v2368 = vunpack.c.h.b16 %v848
    %v2369 = vunpack.c.l.b16 %v849
    %v2370 = vunpack.c.h.b16 %v849
    %v2371 = vunpack.c.l.b16 %v850
    %v2372 = vunpack.c.h.b16 %v850
    %v2373 = vunpack.c.l.b16 %v851
    %v2374 = vunpack.c.h.b16 %v851
    %v2375 = vunpack.c.l.b16 %v852
    %v2376 = vunpack.c.h.b16 %v852
    %v2377 = vunpack.c.l.b16 %v853
    %v2378 = vunpack.c.h.b16 %v853
    %v2379 = vunpack.c.l.b16 %v854
    %v2380 = vunpack.c.h.b16 %v854
    %v2381 = vunpack.c.l.b16 %v855
    %v2382 = vunpack.c.h.b16 %v855
    %v2383 = vunpack.c.l.b16 %v856
    %v2384 = vunpack.c.h.b16 %v856
    %v2385 = vunpack.c.l.b16 %v857
    %v2386 = vunpack.c.h.b16 %v857
    %v2387 = vunpack.c.l.b16 %v858
    %v2388 = vunpack.c.h.b16 %v858
    %v2389 = vunpack.c.l.b16 %v859
    %v2390 = vunpack.c.h.b16 %v859
    %v2391 = vunpack.c.l.b16 %v860
    %v2392 = vunpack.c.h.b16 %v860
    %v2393 = vunpack.c.l.b16 %v861
    %v2394 = vunpack.c.h.b16 %v861
    %v2395 = vunpack.c.l.b16 %v862
    %v2396 = vunpack.c.h.b16 %v862
    %v2397 = vunpack.c.l.b16 %v863
    %v2398 = vunpack.c.h.b16 %v863
    %v2399 = vunpack.c.l.b16 %v864
    %v2400 = vunpack.c.h.b16 %v864
    %v2401 = vunpack.c.l.b16 %v865
    %v2402 = vunpack.c.h.b16 %v865
    %v2403 = vunpack.c.l.b16 %v866
    %v2404 = vunpack.c.h.b16 %v866
    %v2405 = vunpack.c.l.b16 %v867
    %v2406 = vunpack.c.h.b16 %v867
    %v2407 = vunpack.c.l.b16 %v868
    %v2408 = vunpack.c.h.b16 %v868
    %v2409 = vunpack.c.l.b16 %v869
    %v2410 = vunpack.c.h.b16 %v869
    %v2411 = vunpack.c.l.b16 %v870
    %v2412 = vunpack.c.h.b16 %v870
    %v2413 = vunpack.c.l.b16 %v871
    %v2414 = vunpack.c.h.b16 %v871
    %v2415 = vunpack.c.l.b16 %v872
    %v2416 = vunpack.c.h.b16 %v872
    %v2417 = vunpack.c.l.b16 %v873
    %v2418 = vunpack.c.h.b16 %v873
    %v2419 = vunpack.c.l.b16 %v874
    %v2420 = vunpack.c.h.b16 %v874
    %v2421 = vunpack.c.l.b16 %v875
    %v2422 = vunpack.c.h.b16 %v875
    %v2423 = vunpack.c.l.b16 %v876
    %v2424 = vunpack.c.h.b16 %v876
    %v2425 = vunpack.c.l.b16 %v877
    %v2426 = vunpack.c.h.b16 %v877
    %v2427 = vunpack.c.l.b16 %v878
    %v2428 = vunpack.c.h.b16 %v878
    %v2429 = vunpack.c.l.b16 %v879
    %v2430 = vunpack.c.h.b16 %v879
    %v2431 = vunpack.c.l.b16 %v880
    %v2432 = vunpack.c.h.b16 %v880
    %v2433 = vunpack.c.l.b16 %v881
    %v2434 = vunpack.c.h.b16 %v881
    %v2435 = vunpack.c.l.b16 %v882
    %v2436 = vunpack.c.h.b16 %v882
    %v2437 = vunpack.c.l.b16 %v883
    %v2438 = vunpack.c.h.b16 %v883
    %v2439 = vunpack.c.l.b16 %v884
    %v2440 = vunpack.c.h.b16 %v884
    %v2441 = vunpack.c.l.b16 %v885
    %v2442 = vunpack.c.h.b16 %v885
    %v2443 = vunpack.c.l.b16 %v886
    %v2444 = vunpack.c.h.b16 %v886
    %v2445 = vunpack.c.l.b16 %v887
    %v2446 = vunpack.c.h.b16 %v887
    %v2447 = vunpack.c.l.b16 %v888
    %v2448 = vunpack.c.h.b16 %v888
    %v2449 = vunpack.c.l.b16 %v889
    %v2450 = vunpack.c.h.b16 %v889
    %v2451 = vunpack.c.l.b16 %v890
    %v2452 = vunpack.c.h.b16 %v890
    %v2453 = vunpack.c.l.b16 %v891
    %v2454 = vunpack.c.h.b16 %v891
    %v2455 = vunpack.c.l.b16 %v892
    %v2456 = vunpack.c.h.b16 %v892
    %v2457 = vunpack.c.l.b16 %v893
    %v2458 = vunpack.c.h.b16 %v893
    %v2459 = vunpack.c.l.b16 %v894
    %v2460 = vunpack.c.h.b16 %v894
    %v2461 = vunpack.c.l.b16 %v895
    %v2462 = vunpack.c.h.b16 %v895
    %v2463 = vunpack.c.l.b16 %v896
    %v2464 = vunpack.c.h.b16 %v896
    %v2465 = vunpack.c.l.b16 %v897
    %v2466 = vunpack.c.h.b16 %v897
    %v2467 = vunpack.c.l.b16 %v898
    %v2468 = vunpack.c.h.b16 %v898
    %v2469 = vunpack.c.l.b16 %v899
    %v2470 = vunpack.c.h.b16 %v899
    %v2471 = vunpack.c.l.b16 %v900
    %v2472 = vunpack.c.h.b16 %v900
    %v2473 = vunpack.c.l.b16 %v901
    %v2474 = vunpack.c.h.b16 %v901
    %v2475 = vunpack.c.l.b16 %v902
    %v2476 = vunpack.c.h.b16 %v902
    %v2477 = vunpack.c.l.b16 %v903
    %v2478 = vunpack.c.h.b16 %v903
    %v2479 = vunpack.c.l.b16 %v904
    %v2480 = vunpack.c.h.b16 %v904
    %v2481 = vunpack.c.l.b16 %v905
    %v2482 = vunpack.c.h.b16 %v905
    %v2483 = vunpack.c.l.b16 %v906
    %v2484 = vunpack.c.h.b16 %v906
    %v2485 = vunpack.c.l.b16 %v907
    %v2486 = vunpack.c.h.b16 %v907
    %v2487 = vunpack.c.l.b16 %v908
    %v2488 = vunpack.c.h.b16 %v908
    %v2489 = vunpack.c.l.b16 %v909
    %v2490 = vunpack.c.h.b16 %v909
    %v2491 = vunpack.c.l.b16 %v910
    %v2492 = vunpack.c.h.b16 %v910
    %v2493 = vunpack.c.l.b16 %v911
    %v2494 = vunpack.c.h.b16 %v911
    %v2495 = vunpack.c.l.b16 %v912
    %v2496 = vunpack.c.h.b16 %v912
    %v2497 = vunpack.c.l.b16 %v913
    %v2498 = vunpack.c.h.b16 %v913
    %v2499 = vunpack.c.l.b16 %v914
    %v2500 = vunpack.c.h.b16 %v914
    %v2501 = vunpack.c.l.b16 %v915
    %v2502 = vunpack.c.h.b16 %v915
    %v2503 = vunpack.c.l.b16 %v916
    %v2504 = vunpack.c.h.b16 %v916
    %v2505 = vunpack.c.l.b16 %v917
    %v2506 = vunpack.c.h.b16 %v917
    %v2507 = vunpack.c.l.b16 %v918
    %v2508 = vunpack.c.h.b16 %v918
    %v2509 = vunpack.c.l.b16 %v919
    %v2510 = vunpack.c.h.b16 %v919
    %v2511 = vunpack.c.l.b16 %v920
    %v2512 = vunpack.c.h.b16 %v920
    %v2513 = vunpack.c.l.b16 %v921
    %v2514 = vunpack.c.h.b16 %v921
    %v2515 = vunpack.c.l.b16 %v922
    %v2516 = vunpack.c.h.b16 %v922
    %v2517 = vunpack.c.l.b16 %v923
    %v2518 = vunpack.c.h.b16 %v923
    %v2519 = vunpack.c.l.b16 %v924
    %v2520 = vunpack.c.h.b16 %v924
    %v2521 = vunpack.c.l.b16 %v925
    %v2522 = vunpack.c.h.b16 %v925
    %v2523 = vunpack.c.l.b16 %v926
    %v2524 = vunpack.c.h.b16 %v926
    %v2525 = vunpack.c.l.b16 %v927
    %v2526 = vunpack.c.h.b16 %v927
    %v2527 = vunpack.c.l.b16 %v928
    %v2528 = vunpack.c.h.b16 %v928
    %v2529 = vunpack.c.l.b16 %v929
    %v2530 = vunpack.c.h.b16 %v929
    %v2531 = vunpack.c.l.b16 %v930
    %v2532 = vunpack.c.h.b16 %v930
    %v2533 = vunpack.c.l.b16 %v931
    %v2534 = vunpack.c.h.b16 %v931
    %v2535 = vunpack.c.l.b16 %v932
    %v2536 = vunpack.c.h.b16 %v932
    %v2537 = vunpack.c.l.b16 %v933
    %v2538 = vunpack.c.h.b16 %v933
    %v2539 = vunpack.c.l.b16 %v934
    %v2540 = vunpack.c.h.b16 %v934
    %v2541 = vunpack.c.l.b16 %v935
    %v2542 = vunpack.c.h.b16 %v935
    %v2543 = vunpack.c.l.b16 %v936
    %v2544 = vunpack.c.h.b16 %v936
    %v2545 = vunpack.c.l.b16 %v937
    %v2546 = vunpack.c.h.b16 %v937
    %v2547 = vunpack.c.l.b16 %v938
    %v2548 = vunpack.c.h.b16 %v938
    %v2549 = vunpack.c.l.b16 %v939
    %v2550 = vunpack.c.h.b16 %v939
    %v2551 = vunpack.c.l.b16 %v940
    %v2552 = vunpack.c.h.b16 %v940
    %v2553 = vunpack.c.l.b16 %v941
    %v2554 = vunpack.c.h.b16 %v941
    %v2555 = vunpack.c.l.b16 %v942
    %v2556 = vunpack.c.h.b16 %v942
    %v2557 = vunpack.c.l.b16 %v943
    %v2558 = vunpack.c.h.b16 %v943
    %v2559 = vunpack.c.l.b16 %v944
    %v2560 = vunpack.c.h.b16 %v944
    %v2561 = vunpack.c.l.b16 %v945
    %v2562 = vunpack.c.h.b16 %v945
    %v2563 = vunpack.c.l.b16 %v946
    %v2564 = vunpack.c.h.b16 %v946
    %v2565 = vunpack.c.l.b16 %v947
    %v2566 = vunpack.c.h.b16 %v947
    %v2567 = vunpack.c.l.b16 %v948
    %v2568 = vunpack.c.h.b16 %v948
    %v2569 = vunpack.c.l.b16 %v949
    %v2570 = vunpack.c.h.b16 %v949
    %v2571 = vunpack.c.l.b16 %v950
    %v2572 = vunpack.c.h.b16 %v950
    %v2573 = vunpack.c.l.b16 %v951
    %v2574 = vunpack.c.h.b16 %v951
    %v2575 = vunpack.c.l.b16 %v952
    %v2576 = vunpack.c.h.b16 %v952
    %v2577 = vunpack.c.l.b16 %v953
    %v2578 = vunpack.c.h.b16 %v953
    %v2579 = vunpack.c.l.b16 %v954
    %v2580 = vunpack.c.h.b16 %v954
    %v2581 = vunpack.c.l.b16 %v955
    %v2582 = vunpack.c.h.b16 %v955
    %v2583 = vunpack.c.l.b16 %v956
    %v2584 = vunpack.c.h.b16 %v956
    %v2585 = vunpack.c.l.b16 %v957
    %v2586 = vunpack.c.h.b16 %v957
    %v2587 = vunpack.c.l.b16 %v958
    %v2588 = vunpack.c.h.b16 %v958
    %v2589 = vunpack.c.l.b16 %v959
    %v2590 = vunpack.c.h.b16 %v959
    %v2591 = vunpack.c.l.b16 %v960
    %v2592 = vunpack.c.h.b16 %v960
    %v2593 = vunpack.c.l.b16 %v961
    %v2594 = vunpack.c.h.b16 %v961
    %v2595 = vunpack.c.l.b16 %v962
    %v2596 = vunpack.c.h.b16 %v962
    %v2597 = vunpack.c.l.b16 %v963
    %v2598 = vunpack.c.h.b16 %v963
    %v2599 = vunpack.c.l.b16 %v964
    %v2600 = vunpack.c.h.b16 %v964
    %v2601 = vunpack.c.l.b16 %v965
    %v2602 = vunpack.c.h.b16 %v965
    %v2603 = vunpack.c.l.b16 %v966
    %v2604 = vunpack.c.h.b16 %v966
    %v2605 = vunpack.c.l.b16 %v967
    %v2606 = vunpack.c.h.b16 %v967
    %v2607 = vunpack.c.l.b16 %v968
    %v2608 = vunpack.c.h.b16 %v968
    %v2609 = vunpack.c.l.b16 %v969
    %v2610 = vunpack.c.h.b16 %v969
    %v2611 = vunpack.c.l.b16 %v970
    %v2612 = vunpack.c.h.b16 %v970
    %v2613 = vunpack.c.l.b16 %v971
    %v2614 = vunpack.c.h.b16 %v971
    %v2615 = vunpack.c.l.b16 %v972
    %v2616 = vunpack.c.h.b16 %v972
    %v2617 = vunpack.c.l.b16 %v973
    %v2618 = vunpack.c.h.b16 %v973
    %v2619 = vunpack.c.l.b16 %v974
    %v2620 = vunpack.c.h.b16 %v974
    %v2621 = vunpack.c.l.b16 %v975
    %v2622 = vunpack.c.h.b16 %v975
    %v2623 = vunpack.c.l.b16 %v976
    %v2624 = vunpack.c.h.b16 %v976
    %v2625 = vunpack.c.l.b16 %v977
    %v2626 = vunpack.c.h.b16 %v977
    %v2627 = vunpack.c.l.b16 %v978
    %v2628 = vunpack.c.h.b16 %v978
    %v2629 = vunpack.c.l.b16 %v979
    %v2630 = vunpack.c.h.b16 %v979
    %v2631 = vunpack.c.l.b16 %v980
    %v2632 = vunpack.c.h.b16 %v980
    %v2633 = vunpack.c.l.b16 %v981
    %v2634 = vunpack.c.h.b16 %v981
    %v2635 = vunpack.c.l.b16 %v982
    %v2636 = vunpack.c.h.b16 %v982
    %v2637 = vunpack.c.l.b16 %v983
    %v2638 = vunpack.c.h.b16 %v983
    %v2639 = vunpack.c.l.b16 %v984
    %v2640 = vunpack.c.h.b16 %v984
    %v2641 = vunpack.c.l.b16 %v985
    %v2642 = vunpack.c.h.b16 %v985
    %v2643 = vunpack.c.l.b16 %v986
    %v2644 = vunpack.c.h.b16 %v986
    %v2645 = vunpack.c.l.b16 %v987
    %v2646 = vunpack.c.h.b16 %v987
    %v2647 = vunpack.c.l.b16 %v988
    %v2648 = vunpack.c.h.b16 %v988
    %v2649 = vunpack.c.l.b16 %v989
    %v2650 = vunpack.c.h.b16 %v989
    %v2651 = vunpack.c.l.b16 %v990
    %v2652 = vunpack.c.h.b16 %v990
    %v2653 = vunpack.c.l.b16 %v991
    %v2654 = vunpack.c.h.b16 %v991
    %v2655 = vunpack.c.l.b16 %v992
    %v2656 = vunpack.c.h.b16 %v992
    %v2657 = vunpack.c.l.b16 %v993
    %v2658 = vunpack.c.h.b16 %v993
    %v2659 = vunpack.c.l.b16 %v994
    %v2660 = vunpack.c.h.b16 %v994
    %v2661 = vunpack.c.l.b16 %v995
    %v2662 = vunpack.c.h.b16 %v995
    %v2663 = vunpack.c.l.b16 %v996
    %v2664 = vunpack.c.h.b16 %v996
    %v2665 = vunpack.c.l.b16 %v997
    %v2666 = vunpack.c.h.b16 %v997
    %v2667 = vunpack.c.l.b16 %v998
    %v2668 = vunpack.c.h.b16 %v998
    %v2669 = vunpack.c.l.b16 %v999
    %v2670 = vunpack.c.h.b16 %v999
    %v2671 = vunpack.c.l.b16 %v1000
    %v2672 = vunpack.c.h.b16 %v1000
    %v2673 = vunpack.c.l.b16 %v1001
    %v2674 = vunpack.c.h.b16 %v1001
    %v2675 = vunpack.c.l.b16 %v1002
    %v2676 = vunpack.c.h.b16 %v1002
    %v2677 = vunpack.c.l.b16 %v1003
    %v2678 = vunpack.c.h.b16 %v1003
    %v2679 = vunpack.c.l.b16 %v1004
    %v2680 = vunpack.c.h.b16 %v1004
    %v2681 = vunpack.c.l.b16 %v1005
    %v2682 = vunpack.c.h.b16 %v1005
    %v2683 = vunpack.c.l.b16 %v1006
    %v2684 = vunpack.c.h.b16 %v1006
    %v2685 = vunpack.c.l.b16 %v1007
    %v2686 = vunpack.c.h.b16 %v1007
    %v2687 = vunpack.c.l.b16 %v1008
    %v2688 = vunpack.c.h.b16 %v1008
    %v2689 = vunpack.c.l.b16 %v1009
    %v2690 = vunpack.c.h.b16 %v1009
    %v2691 = vunpack.c.l.b16 %v1010
    %v2692 = vunpack.c.h.b16 %v1010
    %v2693 = vunpack.c.l.b16 %v1011
    %v2694 = vunpack.c.h.b16 %v1011
    %v2695 = vunpack.c.l.b16 %v1012
    %v2696 = vunpack.c.h.b16 %v1012
    %v2697 = vunpack.c.l.b16 %v1013
    %v2698 = vunpack.c.h.b16 %v1013
    %v2699 = vunpack.c.l.b16 %v1014
    %v2700 = vunpack.c.h.b16 %v1014
    %v2701 = vunpack.c.l.b16 %v1015
    %v2702 = vunpack.c.h.b16 %v1015
    %v2703 = vunpack.c.l.b16 %v1016
    %v2704 = vunpack.c.h.b16 %v1016
    %v2705 = vunpack.c.l.b16 %v1017
    %v2706 = vunpack.c.h.b16 %v1017
    %v2707 = vunpack.c.l.b16 %v1018
    %v2708 = vunpack.c.h.b16 %v1018
    %v2709 = vunpack.c.l.b16 %v1019
    %v2710 = vunpack.c.h.b16 %v1019
    %v2711 = vunpack.c.l.b16 %v1020
    %v2712 = vunpack.c.h.b16 %v1020
    %v2713 = vunpack.c.l.b16 %v1021
    %v2714 = vunpack.c.h.b16 %v1021
    %v2715 = vunpack.c.l.b16 %v1022
    %v2716 = vunpack.c.h.b16 %v1022
    %v2717 = vunpack.c.l.b16 %v1023
    %v2718 = vunpack.c.h.b16 %v1023
    %v2719 = vunpack.c.l.b16 %v1024
    %v2720 = vunpack.c.h.b16 %v1024
    %v2721 = vunpack.c.l.b16 %v1025
    %v2722 = vunpack.c.h.b16 %v1025
    %v2723 = vunpack.c.l.b16 %v1026
    %v2724 = vunpack.c.h.b16 %v1026
    %v2725 = vunpack.c.l.b16 %v1027
    %v2726 = vunpack.c.h.b16 %v1027
    %v2727 = vunpack.c.l.b16 %v1028
    %v2728 = vunpack.c.h.b16 %v1028
    %v2729 = vunpack.c.l.b16 %v1029
    %v2730 = vunpack.c.h.b16 %v1029
    %v2731 = vunpack.c.l.b16 %v1030
    %v2732 = vunpack.c.h.b16 %v1030
    %v2733 = vunpack.c.l.b16 %v1031
    %v2734 = vunpack.c.h.b16 %v1031
    %v2735 = vunpack.c.l.b16 %v1032
    %v2736 = vunpack.c.h.b16 %v1032
    %v2737 = vunpack.c.l.b16 %v1033
    %v2738 = vunpack.c.h.b16 %v1033
    %v2739 = vunpack.c.l.b16 %v1034
    %v2740 = vunpack.c.h.b16 %v1034
    %v2741 = vunpack.c.l.b16 %v1035
    %v2742 = vunpack.c.h.b16 %v1035
    %v2743 = vunpack.c.l.b16 %v1036
    %v2744 = vunpack.c.h.b16 %v1036
    %v2745 = vunpack.c.l.b16 %v1037
    %v2746 = vunpack.c.h.b16 %v1037
    %v2747 = vunpack.c.l.b16 %v1038
    %v2748 = vunpack.c.h.b16 %v1038
    %v2749 = vunpack.c.l.b16 %v1039
    %v2750 = vunpack.c.h.b16 %v1039
    %v2751 = vunpack.c.l.b16 %v1040
    %v2752 = vunpack.c.h.b16 %v1040
    %v2753 = vunpack.c.l.b16 %v1041
    %v2754 = vunpack.c.h.b16 %v1041
    %v2755 = vunpack.c.l.b16 %v1042
    %v2756 = vunpack.c.h.b16 %v1042
    %v2757 = vunpack.c.l.b16 %v1043
    %v2758 = vunpack.c.h.b16 %v1043
    %v2759 = vunpack.c.l.b16 %v1044
    %v2760 = vunpack.c.h.b16 %v1044
    %v2761 = vunpack.c.l.b16 %v1045
    %v2762 = vunpack.c.h.b16 %v1045
    %v2763 = vunpack.c.l.b16 %v1046
    %v2764 = vunpack.c.h.b16 %v1046
    %v2765 = vunpack.c.l.b16 %v1047
    %v2766 = vunpack.c.h.b16 %v1047
    %v2767 = vunpack.c.l.b16 %v1048
    %v2768 = vunpack.c.h.b16 %v1048
    %v2769 = vunpack.c.l.b16 %v1049
    %v2770 = vunpack.c.h.b16 %v1049
    %v2771 = vunpack.c.l.b16 %v1050
    %v2772 = vunpack.c.h.b16 %v1050
    %v2773 = vunpack.c.l.b16 %v1051
    %v2774 = vunpack.c.h.b16 %v1051
    %v2775 = vunpack.c.l.b16 %v1052
    %v2776 = vunpack.c.h.b16 %v1052
    %v2777 = vunpack.c.l.b16 %v1053
    %v2778 = vunpack.c.h.b16 %v1053
    %v2779 = vunpack.c.l.b16 %v1054
    %v2780 = vunpack.c.h.b16 %v1054
    %v2781 = vunpack.c.l.b16 %v1055
    %v2782 = vunpack.c.h.b16 %v1055
    %v2783 = vunpack.c.l.b16 %v1056
    %v2784 = vunpack.c.h.b16 %v1056
    %v2785 = vunpack.c.l.b16 %v1057
    %v2786 = vunpack.c.h.b16 %v1057
    %v2787 = vunpack.c.l.b16 %v1058
    %v2788 = vunpack.c.h.b16 %v1058
    %v2789 = vunpack.c.l.b16 %v1059
    %v2790 = vunpack.c.h.b16 %v1059
    %v2791 = vunpack.c.l.b16 %v1060
    %v2792 = vunpack.c.h.b16 %v1060
    %v2793 = vunpack.c.l.b16 %v1061
    %v2794 = vunpack.c.h.b16 %v1061
    %v2795 = vunpack.c.l.b16 %v1062
    %v2796 = vunpack.c.h.b16 %v1062
    %v2797 = vunpack.c.l.b16 %v1063
    %v2798 = vunpack.c.h.b16 %v1063
    %v2799 = vunpack.c.l.b16 %v1064
    %v2800 = vunpack.c.h.b16 %v1064
    %v2801 = vunpack.c.l.b16 %v1065
    %v2802 = vunpack.c.h.b16 %v1065
    %v2803 = vunpack.c.l.b16 %v1066
    %v2804 = vunpack.c.h.b16 %v1066
    %v2805 = vunpack.c.l.b16 %v1067
    %v2806 = vunpack.c.h.b16 %v1067
    %v2807 = vunpack.c.l.b16 %v1068
    %v2808 = vunpack.c.h.b16 %v1068
    %v2809 = vunpack.c.l.b16 %v1069
    %v2810 = vunpack.c.h.b16 %v1069
    %v2811 = vunpack.c.l.b16 %v1070
    %v2812 = vunpack.c.h.b16 %v1070
    %v2813 = vpack.c.b16 %v1667, %v1661
    %v2814 = vpack.c.b16 %v1668, %v1662
    %v2815 = vpack.c.b16 %v1669, %v1663
    %v2816 = vpack.c.b16 %v1670, %v1664
    %v2817 = vpack.c.b16 %v1671, %v1665
    %v2818 = vpack.c.b16 %v1672, %v1666
    %v2819 = vpack.c.b16 %v1679, %v1673
    %v2820 = vpack.c.b16 %v1680, %v1674
    %v2821 = vpack.c.b16 %v1681, %v1675
    %v2822 = vpack.c.b16 %v1682, %v1676
    %v2823 = vpack.c.b16 %v1683, %v1677
    %v2824 = vpack.c.b16 %v1684, %v1678
    %v2825 = vpack.c.b16 %v1691, %v1685
    %v2826 = vpack.c.b16 %v1692, %v1686
    %v2827 = vpack.c.b16 %v1693, %v1687
    %v2828 = vpack.c.b16 %v1694, %v1688
    %v2829 = vpack.c.b16 %v1695, %v1689
    %v2830 = vpack.c.b16 %v1696, %v1690
    %v2831 = vpack.c.b16 %v1703, %v1697
    %v2832 = vpack.c.b16 %v1704, %v1698
    %v2833 = vpack.c.b16 %v1705, %v1699
    %v2834 = vpack.c.b16 %v1706, %v1700
    %v2835 = vpack.c.b16 %v1707, %v1701
    %v2836 = vpack.c.b16 %v1708, %v1702
    %v2837 = vpack.c.b16 %v1715, %v1709
    %v2838 = vpack.c.b16 %v1716, %v1710
    %v2839 = vpack.c.b16 %v1717, %v1711
    %v2840 = vpack.c.b16 %v1718, %v1712
    %v2841 = vpack.c.b16 %v1719, %v1713
    %v2842 = vpack.c.b16 %v1720, %v1714
    %v2843 = vpack.c.b16 %v1727, %v1721
    %v2844 = vpack.c.b16 %v1728, %v1722
    %v2845 = vpack.c.b16 %v1729, %v1723
    %v2846 = vpack.c.b16 %v1730, %v1724
    %v2847 = vpack.c.b16 %v1731, %v1725
    %v2848 = vpack.c.b16 %v1732, %v1726
    %v2849 = vpack.c.b16 %v1739, %v1733
    %v2850 = vpack.c.b16 %v1740, %v1734
    %v2851 = vpack.c.b16 %v1741, %v1735
    %v2852 = vpack.c.b16 %v1742, %v1736
    %v2853 = vpack.c.b16 %v1743, %v1737
    %v2854 = vpack.c.b16 %v1744, %v1738
    %v2855 = vpack.c.b16 %v1751, %v1745
    %v2856 = vpack.c.b16 %v1752, %v1746
    %v2857 = vpack.c.b16 %v1753, %v1747
    %v2858 = vpack.c.b16 %v1754, %v1748
    %v2859 = vpack.c.b16 %v1755, %v1749
    %v2860 = vpack.c.b16 %v1756, %v1750
    %v2861 = vpack.c.b16 %v1763, %v1757
    %v2862 = vpack.c.b16 %v1764, %v1758
    %v2863 = vpack.c.b16 %v1765, %v1759
    %v2864 = vpack.c.b16 %v1766, %v1760
    %v2865 = vpack.c.b16 %v1767, %v1761
    %v2866 = vpack.c.b16 %v1768, %v1762
    %v2867 = vpack.c.b16 %v1775, %v1769
    %v2868 = vpack.c.b16 %v1776, %v1770
    %v2869 = vpack.c.b16 %v1777, %v1771
    %v2870 = vpack.c.b16 %v1778, %v1772
    %v2871 = vpack.c.b16 %v1779, %v1773
    %v2872 = vpack.c.b16 %v1780, %v1774
    %v2873 = vpack.c.b16 %v1787, %v1781
    %v2874 = vpack.c.b16 %v1788, %v1782
    %v2875 = vpack.c.b16 %v1789, %v1783
    %v2876 = vpack.c.b16 %v1790, %v1784
    %v2877 = vpack.c.b16 %v1791, %v1785
    %v2878 = vpack.c.b16 %v1792, %v1786
    %v2879 = vpack.c.b16 %v1799, %v1793
    %v2880 = vpack.c.b16 %v1800, %v1794
    %v2881 = vpack.c.b16 %v1801, %v1795
    %v2882 = vpack.c.b16 %v1802, %v1796
    %v2883 = vpack.c.b16 %v1803, %v1797
    %v2884 = vpack.c.b16 %v1804, %v1798
    %v2885 = vpack.c.b16 %v1811, %v1805
    %v2886 = vpack.c.b16 %v1812, %v1806
    %v2887 = vpack.c.b16 %v1813, %v1807
    %v2888 = vpack.c.b16 %v1814, %v1808
    %v2889 = vpack.c.b16 %v1815, %v1809
    %v2890 = vpack.c.b16 %v1816, %v1810
    %v2891 = vpack.c.b16 %v1823, %v1817
    %v2892 = vpack.c.b16 %v1824, %v1818
    %v2893 = vpack.c.b16 %v1825, %v1819
    %v2894 = vpack.c.b16 %v1826, %v1820
    %v2895 = vpack.c.b16 %v1827, %v1821
    %v2896 = vpack.c.b16 %v1828, %v1822
    %v2897 = vpack.c.b16 %v1835, %v1829
    %v2898 = vpack.c.b16 %v1836, %v1830
    %v2899 = vpack.c.b16 %v1837, %v1831
    %v2900 = vpack.c.b16 %v1838, %v1832
    %v2901 = vpack.c.b16 %v1839, %v1833
    %v2902 = vpack.c.b16 %v1840, %v1834
    %v2903 = vpack.c.b16 %v1847, %v1841
    %v2904 = vpack.c.b16 %v1848, %v1842
    %v2905 = vpack.c.b16 %v1849, %v1843
    %v2906 = vpack.c.b16 %v1850, %v1844
    %v2907 = vpack.c.b16 %v1851, %v1845
    %v2908 = vpack.c.b16 %v1852, %v1846
    %v2909 = vpack.c.b16 %v1859, %v1853
    %v2910 = vpack.c.b16 %v1860, %v1854
    %v2911 = vpack.c.b16 %v1861, %v1855
    %v2912 = vpack.c.b16 %v1862, %v1856
    %v2913 = vpack.c.b16 %v1863, %v1857
    %v2914 = vpack.c.b16 %v1864, %v1858
    %v2915 = vpack.c.b16 %v1871, %v1865
    %v2916 = vpack.c.b16 %v1872, %v1866
    %v2917 = vpack.c.b16 %v1873, %v1867
    %v2918 = vpack.c.b16 %v1874, %v1868
    %v2919 = vpack.c.b16 %v1875, %v1869
    %v2920 = vpack.c.b16 %v1876, %v1870
    %v2921 = vpack.c.b16 %v1883, %v1877
    %v2922 = vpack.c.b16 %v1884, %v1878
    %v2923 = vpack.c.b16 %v1885, %v1879
    %v2924 = vpack.c.b16 %v1886, %v1880
    %v2925 = vpack.c.b16 %v1887, %v1881
    %v2926 = vpack.c.b16 %v1888, %v1882
    %v2927 = vpack.c.b16 %v1895, %v1889
    %v2928 = vpack.c.b16 %v1896, %v1890
    %v2929 = vpack.c.b16 %v1897, %v1891
    %v2930 = vpack.c.b16 %v1898, %v1892
    %v2931 = vpack.c.b16 %v1899, %v1893
    %v2932 = vpack.c.b16 %v1900, %v1894
    %v2933 = vpack.c.b16 %v1907, %v1901
    %v2934 = vpack.c.b16 %v1908, %v1902
    %v2935 = vpack.c.b16 %v1909, %v1903
    %v2936 = vpack.c.b16 %v1910, %v1904
    %v2937 = vpack.c.b16 %v1911, %v1905
    %v2938 = vpack.c.b16 %v1912, %v1906
    %v2939 = vpack.c.b16 %v1919, %v1913
    %v2940 = vpack.c.b16 %v1920, %v1914
    %v2941 = vpack.c.b16 %v1921, %v1915
    %v2942 = vpack.c.b16 %v1922, %v1916
    %v2943 = vpack.c.b16 %v1923, %v1917
    %v2944 = vpack.c.b16 %v1924, %v1918
    %v2945 = vpack.c.b16 %v1931, %v1925
    %v2946 = vpack.c.b16 %v1932, %v1926
    %v2947 = vpack.c.b16 %v1933, %v1927
    %v2948 = vpack.c.b16 %v1934, %v1928
    %v2949 = vpack.c.b16 %v1935, %v1929
    %v2950 = vpack.c.b16 %v1936, %v1930
    %v2951 = vpack.c.b16 %v1943, %v1937
    %v2952 = vpack.c.b16 %v1944, %v1938
    %v2953 = vpack.c.b16 %v1945, %v1939
    %v2954 = vpack.c.b16 %v1946, %v1940
    %v2955 = vpack.c.b16 %v1947, %v1941
    %v2956 = vpack.c.b16 %v1948, %v1942
    %v2957 = vpack.c.b16 %v1955, %v1949
    %v2958 = vpack.c.b16 %v1956, %v1950
    %v2959 = vpack.c.b16 %v1957, %v1951
    %v2960 = vpack.c.b16 %v1958, %v1952
    %v2961 = vpack.c.b16 %v1959, %v1953
    %v2962 = vpack.c.b16 %v1960, %v1954
    %v2963 = vpack.c.b16 %v1967, %v1961
    %v2964 = vpack.c.b16 %v1968, %v1962
    %v2965 = vpack.c.b16 %v1969, %v1963
    %v2966 = vpack.c.b16 %v1970, %v1964
    %v2967 = vpack.c.b16 %v1971, %v1965
    %v2968 = vpack.c.b16 %v1972, %v1966
    %v2969 = vpack.c.b16 %v1979, %v1973
    %v2970 = vpack.c.b16 %v1980, %v1974
    %v2971 = vpack.c.b16 %v1981, %v1975
    %v2972 = vpack.c.b16 %v1982, %v1976
    %v2973 = vpack.c.b16 %v1983, %v1977
    %v2974 = vpack.c.b16 %v1984, %v1978
    %v2975 = vpack.c.b16 %v1991, %v1985
    %v2976 = vpack.c.b16 %v1992, %v1986
    %v2977 = vpack.c.b16 %v1993, %v1987
    %v2978 = vpack.c.b16 %v1994, %v1988
    %v2979 = vpack.c.b16 %v1995, %v1989
    %v2980 = vpack.c.b16 %v1996, %v1990
    %v2981 = vpack.c.b16 %v2003, %v1997
    %v2982 = vpack.c.b16 %v2004, %v1998
    %v2983 = vpack.c.b16 %v2005, %v1999
    %v2984 = vpack.c.b16 %v2006, %v2000
    %v2985 = vpack.c.b16 %v2007, %v2001
    %v2986 = vpack.c.b16 %v2008, %v2002
    %v2987 = vpack.c.b16 %v2015, %v2009
    %v2988 = vpack.c.b16 %v2016, %v2010
    %v2989 = vpack.c.b16 %v2017, %v2011
    %v2990 = vpack.c.b16 %v2018, %v2012
    %v2991 = vpack.c.b16 %v2019, %v2013
    %v2992 = vpack.c.b16 %v2020, %v2014
    %v2993 = vpack.c.b16 %v2027, %v2021
    %v2994 = vpack.c.b16 %v2028, %v2022
    %v2995 = vpack.c.b16 %v2029, %v2023
    %v2996 = vpack.c.b16 %v2030, %v2024
    %v2997 = vpack.c.b16 %v2031, %v2025
    %v2998 = vpack.c.b16 %v2032, %v2026
    %v2999 = vpack.c.b16 %v2039, %v2033
    %v3000 = vpack.c.b16 %v2040, %v2034
    %v3001 = vpack.c.b16 %v2041, %v2035
    %v3002 = vpack.c.b16 %v2042, %v2036
    %v3003 = vpack.c.b16 %v2043, %v2037
    %v3004 = vpack.c.b16 %v2044, %v2038
    %v3005 = vpack.c.b16 %v2051, %v2045
    %v3006 = vpack.c.b16 %v2052, %v2046
    %v3007 = vpack.c.b16 %v2053, %v2047
    %v3008 = vpack.c.b16 %v2054, %v2048
    %v3009 = vpack.c.b16 %v2055, %v2049
    %v3010 = vpack.c.b16 %v2056, %v2050
    %v3011 = vpack.c.b16 %v2063, %v2057
    %v3012 = vpack.c.b16 %v2064, %v2058
    %v3013 = vpack.c.b16 %v2065, %v2059
    %v3014 = vpack.c.b16 %v2066, %v2060
    %v3015 = vpack.c.b16 %v2067, %v2061
    %v3016 = vpack.c.b16 %v2068, %v2062
    %v3017 = vpack.c.b16 %v2075, %v2069
    %v3018 = vpack.c.b16 %v2076, %v2070
    %v3019 = vpack.c.b16 %v2077, %v2071
    %v3020 = vpack.c.b16 %v2078, %v2072
    %v3021 = vpack.c.b16 %v2079, %v2073
    %v3022 = vpack.c.b16 %v2080, %v2074
    %v3023 = vpack.c.b16 %v2087, %v2081
    %v3024 = vpack.c.b16 %v2088, %v2082
    %v3025 = vpack.c.b16 %v2089, %v2083
    %v3026 = vpack.c.b16 %v2090, %v2084
    %v3027 = vpack.c.b16 %v2091, %v2085
    %v3028 = vpack.c.b16 %v2092, %v2086
    %v3029 = vpack.c.b16 %v2099, %v2093
    %v3030 = vpack.c.b16 %v2100, %v2094
    %v3031 = vpack.c.b16 %v2101, %v2095
    %v3032 = vpack.c.b16 %v2102, %v2096
    %v3033 = vpack.c.b16 %v2103, %v2097
    %v3034 = vpack.c.b16 %v2104, %v2098
    %v3035 = vpack.c.b16 %v2111, %v2105
    %v3036 = vpack.c.b16 %v2112, %v2106
    %v3037 = vpack.c.b16 %v2113, %v2107
    %v3038 = vpack.c.b16 %v2114, %v2108
    %v3039 = vpack.c.b16 %v2115, %v2109
    %v3040 = vpack.c.b16 %v2116, %v2110
    %v3041 = vpack.c.b16 %v2123, %v2117
    %v3042 = vpack.c.b16 %v2124, %v2118
    %v3043 = vpack.c.b16 %v2125, %v2119
    %v3044 = vpack.c.b16 %v2126, %v2120
    %v3045 = vpack.c.b16 %v2127, %v2121
    %v3046 = vpack.c.b16 %v2128, %v2122
    %v3047 = vpack.c.b16 %v2135, %v2129
    %v3048 = vpack.c.b16 %v2136, %v2130
    %v3049 = vpack.c.b16 %v2137, %v2131
    %v3050 = vpack.c.b16 %v2138, %v2132
    %v3051 = vpack.c.b16 %v2139, %v2133
    %v3052 = vpack.c.b16 %v2140, %v2134
    %v3053 = vpack.c.b16 %v2147, %v2141
    %v3054 = vpack.c.b16 %v2148, %v2142
    %v3055 = vpack.c.b16 %v2149, %v2143
    %v3056 = vpack.c.b16 %v2150, %v2144
    %v3057 = vpack.c.b16 %v2151, %v2145
    %v3058 = vpack.c.b16 %v2152, %v2146
    %v3059 = vpack.c.b16 %v2159, %v2153
    %v3060 = vpack.c.b16 %v2160, %v2154
    %v3061 = vpack.c.b16 %v2161, %v2155
    %v3062 = vpack.c.b16 %v2162, %v2156
    %v3063 = vpack.c.b16 %v2163, %v2157
    %v3064 = vpack.c.b16 %v2164, %v2158
    %v3065 = vpack.c.b16 %v2171, %v2165
    %v3066 = vpack.c.b16 %v2172, %v2166
    %v3067 = vpack.c.b16 %v2173, %v2167
    %v3068 = vpack.c.b16 %v2174, %v2168
    %v3069 = vpack.c.b16 %v2175, %v2169
    %v3070 = vpack.c.b16 %v2176, %v2170
    %v3071 = vpack.c.b16 %v2183, %v2177
    %v3072 = vpack.c.b16 %v2184, %v2178
    %v3073 = vpack.c.b16 %v2185, %v2179
    %v3074 = vpack.c.b16 %v2186, %v2180
    %v3075 = vpack.c.b16 %v2187, %v2181
    %v3076 = vpack.c.b16 %v2188, %v2182
    %v3077 = vpack.c.b16 %v2195, %v2189
    %v3078 = vpack.c.b16 %v2196, %v2190
    %v3079 = vpack.c.b16 %v2197, %v2191
    %v3080 = vpack.c.b16 %v2198, %v2192
    %v3081 = vpack.c.b16 %v2199, %v2193
    %v3082 = vpack.c.b16 %v2200, %v2194
    %v3083 = vpack.c.b16 %v2207, %v2201
    %v3084 = vpack.c.b16 %v2208, %v2202
    %v3085 = vpack.c.b16 %v2209, %v2203
    %v3086 = vpack.c.b16 %v2210, %v2204
    %v3087 = vpack.c.b16 %v2211, %v2205
    %v3088 = vpack.c.b16 %v2212, %v2206
    %v3089 = vpack.c.b16 %v2219, %v2213
    %v3090 = vpack.c.b16 %v2220, %v2214
    %v3091 = vpack.c.b16 %v2221, %v2215
    %v3092 = vpack.c.b16 %v2222, %v2216
    %v3093 = vpack.c.b16 %v2223, %v2217
    %v3094 = vpack.c.b16 %v2224, %v2218
    %v3095 = vpack.c.b16 %v2231, %v2225
    %v3096 = vpack.c.b16 %v2232, %v2226
    %v3097 = vpack.c.b16 %v2233, %v2227
    %v3098 = vpack.c.b16 %v2234, %v2228
    %v3099 = vpack.c.b16 %v2235, %v2229
    %v3100 = vpack.c.b16 %v2236, %v2230
    %v3101 = vpack.c.b16 %v2243, %v2237
    %v3102 = vpack.c.b16 %v2244, %v2238
    %v3103 = vpack.c.b16 %v2245, %v2239
    %v3104 = vpack.c.b16 %v2246, %v2240
    %v3105 = vpack.c.b16 %v2247, %v2241
    %v3106 = vpack.c.b16 %v2248, %v2242
    %v3107 = vpack.c.b16 %v2255, %v2249
    %v3108 = vpack.c.b16 %v2256, %v2250
    %v3109 = vpack.c.b16 %v2257, %v2251
    %v3110 = vpack.c.b16 %v2258, %v2252
    %v3111 = vpack.c.b16 %v2259, %v2253
    %v3112 = vpack.c.b16 %v2260, %v2254
    %v3113 = vpack.c.b16 %v2267, %v2261
    %v3114 = vpack.c.b16 %v2268, %v2262
    %v3115 = vpack.c.b16 %v2269, %v2263
    %v3116 = vpack.c.b16 %v2270, %v2264
    %v3117 = vpack.c.b16 %v2271, %v2265
    %v3118 = vpack.c.b16 %v2272, %v2266
    %v3119 = vpack.c.b16 %v2279, %v2273
    %v3120 = vpack.c.b16 %v2280, %v2274
    %v3121 = vpack.c.b16 %v2281, %v2275
    %v3122 = vpack.c.b16 %v2282, %v2276
    %v3123 = vpack.c.b16 %v2283, %v2277
    %v3124 = vpack.c.b16 %v2284, %v2278
    %v3125 = vpack.c.b16 %v2291, %v2285
    %v3126 = vpack.c.b16 %v2292, %v2286
    %v3127 = vpack.c.b16 %v2293, %v2287
    %v3128 = vpack.c.b16 %v2294, %v2288
    %v3129 = vpack.c.b16 %v2295, %v2289
    %v3130 = vpack.c.b16 %v2296, %v2290
    %v3131 = vpack.c.b16 %v2303, %v2297
    %v3132 = vpack.c.b16 %v2304, %v2298
    %v3133 = vpack.c.b16 %v2305, %v2299
    %v3134 = vpack.c.b16 %v2306, %v2300
    %v3135 = vpack.c.b16 %v2307, %v2301
    %v3136 = vpack.c.b16 %v2308, %v2302
    %v3137 = vpack.c.b16 %v2315, %v2309
    %v3138 = vpack.c.b16 %v2316, %v2310
    %v3139 = vpack.c.b16 %v2317, %v2311
    %v3140 = vpack.c.b16 %v2318, %v2312
    %v3141 = vpack.c.b16 %v2319, %v2313
    %v3142 = vpack.c.b16 %v2320, %v2314
    %v3143 = vpack.c.b16 %v2327, %v2321
    %v3144 = vpack.c.b16 %v2328, %v2322
    %v3145 = vpack.c.b16 %v2329, %v2323
    %v3146 = vpack.c.b16 %v2330, %v2324
    %v3147 = vpack.c.b16 %v2331, %v2325
    %v3148 = vpack.c.b16 %v2332, %v2326
    %v3149 = vpack.c.b16 %v2339, %v2333
    %v3150 = vpack.c.b16 %v2340, %v2334
    %v3151 = vpack.c.b16 %v2341, %v2335
    %v3152 = vpack.c.b16 %v2342, %v2336
    %v3153 = vpack.c.b16 %v2343, %v2337
    %v3154 = vpack.c.b16 %v2344, %v2338
    %v3155 = vpack.c.b16 %v2351, %v2345
    %v3156 = vpack.c.b16 %v2352, %v2346
    %v3157 = vpack.c.b16 %v2353, %v2347
    %v3158 = vpack.c.b16 %v2354, %v2348
    %v3159 = vpack.c.b16 %v2355, %v2349
    %v3160 = vpack.c.b16 %v2356, %v2350
    %v3161 = vpack.c.b16 %v2363, %v2357
    %v3162 = vpack.c.b16 %v2364, %v2358
    %v3163 = vpack.c.b16 %v2365, %v2359
    %v3164 = vpack.c.b16 %v2366, %v2360
    %v3165 = vpack.c.b16 %v2367, %v2361
    %v3166 = vpack.c.b16 %v2368, %v2362
    %v3167 = vpack.c.b16 %v2375, %v2369
    %v3168 = vpack.c.b16 %v2376, %v2370
    %v3169 = vpack.c.b16 %v2377, %v2371
    %v3170 = vpack.c.b16 %v2378, %v2372
    %v3171 = vpack.c.b16 %v2379, %v2373
    %v3172 = vpack.c.b16 %v2380, %v2374
    %v3173 = vpack.c.b16 %v2387, %v2381
    %v3174 = vpack.c.b16 %v2388, %v2382
    %v3175 = vpack.c.b16 %v2389, %v2383
    %v3176 = vpack.c.b16 %v2390, %v2384
    %v3177 = vpack.c.b16 %v2391, %v2385
    %v3178 = vpack.c.b16 %v2392, %v2386
    %v3179 = vpack.c.b16 %v2399, %v2393
    %v3180 = vpack.c.b16 %v2400, %v2394
    %v3181 = vpack.c.b16 %v2401, %v2395
    %v3182 = vpack.c.b16 %v2402, %v2396
    %v3183 = vpack.c.b16 %v2403, %v2397
    %v3184 = vpack.c.b16 %v2404, %v2398
    %v3185 = vpack.c.b16 %v2411, %v2405
    %v3186 = vpack.c.b16 %v2412, %v2406
    %v3187 = vpack.c.b16 %v2413, %v2407
    %v3188 = vpack.c.b16 %v2414, %v2408
    %v3189 = vpack.c.b16 %v2415, %v2409
    %v3190 = vpack.c.b16 %v2416, %v2410
    %v3191 = vpack.c.b16 %v2423, %v2417
    %v3192 = vpack.c.b16 %v2424, %v2418
    %v3193 = vpack.c.b16 %v2425, %v2419
    %v3194 = vpack.c.b16 %v2426, %v2420
    %v3195 = vpack.c.b16 %v2427, %v2421
    %v3196 = vpack.c.b16 %v2428, %v2422
    %v3197 = vpack.c.b16 %v2435, %v2429
    %v3198 = vpack.c.b16 %v2436, %v2430
    %v3199 = vpack.c.b16 %v2437, %v2431
    %v3200 = vpack.c.b16 %v2438, %v2432
    %v3201 = vpack.c.b16 %v2439, %v2433
    %v3202 = vpack.c.b16 %v2440, %v2434
    %v3203 = vpack.c.b16 %v2447, %v2441
    %v3204 = vpack.c.b16 %v2448, %v2442
    %v3205 = vpack.c.b16 %v2449, %v2443
    %v3206 = vpack.c.b16 %v2450, %v2444
    %v3207 = vpack.c.b16 %v2451, %v2445
    %v3208 = vpack.c.b16 %v2452, %v2446
    %v3209 = vpack.c.b16 %v2459, %v2453
    %v3210 = vpack.c.b16 %v2460, %v2454
    %v3211 = vpack.c.b16 %v2461, %v2455
    %v3212 = vpack.c.b16 %v2462, %v2456
    %v3213 = vpack.c.b16 %v2463, %v2457
    %v3214 = vpack.c.b16 %v2464, %v2458
    %v3215 = vpack.c.b16 %v2471, %v2465
    %v3216 = vpack.c.b16 %v2472, %v2466
    %v3217 = vpack.c.b16 %v2473, %v2467
    %v3218 = vpack.c.b16 %v2474, %v2468
    %v3219 = vpack.c.b16 %v2475, %v2469
    %v3220 = vpack.c.b16 %v2476, %v2470
    %v3221 = vpack.c.b16 %v2483, %v2477
    %v3222 = vpack.c.b16 %v2484, %v2478
    %v3223 = vpack.c.b16 %v2485, %v2479
    %v3224 = vpack.c.b16 %v2486, %v2480
    %v3225 = vpack.c.b16 %v2487, %v2481
    %v3226 = vpack.c.b16 %v2488, %v2482
    %v3227 = vpack.c.b16 %v2495, %v2489
    %v3228 = vpack.c.b16 %v2496, %v2490
    %v3229 = vpack.c.b16 %v2497, %v2491
    %v3230 = vpack.c.b16 %v2498, %v2492
    %v3231 = vpack.c.b16 %v2499, %v2493
    %v3232 = vpack.c.b16 %v2500, %v2494
    %v3233 = vpack.c.b16 %v2507, %v2501
    %v3234 = vpack.c.b16 %v2508, %v2502
    %v3235 = vpack.c.b16 %v2509, %v2503
    %v3236 = vpack.c.b16 %v2510, %v2504
    %v3237 = vpack.c.b16 %v2511, %v2505
    %v3238 = vpack.c.b16 %v2512, %v2506
    %v3239 = vpack.c.b16 %v2519, %v2513
    %v3240 = vpack.c.b16 %v2520, %v2514
    %v3241 = vpack.c.b16 %v2521, %v2515
    %v3242 = vpack.c.b16 %v2522, %v2516
    %v3243 = vpack.c.b16 %v2523, %v2517
    %v3244 = vpack.c.b16 %v2524, %v2518
    %v3245 = vpack.c.b16 %v2531, %v2525
    %v3246 = vpack.c.b16 %v2532, %v2526
    %v3247 = vpack.c.b16 %v2533, %v2527
    %v3248 = vpack.c.b16 %v2534, %v2528
    %v3249 = vpack.c.b16 %v2535, %v2529
    %v3250 = vpack.c.b16 %v2536, %v2530
    %v3251 = vpack.c.b16 %v2543, %v2537
    %v3252 = vpack.c.b16 %v2544, %v2538
    %v3253 = vpack.c.b16 %v2545, %v2539
    %v3254 = vpack.c.b16 %v2546, %v2540
    %v3255 = vpack.c.b16 %v2547, %v2541
    %v3256 = vpack.c.b16 %v2548, %v2542
    %v3257 = vpack.c.b16 %v2555, %v2549
    %v3258 = vpack.c.b16 %v2556, %v2550
    %v3259 = vpack.c.b16 %v2557, %v2551
    %v3260 = vpack.c.b16 %v2558, %v2552
    %v3261 = vpack.c.b16 %v2559, %v2553
    %v3262 = vpack.c.b16 %v2560, %v2554
    %v3263 = vpack.c.b16 %v2567, %v2561
    %v3264 = vpack.c.b16 %v2568, %v2562
    %v3265 = vpack.c.b16 %v2569, %v2563
    %v3266 = vpack.c.b16 %v2570, %v2564
    %v3267 = vpack.c.b16 %v2571, %v2565
    %v3268 = vpack.c.b16 %v2572, %v2566
    %v3269 = vpack.c.b16 %v2579, %v2573
    %v3270 = vpack.c.b16 %v2580, %v2574
    %v3271 = vpack.c.b16 %v2581, %v2575
    %v3272 = vpack.c.b16 %v2582, %v2576
    %v3273 = vpack.c.b16 %v2583, %v2577
    %v3274 = vpack.c.b16 %v2584, %v2578
    %v3275 = vpack.c.b16 %v2591, %v2585
    %v3276 = vpack.c.b16 %v2592, %v2586
    %v3277 = vpack.c.b16 %v2593, %v2587
    %v3278 = vpack.c.b16 %v2594, %v2588
    %v3279 = vpack.c.b16 %v2595, %v2589
    %v3280 = vpack.c.b16 %v2596, %v2590
    %v3281 = vpack.c.b16 %v2603, %v2597
    %v3282 = vpack.c.b16 %v2604, %v2598
    %v3283 = vpack.c.b16 %v2605, %v2599
    %v3284 = vpack.c.b16 %v2606, %v2600
    %v3285 = vpack.c.b16 %v2607, %v2601
    %v3286 = vpack.c.b16 %v2608, %v2602
    %v3287 = vpack.c.b16 %v2615, %v2609
    %v3288 = vpack.c.b16 %v2616, %v2610
    %v3289 = vpack.c.b16 %v2617, %v2611
    %v3290 = vpack.c.b16 %v2618, %v2612
    %v3291 = vpack.c.b16 %v2619, %v2613
    %v3292 = vpack.c.b16 %v2620, %v2614
    %v3293 = vpack.c.b16 %v2627, %v2621
    %v3294 = vpack.c.b16 %v2628, %v2622
    %v3295 = vpack.c.b16 %v2629, %v2623
    %v3296 = vpack.c.b16 %v2630, %v2624
    %v3297 = vpack.c.b16 %v2631, %v2625
    %v3298 = vpack.c.b16 %v2632, %v2626
    %v3299 = vpack.c.b16 %v2639, %v2633
    %v3300 = vpack.c.b16 %v2640, %v2634
    %v3301 = vpack.c.b16 %v2641, %v2635
    %v3302 = vpack.c.b16 %v2642, %v2636
    %v3303 = vpack.c.b16 %v2643, %v2637
    %v3304 = vpack.c.b16 %v2644, %v2638
    %v3305 = vpack.c.b16 %v2651, %v2645
    %v3306 = vpack.c.b16 %v2652, %v2646
    %v3307 = vpack.c.b16 %v2653, %v2647
    %v3308 = vpack.c.b16 %v2654, %v2648
    %v3309 = vpack.c.b16 %v2655, %v2649
    %v3310 = vpack.c.b16 %v2656, %v2650
    %v3311 = vpack.c.b16 %v2663, %v2657
    %v3312 = vpack.c.b16 %v2664, %v2658
    %v3313 = vpack.c.b16 %v2665, %v2659
    %v3314 = vpack.c.b16 %v2666, %v2660
    %v3315 = vpack.c.b16 %v2667, %v2661
    %v3316 = vpack.c.b16 %v2668, %v2662
    %v3317 = vpack.c.b16 %v2675, %v2669
    %v3318 = vpack.c.b16 %v2676, %v2670
    %v3319 = vpack.c.b16 %v2677, %v2671
    %v3320 = vpack.c.b16 %v2678, %v2672
    %v3321 = vpack.c.b16 %v2679, %v2673
    %v3322 = vpack.c.b16 %v2680, %v2674
    %v3323 = vpack.c.b16 %v2687, %v2681
    %v3324 = vpack.c.b16 %v2688, %v2682
    %v3325 = vpack.c.b16 %v2689, %v2683
    %v3326 = vpack.c.b16 %v2690, %v2684
    %v3327 = vpack.c.b16 %v2691, %v2685
    %v3328 = vpack.c.b16 %v2692, %v2686
    %v3329 = vpack.c.b16 %v2699, %v2693
    %v3330 = vpack.c.b16 %v2700, %v2694
    %v3331 = vpack.c.b16 %v2701, %v2695
    %v3332 = vpack.c.b16 %v2702, %v2696
    %v3333 = vpack.c.b16 %v2703, %v2697
    %v3334 = vpack.c.b16 %v2704, %v2698
    %v3335 = vpack.c.b16 %v2711, %v2705
    %v3336 = vpack.c.b16 %v2712, %v2706
    %v3337 = vpack.c.b16 %v2713, %v2707
    %v3338 = vpack.c.b16 %v2714, %v2708
    %v3339 = vpack.c.b16 %v2715, %v2709
    %v3340 = vpack.c.b16 %v2716, %v2710
    %v3341 = vpack.c.b16 %v2723, %v2717
    %v3342 = vpack.c.b16 %v2724, %v2718
    %v3343 = vpack.c.b16 %v2725, %v2719
    %v3344 = vpack.c.b16 %v2726, %v2720
    %v3345 = vpack.c.b16 %v2727, %v2721
    %v3346 = vpack.c.b16 %v2728, %v2722
    %v3347 = vpack.c.b16 %v2735, %v2729
    %v3348 = vpack.c.b16 %v2736, %v2730
    %v3349 = vpack.c.b16 %v2737, %v2731
    %v3350 = vpack.c.b16 %v2738, %v2732
    %v3351 = vpack.c.b16 %v2739, %v2733
    %v3352 = vpack.c.b16 %v2740, %v2734
    %v3353 = vpack.c.b16 %v2747, %v2741
    %v3354 = vpack.c.b16 %v2748, %v2742
    %v3355 = vpack.c.b16 %v2749, %v2743
    %v3356 = vpack.c.b16 %v2750, %v2744
    %v3357 = vpack.c.b16 %v2751, %v2745
    %v3358 = vpack.c.b16 %v2752, %v2746
    %v3359 = vpack.c.b16 %v2759, %v2753
    %v3360 = vpack.c.b16 %v2760, %v2754
    %v3361 = vpack.c.b16 %v2761, %v2755
    %v3362 = vpack.c.b16 %v2762, %v2756
    %v3363 = vpack.c.b16 %v2763, %v2757
    %v3364 = vpack.c.b16 %v2764, %v2758
    %v3365 = vpack.c.b16 %v2771, %v2765
    %v3366 = vpack.c.b16 %v2772, %v2766
    %v3367 = vpack.c.b16 %v2773, %v2767
    %v3368 = vpack.c.b16 %v2774, %v2768
    %v3369 = vpack.c.b16 %v2775, %v2769
    %v3370 = vpack.c.b16 %v2776, %v2770
    %v3371 = vpack.c.b16 %v2783, %v2777
    %v3372 = vpack.c.b16 %v2784, %v2778
    %v3373 = vpack.c.b16 %v2785, %v2779
    %v3374 = vpack.c.b16 %v2786, %v2780
    %v3375 = vpack.c.b16 %v2787, %v2781
    %v3376 = vpack.c.b16 %v2788, %v2782
    %v3377 = vpack.c.b16 %v2795, %v2789
    %v3378 = vpack.c.b16 %v2796, %v2790
    %v3379 = vpack.c.b16 %v2797, %v2791
    %v3380 = vpack.c.b16 %v2798, %v2792
    %v3381 = vpack.c.b16 %v2799, %v2793
    %v3382 = vpack.c.b16 %v2800, %v2794
    %v3383 = vpack.c.b16 %v2807, %v2801
    %v3384 = vpack.c.b16 %v2808, %v2802
    %v3385 = vpack.c.b16 %v2809, %v2803
    %v3386 = vpack.c.b16 %v2810, %v2804
    %v3387 = vpack.c.b16 %v2811, %v2805
    %v3388 = vpack.c.b16 %v2812, %v2806
    %3965 = vmatpush.bf16.msra.mxu0 %v2855
    %3966 = vmatpush.bf16.msra.mxu0 %v2849
    %3967 = vmatpush.bf16.msra.mxu0 %v2843
    %3968 = vmatpush.bf16.msra.mxu0 %v2837
    %3969 = vmatpush.bf16.msra.mxu0 %v2831
    %3970 = vmatpush.bf16.msra.mxu0 %v2825
    %3971 = vmatpush.bf16.msra.mxu0 %v2819
    %3972 = vmatpush.bf16.msra.mxu0 %v2813
    %3973 = vmatmul.bf16.gmra.mxu0 %v462
    %v3974 = vpop.f32.mrf.mxu0
    %v3975 = vadd.f32 %v1073, %v3974
    %v3976 = vpop.f32.mrf.mxu0
    %3977 = vdwg.mxu0
    %3978 = vmatpush.bf16.msra.mxu0 %v2903
    %3979 = vmatpush.bf16.msra.mxu0 %v2897
    %3980 = vmatpush.bf16.msra.mxu0 %v2891
    %3981 = vmatpush.bf16.msra.mxu0 %v2885
    %3982 = vmatpush.bf16.msra.mxu0 %v2879
    %3983 = vmatpush.bf16.msra.mxu0 %v2873
    %3984 = vmatpush.bf16.msra.mxu0 %v2867
    %3985 = vmatpush.bf16.msra.mxu0 %v2861
    %3986 = vmatmul.bf16.gmra.mxu0 %v463
    %v3987 = vpop.f32.mrf.mxu0
    %v3988 = vadd.f32 %v3975, %v3987
    %v3989 = vpop.f32.mrf.mxu0
    %3990 = vdwg.mxu0
    %3991 = vmatpush.bf16.msra.mxu0 %v2951
    %3992 = vmatpush.bf16.msra.mxu0 %v2945
    %3993 = vmatpush.bf16.msra.mxu0 %v2939
    %3994 = vmatpush.bf16.msra.mxu0 %v2933
    %3995 = vmatpush.bf16.msra.mxu0 %v2927
    %3996 = vmatpush.bf16.msra.mxu0 %v2921
    %3997 = vmatpush.bf16.msra.mxu0 %v2915
    %3998 = vmatpush.bf16.msra.mxu0 %v2909
    %3999 = vmatmul.bf16.gmra.mxu0 %v464
    %v4000 = vpop.f32.mrf.mxu0
    %v4001 = vadd.f32 %v3988, %v4000
    %v4002 = vpop.f32.mrf.mxu0
    %4003 = vdwg.mxu0
    %4004 = vmatpush.bf16.msra.mxu0 %v2999
    %4005 = vmatpush.bf16.msra.mxu0 %v2993
    %4006 = vmatpush.bf16.msra.mxu0 %v2987
    %4007 = vmatpush.bf16.msra.mxu0 %v2981
    %4008 = vmatpush.bf16.msra.mxu0 %v2975
    %4009 = vmatpush.bf16.msra.mxu0 %v2969
    %4010 = vmatpush.bf16.msra.mxu0 %v2963
    %4011 = vmatpush.bf16.msra.mxu0 %v2957
    %4012 = vmatmul.bf16.gmra.mxu0 %v465
    %v4013 = vpop.f32.mrf.mxu0
    %v4014 = vadd.f32 %v4001, %v4013
    %v4015 = vpop.f32.mrf.mxu0
    %4016 = vdwg.mxu0
    %4017 = vmatpush.bf16.msra.mxu0 %v3047
    %4018 = vmatpush.bf16.msra.mxu0 %v3041
    %4019 = vmatpush.bf16.msra.mxu0 %v3035
    %4020 = vmatpush.bf16.msra.mxu0 %v3029
    %4021 = vmatpush.bf16.msra.mxu0 %v3023
    %4022 = vmatpush.bf16.msra.mxu0 %v3017
    %4023 = vmatpush.bf16.msra.mxu0 %v3011
    %4024 = vmatpush.bf16.msra.mxu0 %v3005
    %4025 = vmatmul.bf16.gmra.mxu0 %v466
    %v4026 = vpop.f32.mrf.mxu0
    %v4027 = vadd.f32 %v4014, %v4026
    %v4028 = vpop.f32.mrf.mxu0
    %4029 = vdwg.mxu0
    %4030 = vmatpush.bf16.msra.mxu0 %v3095
    %4031 = vmatpush.bf16.msra.mxu0 %v3089
    %4032 = vmatpush.bf16.msra.mxu0 %v3083
    %4033 = vmatpush.bf16.msra.mxu0 %v3077
    %4034 = vmatpush.bf16.msra.mxu0 %v3071
    %4035 = vmatpush.bf16.msra.mxu0 %v3065
    %4036 = vmatpush.bf16.msra.mxu0 %v3059
    %4037 = vmatpush.bf16.msra.mxu0 %v3053
    %4038 = vmatmul.bf16.gmra.mxu0 %v467
    %v4039 = vpop.f32.mrf.mxu0
    %v4040 = vadd.f32 %v4027, %v4039
    %v4041 = vpop.f32.mrf.mxu0
    %4042 = vdwg.mxu0
    %4043 = vmatpush.bf16.msra.mxu0 %v3143
    %4044 = vmatpush.bf16.msra.mxu0 %v3137
    %4045 = vmatpush.bf16.msra.mxu0 %v3131
    %4046 = vmatpush.bf16.msra.mxu0 %v3125
    %4047 = vmatpush.bf16.msra.mxu0 %v3119
    %4048 = vmatpush.bf16.msra.mxu0 %v3113
    %4049 = vmatpush.bf16.msra.mxu0 %v3107
    %4050 = vmatpush.bf16.msra.mxu0 %v3101
    %4051 = vmatmul.bf16.gmra.mxu0 %v483
    %v4052 = vpop.f32.mrf.mxu0
    %v4053 = vadd.f32 %v4040, %v4052
    %v4054 = vpop.f32.mrf.mxu0
    %4055 = vdwg.mxu0
    %4056 = vmatpush.bf16.msra.mxu0 %v3191
    %4057 = vmatpush.bf16.msra.mxu0 %v3185
    %4058 = vmatpush.bf16.msra.mxu0 %v3179
    %4059 = vmatpush.bf16.msra.mxu0 %v3173
    %4060 = vmatpush.bf16.msra.mxu0 %v3167
    %4061 = vmatpush.bf16.msra.mxu0 %v3161
    %4062 = vmatpush.bf16.msra.mxu0 %v3155
    %4063 = vmatpush.bf16.msra.mxu0 %v3149
    %4064 = vmatmul.bf16.gmra.mxu0 %v484
    %v4065 = vpop.f32.mrf.mxu0
    %v4066 = vadd.f32 %v4053, %v4065
    %v4067 = vpop.f32.mrf.mxu0
    %4068 = vdwg.mxu0
    %4069 = vmatpush.bf16.msra.mxu0 %v3239
    %4070 = vmatpush.bf16.msra.mxu0 %v3233
    %4071 = vmatpush.bf16.msra.mxu0 %v3227
    %4072 = vmatpush.bf16.msra.mxu0 %v3221
    %4073 = vmatpush.bf16.msra.mxu0 %v3215
    %4074 = vmatpush.bf16.msra.mxu0 %v3209
    %4075 = vmatpush.bf16.msra.mxu0 %v3203
    %4076 = vmatpush.bf16.msra.mxu0 %v3197
    %4077 = vmatmul.bf16.gmra.mxu0 %v485
    %v4078 = vpop.f32.mrf.mxu0
    %v4079 = vadd.f32 %v4066, %v4078
    %v4080 = vpop.f32.mrf.mxu0
    %4081 = vdwg.mxu0
    %4082 = vmatpush.bf16.msra.mxu0 %v3287
    %4083 = vmatpush.bf16.msra.mxu0 %v3281
    %4084 = vmatpush.bf16.msra.mxu0 %v3275
    %4085 = vmatpush.bf16.msra.mxu0 %v3269
    %4086 = vmatpush.bf16.msra.mxu0 %v3263
    %4087 = vmatpush.bf16.msra.mxu0 %v3257
    %4088 = vmatpush.bf16.msra.mxu0 %v3251
    %4089 = vmatpush.bf16.msra.mxu0 %v3245
    %4090 = vmatmul.bf16.gmra.mxu0 %v486
    %v4091 = vpop.f32.mrf.mxu0
    %v4092 = vadd.f32 %v4079, %v4091
    %v4093 = vpop.f32.mrf.mxu0
    %4094 = vdwg.mxu0
    %4095 = vmatpush.bf16.msra.mxu0 %v3335
    %4096 = vmatpush.bf16.msra.mxu0 %v3329
    %4097 = vmatpush.bf16.msra.mxu0 %v3323
    %4098 = vmatpush.bf16.msra.mxu0 %v3317
    %4099 = vmatpush.bf16.msra.mxu0 %v3311
    %4100 = vmatpush.bf16.msra.mxu0 %v3305
    %4101 = vmatpush.bf16.msra.mxu0 %v3299
    %4102 = vmatpush.bf16.msra.mxu0 %v3293
    %4103 = vmatmul.bf16.gmra.mxu0 %v487
    %v4104 = vpop.f32.mrf.mxu0
    %v4105 = vadd.f32 %v4092, %v4104
    %v4106 = vpop.f32.mrf.mxu0
    %4107 = vdwg.mxu0
    %4108 = vmatpush.bf16.msra.mxu0 %v3383
    %4109 = vmatpush.bf16.msra.mxu0 %v3377
    %4110 = vmatpush.bf16.msra.mxu0 %v3371
    %4111 = vmatpush.bf16.msra.mxu0 %v3365
    %4112 = vmatpush.bf16.msra.mxu0 %v3359
    %4113 = vmatpush.bf16.msra.mxu0 %v3353
    %4114 = vmatpush.bf16.msra.mxu0 %v3347
    %4115 = vmatpush.bf16.msra.mxu0 %v3341
    %4116 = vmatmul.bf16.gmra.mxu0 %v488
    %v4117 = vpop.f32.mrf.mxu0
    %v4118 = vadd.f32 %v4105, %v4117
    %v4119 = vpop.f32.mrf.mxu0
    %4120 = vdwg.mxu0
    %4121 = vmatpush.bf16.msra.mxu0 %v2856
    %4122 = vmatpush.bf16.msra.mxu0 %v2850
    %4123 = vmatpush.bf16.msra.mxu0 %v2844
    %4124 = vmatpush.bf16.msra.mxu0 %v2838
    %4125 = vmatpush.bf16.msra.mxu0 %v2832
    %4126 = vmatpush.bf16.msra.mxu0 %v2826
    %4127 = vmatpush.bf16.msra.mxu0 %v2820
    %4128 = vmatpush.bf16.msra.mxu0 %v2814
    %4129 = vmatmul.bf16.gmra.mxu0 %v462
    %v4130 = vpop.f32.mrf.mxu0
    %v4131 = vadd.f32 %v1074, %v4130
    %v4132 = vpop.f32.mrf.mxu0
    %4133 = vdwg.mxu0
    %4134 = vmatpush.bf16.msra.mxu0 %v2904
    %4135 = vmatpush.bf16.msra.mxu0 %v2898
    %4136 = vmatpush.bf16.msra.mxu0 %v2892
    %4137 = vmatpush.bf16.msra.mxu0 %v2886
    %4138 = vmatpush.bf16.msra.mxu0 %v2880
    %4139 = vmatpush.bf16.msra.mxu0 %v2874
    %4140 = vmatpush.bf16.msra.mxu0 %v2868
    %4141 = vmatpush.bf16.msra.mxu0 %v2862
    %4142 = vmatmul.bf16.gmra.mxu0 %v463
    %v4143 = vpop.f32.mrf.mxu0
    %v4144 = vadd.f32 %v4131, %v4143
    %v4145 = vpop.f32.mrf.mxu0
    %4146 = vdwg.mxu0
    %4147 = vmatpush.bf16.msra.mxu0 %v2952
    %4148 = vmatpush.bf16.msra.mxu0 %v2946
    %4149 = vmatpush.bf16.msra.mxu0 %v2940
    %4150 = vmatpush.bf16.msra.mxu0 %v2934
    %4151 = vmatpush.bf16.msra.mxu0 %v2928
    %4152 = vmatpush.bf16.msra.mxu0 %v2922
    %4153 = vmatpush.bf16.msra.mxu0 %v2916
    %4154 = vmatpush.bf16.msra.mxu0 %v2910
    %4155 = vmatmul.bf16.gmra.mxu0 %v464
    %v4156 = vpop.f32.mrf.mxu0
    %v4157 = vadd.f32 %v4144, %v4156
    %v4158 = vpop.f32.mrf.mxu0
    %4159 = vdwg.mxu0
    %4160 = vmatpush.bf16.msra.mxu0 %v3000
    %4161 = vmatpush.bf16.msra.mxu0 %v2994
    %4162 = vmatpush.bf16.msra.mxu0 %v2988
    %4163 = vmatpush.bf16.msra.mxu0 %v2982
    %4164 = vmatpush.bf16.msra.mxu0 %v2976
    %4165 = vmatpush.bf16.msra.mxu0 %v2970
    %4166 = vmatpush.bf16.msra.mxu0 %v2964
    %4167 = vmatpush.bf16.msra.mxu0 %v2958
    %4168 = vmatmul.bf16.gmra.mxu0 %v465
    %v4169 = vpop.f32.mrf.mxu0
    %v4170 = vadd.f32 %v4157, %v4169
    %v4171 = vpop.f32.mrf.mxu0
    %4172 = vdwg.mxu0
    %4173 = vmatpush.bf16.msra.mxu0 %v3048
    %4174 = vmatpush.bf16.msra.mxu0 %v3042
    %4175 = vmatpush.bf16.msra.mxu0 %v3036
    %4176 = vmatpush.bf16.msra.mxu0 %v3030
    %4177 = vmatpush.bf16.msra.mxu0 %v3024
    %4178 = vmatpush.bf16.msra.mxu0 %v3018
    %4179 = vmatpush.bf16.msra.mxu0 %v3012
    %4180 = vmatpush.bf16.msra.mxu0 %v3006
    %4181 = vmatmul.bf16.gmra.mxu0 %v466
    %v4182 = vpop.f32.mrf.mxu0
    %v4183 = vadd.f32 %v4170, %v4182
    %v4184 = vpop.f32.mrf.mxu0
    %4185 = vdwg.mxu0
    %4186 = vmatpush.bf16.msra.mxu0 %v3096
    %4187 = vmatpush.bf16.msra.mxu0 %v3090
    %4188 = vmatpush.bf16.msra.mxu0 %v3084
    %4189 = vmatpush.bf16.msra.mxu0 %v3078
    %4190 = vmatpush.bf16.msra.mxu0 %v3072
    %4191 = vmatpush.bf16.msra.mxu0 %v3066
    %4192 = vmatpush.bf16.msra.mxu0 %v3060
    %4193 = vmatpush.bf16.msra.mxu0 %v3054
    %4194 = vmatmul.bf16.gmra.mxu0 %v467
    %v4195 = vpop.f32.mrf.mxu0
    %v4196 = vadd.f32 %v4183, %v4195
    %v4197 = vpop.f32.mrf.mxu0
    %4198 = vdwg.mxu0
    %4199 = vmatpush.bf16.msra.mxu0 %v3144
    %4200 = vmatpush.bf16.msra.mxu0 %v3138
    %4201 = vmatpush.bf16.msra.mxu0 %v3132
    %4202 = vmatpush.bf16.msra.mxu0 %v3126
    %4203 = vmatpush.bf16.msra.mxu0 %v3120
    %4204 = vmatpush.bf16.msra.mxu0 %v3114
    %4205 = vmatpush.bf16.msra.mxu0 %v3108
    %4206 = vmatpush.bf16.msra.mxu0 %v3102
    %4207 = vmatmul.bf16.gmra.mxu0 %v483
    %v4208 = vpop.f32.mrf.mxu0
    %v4209 = vadd.f32 %v4196, %v4208
    %v4210 = vpop.f32.mrf.mxu0
    %4211 = vdwg.mxu0
    %4212 = vmatpush.bf16.msra.mxu0 %v3192
    %4213 = vmatpush.bf16.msra.mxu0 %v3186
    %4214 = vmatpush.bf16.msra.mxu0 %v3180
    %4215 = vmatpush.bf16.msra.mxu0 %v3174
    %4216 = vmatpush.bf16.msra.mxu0 %v3168
    %4217 = vmatpush.bf16.msra.mxu0 %v3162
    %4218 = vmatpush.bf16.msra.mxu0 %v3156
    %4219 = vmatpush.bf16.msra.mxu0 %v3150
    %4220 = vmatmul.bf16.gmra.mxu0 %v484
    %v4221 = vpop.f32.mrf.mxu0
    %v4222 = vadd.f32 %v4209, %v4221
    %v4223 = vpop.f32.mrf.mxu0
    %4224 = vdwg.mxu0
    %4225 = vmatpush.bf16.msra.mxu0 %v3240
    %4226 = vmatpush.bf16.msra.mxu0 %v3234
    %4227 = vmatpush.bf16.msra.mxu0 %v3228
    %4228 = vmatpush.bf16.msra.mxu0 %v3222
    %4229 = vmatpush.bf16.msra.mxu0 %v3216
    %4230 = vmatpush.bf16.msra.mxu0 %v3210
    %4231 = vmatpush.bf16.msra.mxu0 %v3204
    %4232 = vmatpush.bf16.msra.mxu0 %v3198
    %4233 = vmatmul.bf16.gmra.mxu0 %v485
    %v4234 = vpop.f32.mrf.mxu0
    %v4235 = vadd.f32 %v4222, %v4234
    %v4236 = vpop.f32.mrf.mxu0
    %4237 = vdwg.mxu0
    %4238 = vmatpush.bf16.msra.mxu0 %v3288
    %4239 = vmatpush.bf16.msra.mxu0 %v3282
    %4240 = vmatpush.bf16.msra.mxu0 %v3276
    %4241 = vmatpush.bf16.msra.mxu0 %v3270
    %4242 = vmatpush.bf16.msra.mxu0 %v3264
    %4243 = vmatpush.bf16.msra.mxu0 %v3258
    %4244 = vmatpush.bf16.msra.mxu0 %v3252
    %4245 = vmatpush.bf16.msra.mxu0 %v3246
    %4246 = vmatmul.bf16.gmra.mxu0 %v486
    %v4247 = vpop.f32.mrf.mxu0
    %v4248 = vadd.f32 %v4235, %v4247
    %v4249 = vpop.f32.mrf.mxu0
    %4250 = vdwg.mxu0
    %4251 = vmatpush.bf16.msra.mxu0 %v3336
    %4252 = vmatpush.bf16.msra.mxu0 %v3330
    %4253 = vmatpush.bf16.msra.mxu0 %v3324
    %4254 = vmatpush.bf16.msra.mxu0 %v3318
    %4255 = vmatpush.bf16.msra.mxu0 %v3312
    %4256 = vmatpush.bf16.msra.mxu0 %v3306
    %4257 = vmatpush.bf16.msra.mxu0 %v3300
    %4258 = vmatpush.bf16.msra.mxu0 %v3294
    %4259 = vmatmul.bf16.gmra.mxu0 %v487
    %v4260 = vpop.f32.mrf.mxu0
    %v4261 = vadd.f32 %v4248, %v4260
    %v4262 = vpop.f32.mrf.mxu0
    %4263 = vdwg.mxu0
    %4264 = vmatpush.bf16.msra.mxu0 %v3384
    %4265 = vmatpush.bf16.msra.mxu0 %v3378
    %4266 = vmatpush.bf16.msra.mxu0 %v3372
    %4267 = vmatpush.bf16.msra.mxu0 %v3366
    %4268 = vmatpush.bf16.msra.mxu0 %v3360
    %4269 = vmatpush.bf16.msra.mxu0 %v3354
    %4270 = vmatpush.bf16.msra.mxu0 %v3348
    %4271 = vmatpush.bf16.msra.mxu0 %v3342
    %4272 = vmatmul.bf16.gmra.mxu0 %v488
    %v4273 = vpop.f32.mrf.mxu0
    %v4274 = vadd.f32 %v4261, %v4273
    %v4275 = vpop.f32.mrf.mxu0
    %4276 = vdwg.mxu0
    %4277 = vmatpush.bf16.msra.mxu0 %v2857
    %4278 = vmatpush.bf16.msra.mxu0 %v2851
    %4279 = vmatpush.bf16.msra.mxu0 %v2845
    %4280 = vmatpush.bf16.msra.mxu0 %v2839
    %4281 = vmatpush.bf16.msra.mxu0 %v2833
    %4282 = vmatpush.bf16.msra.mxu0 %v2827
    %4283 = vmatpush.bf16.msra.mxu0 %v2821
    %4284 = vmatpush.bf16.msra.mxu0 %v2815
    %4285 = vmatmul.bf16.gmra.mxu0 %v462
    %v4286 = vpop.f32.mrf.mxu0
    %v4287 = vadd.f32 %v1075, %v4286
    %v4288 = vpop.f32.mrf.mxu0
    %4289 = vdwg.mxu0
    %4290 = vmatpush.bf16.msra.mxu0 %v2905
    %4291 = vmatpush.bf16.msra.mxu0 %v2899
    %4292 = vmatpush.bf16.msra.mxu0 %v2893
    %4293 = vmatpush.bf16.msra.mxu0 %v2887
    %4294 = vmatpush.bf16.msra.mxu0 %v2881
    %4295 = vmatpush.bf16.msra.mxu0 %v2875
    %4296 = vmatpush.bf16.msra.mxu0 %v2869
    %4297 = vmatpush.bf16.msra.mxu0 %v2863
    %4298 = vmatmul.bf16.gmra.mxu0 %v463
    %v4299 = vpop.f32.mrf.mxu0
    %v4300 = vadd.f32 %v4287, %v4299
    %v4301 = vpop.f32.mrf.mxu0
    %4302 = vdwg.mxu0
    %4303 = vmatpush.bf16.msra.mxu0 %v2953
    %4304 = vmatpush.bf16.msra.mxu0 %v2947
    %4305 = vmatpush.bf16.msra.mxu0 %v2941
    %4306 = vmatpush.bf16.msra.mxu0 %v2935
    %4307 = vmatpush.bf16.msra.mxu0 %v2929
    %4308 = vmatpush.bf16.msra.mxu0 %v2923
    %4309 = vmatpush.bf16.msra.mxu0 %v2917
    %4310 = vmatpush.bf16.msra.mxu0 %v2911
    %4311 = vmatmul.bf16.gmra.mxu0 %v464
    %v4312 = vpop.f32.mrf.mxu0
    %v4313 = vadd.f32 %v4300, %v4312
    %v4314 = vpop.f32.mrf.mxu0
    %4315 = vdwg.mxu0
    %4316 = vmatpush.bf16.msra.mxu0 %v3001
    %4317 = vmatpush.bf16.msra.mxu0 %v2995
    %4318 = vmatpush.bf16.msra.mxu0 %v2989
    %4319 = vmatpush.bf16.msra.mxu0 %v2983
    %4320 = vmatpush.bf16.msra.mxu0 %v2977
    %4321 = vmatpush.bf16.msra.mxu0 %v2971
    %4322 = vmatpush.bf16.msra.mxu0 %v2965
    %4323 = vmatpush.bf16.msra.mxu0 %v2959
    %4324 = vmatmul.bf16.gmra.mxu0 %v465
    %v4325 = vpop.f32.mrf.mxu0
    %v4326 = vadd.f32 %v4313, %v4325
    %v4327 = vpop.f32.mrf.mxu0
    %4328 = vdwg.mxu0
    %4329 = vmatpush.bf16.msra.mxu0 %v3049
    %4330 = vmatpush.bf16.msra.mxu0 %v3043
    %4331 = vmatpush.bf16.msra.mxu0 %v3037
    %4332 = vmatpush.bf16.msra.mxu0 %v3031
    %4333 = vmatpush.bf16.msra.mxu0 %v3025
    %4334 = vmatpush.bf16.msra.mxu0 %v3019
    %4335 = vmatpush.bf16.msra.mxu0 %v3013
    %4336 = vmatpush.bf16.msra.mxu0 %v3007
    %4337 = vmatmul.bf16.gmra.mxu0 %v466
    %v4338 = vpop.f32.mrf.mxu0
    %v4339 = vadd.f32 %v4326, %v4338
    %v4340 = vpop.f32.mrf.mxu0
    %4341 = vdwg.mxu0
    %4342 = vmatpush.bf16.msra.mxu0 %v3097
    %4343 = vmatpush.bf16.msra.mxu0 %v3091
    %4344 = vmatpush.bf16.msra.mxu0 %v3085
    %4345 = vmatpush.bf16.msra.mxu0 %v3079
    %4346 = vmatpush.bf16.msra.mxu0 %v3073
    %4347 = vmatpush.bf16.msra.mxu0 %v3067
    %4348 = vmatpush.bf16.msra.mxu0 %v3061
    %4349 = vmatpush.bf16.msra.mxu0 %v3055
    %4350 = vmatmul.bf16.gmra.mxu0 %v467
    %v4351 = vpop.f32.mrf.mxu0
    %v4352 = vadd.f32 %v4339, %v4351
    %v4353 = vpop.f32.mrf.mxu0
    %4354 = vdwg.mxu0
    %4355 = vmatpush.bf16.msra.mxu0 %v3145
    %4356 = vmatpush.bf16.msra.mxu0 %v3139
    %4357 = vmatpush.bf16.msra.mxu0 %v3133
    %4358 = vmatpush.bf16.msra.mxu0 %v3127
    %4359 = vmatpush.bf16.msra.mxu0 %v3121
    %4360 = vmatpush.bf16.msra.mxu0 %v3115
    %4361 = vmatpush.bf16.msra.mxu0 %v3109
    %4362 = vmatpush.bf16.msra.mxu0 %v3103
    %4363 = vmatmul.bf16.gmra.mxu0 %v483
    %v4364 = vpop.f32.mrf.mxu0
    %v4365 = vadd.f32 %v4352, %v4364
    %v4366 = vpop.f32.mrf.mxu0
    %4367 = vdwg.mxu0
    %4368 = vmatpush.bf16.msra.mxu0 %v3193
    %4369 = vmatpush.bf16.msra.mxu0 %v3187
    %4370 = vmatpush.bf16.msra.mxu0 %v3181
    %4371 = vmatpush.bf16.msra.mxu0 %v3175
    %4372 = vmatpush.bf16.msra.mxu0 %v3169
    %4373 = vmatpush.bf16.msra.mxu0 %v3163
    %4374 = vmatpush.bf16.msra.mxu0 %v3157
    %4375 = vmatpush.bf16.msra.mxu0 %v3151
    %4376 = vmatmul.bf16.gmra.mxu0 %v484
    %v4377 = vpop.f32.mrf.mxu0
    %v4378 = vadd.f32 %v4365, %v4377
    %v4379 = vpop.f32.mrf.mxu0
    %4380 = vdwg.mxu0
    %4381 = vmatpush.bf16.msra.mxu0 %v3241
    %4382 = vmatpush.bf16.msra.mxu0 %v3235
    %4383 = vmatpush.bf16.msra.mxu0 %v3229
    %4384 = vmatpush.bf16.msra.mxu0 %v3223
    %4385 = vmatpush.bf16.msra.mxu0 %v3217
    %4386 = vmatpush.bf16.msra.mxu0 %v3211
    %4387 = vmatpush.bf16.msra.mxu0 %v3205
    %4388 = vmatpush.bf16.msra.mxu0 %v3199
    %4389 = vmatmul.bf16.gmra.mxu0 %v485
    %v4390 = vpop.f32.mrf.mxu0
    %v4391 = vadd.f32 %v4378, %v4390
    %v4392 = vpop.f32.mrf.mxu0
    %4393 = vdwg.mxu0
    %4394 = vmatpush.bf16.msra.mxu0 %v3289
    %4395 = vmatpush.bf16.msra.mxu0 %v3283
    %4396 = vmatpush.bf16.msra.mxu0 %v3277
    %4397 = vmatpush.bf16.msra.mxu0 %v3271
    %4398 = vmatpush.bf16.msra.mxu0 %v3265
    %4399 = vmatpush.bf16.msra.mxu0 %v3259
    %4400 = vmatpush.bf16.msra.mxu0 %v3253
    %4401 = vmatpush.bf16.msra.mxu0 %v3247
    %4402 = vmatmul.bf16.gmra.mxu0 %v486
    %v4403 = vpop.f32.mrf.mxu0
    %v4404 = vadd.f32 %v4391, %v4403
    %v4405 = vpop.f32.mrf.mxu0
    %4406 = vdwg.mxu0
    %4407 = vmatpush.bf16.msra.mxu0 %v3337
    %4408 = vmatpush.bf16.msra.mxu0 %v3331
    %4409 = vmatpush.bf16.msra.mxu0 %v3325
    %4410 = vmatpush.bf16.msra.mxu0 %v3319
    %4411 = vmatpush.bf16.msra.mxu0 %v3313
    %4412 = vmatpush.bf16.msra.mxu0 %v3307
    %4413 = vmatpush.bf16.msra.mxu0 %v3301
    %4414 = vmatpush.bf16.msra.mxu0 %v3295
    %4415 = vmatmul.bf16.gmra.mxu0 %v487
    %v4416 = vpop.f32.mrf.mxu0
    %v4417 = vadd.f32 %v4404, %v4416
    %v4418 = vpop.f32.mrf.mxu0
    %4419 = vdwg.mxu0
    %4420 = vmatpush.bf16.msra.mxu0 %v3385
    %4421 = vmatpush.bf16.msra.mxu0 %v3379
    %4422 = vmatpush.bf16.msra.mxu0 %v3373
    %4423 = vmatpush.bf16.msra.mxu0 %v3367
    %4424 = vmatpush.bf16.msra.mxu0 %v3361
    %4425 = vmatpush.bf16.msra.mxu0 %v3355
    %4426 = vmatpush.bf16.msra.mxu0 %v3349
    %4427 = vmatpush.bf16.msra.mxu0 %v3343
    %4428 = vmatmul.bf16.gmra.mxu0 %v488
    %v4429 = vpop.f32.mrf.mxu0
    %v4430 = vadd.f32 %v4417, %v4429
    %v4431 = vpop.f32.mrf.mxu0
    %4432 = vdwg.mxu0
    %4433 = vmatpush.bf16.msra.mxu0 %v2858
    %4434 = vmatpush.bf16.msra.mxu0 %v2852
    %4435 = vmatpush.bf16.msra.mxu0 %v2846
    %4436 = vmatpush.bf16.msra.mxu0 %v2840
    %4437 = vmatpush.bf16.msra.mxu0 %v2834
    %4438 = vmatpush.bf16.msra.mxu0 %v2828
    %4439 = vmatpush.bf16.msra.mxu0 %v2822
    %4440 = vmatpush.bf16.msra.mxu0 %v2816
    %4441 = vmatmul.bf16.gmra.mxu0 %v462
    %v4442 = vpop.f32.mrf.mxu0
    %v4443 = vadd.f32 %v1076, %v4442
    %v4444 = vpop.f32.mrf.mxu0
    %4445 = vdwg.mxu0
    %4446 = vmatpush.bf16.msra.mxu0 %v2906
    %4447 = vmatpush.bf16.msra.mxu0 %v2900
    %4448 = vmatpush.bf16.msra.mxu0 %v2894
    %4449 = vmatpush.bf16.msra.mxu0 %v2888
    %4450 = vmatpush.bf16.msra.mxu0 %v2882
    %4451 = vmatpush.bf16.msra.mxu0 %v2876
    %4452 = vmatpush.bf16.msra.mxu0 %v2870
    %4453 = vmatpush.bf16.msra.mxu0 %v2864
    %4454 = vmatmul.bf16.gmra.mxu0 %v463
    %v4455 = vpop.f32.mrf.mxu0
    %v4456 = vadd.f32 %v4443, %v4455
    %v4457 = vpop.f32.mrf.mxu0
    %4458 = vdwg.mxu0
    %4459 = vmatpush.bf16.msra.mxu0 %v2954
    %4460 = vmatpush.bf16.msra.mxu0 %v2948
    %4461 = vmatpush.bf16.msra.mxu0 %v2942
    %4462 = vmatpush.bf16.msra.mxu0 %v2936
    %4463 = vmatpush.bf16.msra.mxu0 %v2930
    %4464 = vmatpush.bf16.msra.mxu0 %v2924
    %4465 = vmatpush.bf16.msra.mxu0 %v2918
    %4466 = vmatpush.bf16.msra.mxu0 %v2912
    %4467 = vmatmul.bf16.gmra.mxu0 %v464
    %v4468 = vpop.f32.mrf.mxu0
    %v4469 = vadd.f32 %v4456, %v4468
    %v4470 = vpop.f32.mrf.mxu0
    %4471 = vdwg.mxu0
    %4472 = vmatpush.bf16.msra.mxu0 %v3002
    %4473 = vmatpush.bf16.msra.mxu0 %v2996
    %4474 = vmatpush.bf16.msra.mxu0 %v2990
    %4475 = vmatpush.bf16.msra.mxu0 %v2984
    %4476 = vmatpush.bf16.msra.mxu0 %v2978
    %4477 = vmatpush.bf16.msra.mxu0 %v2972
    %4478 = vmatpush.bf16.msra.mxu0 %v2966
    %4479 = vmatpush.bf16.msra.mxu0 %v2960
    %4480 = vmatmul.bf16.gmra.mxu0 %v465
    %v4481 = vpop.f32.mrf.mxu0
    %v4482 = vadd.f32 %v4469, %v4481
    %v4483 = vpop.f32.mrf.mxu0
    %4484 = vdwg.mxu0
    %4485 = vmatpush.bf16.msra.mxu0 %v3050
    %4486 = vmatpush.bf16.msra.mxu0 %v3044
    %4487 = vmatpush.bf16.msra.mxu0 %v3038
    %4488 = vmatpush.bf16.msra.mxu0 %v3032
    %4489 = vmatpush.bf16.msra.mxu0 %v3026
    %4490 = vmatpush.bf16.msra.mxu0 %v3020
    %4491 = vmatpush.bf16.msra.mxu0 %v3014
    %4492 = vmatpush.bf16.msra.mxu0 %v3008
    %4493 = vmatmul.bf16.gmra.mxu0 %v466
    %v4494 = vpop.f32.mrf.mxu0
    %v4495 = vadd.f32 %v4482, %v4494
    %v4496 = vpop.f32.mrf.mxu0
    %4497 = vdwg.mxu0
    %4498 = vmatpush.bf16.msra.mxu0 %v3098
    %4499 = vmatpush.bf16.msra.mxu0 %v3092
    %4500 = vmatpush.bf16.msra.mxu0 %v3086
    %4501 = vmatpush.bf16.msra.mxu0 %v3080
    %4502 = vmatpush.bf16.msra.mxu0 %v3074
    %4503 = vmatpush.bf16.msra.mxu0 %v3068
    %4504 = vmatpush.bf16.msra.mxu0 %v3062
    %4505 = vmatpush.bf16.msra.mxu0 %v3056
    %4506 = vmatmul.bf16.gmra.mxu0 %v467
    %v4507 = vpop.f32.mrf.mxu0
    %v4508 = vadd.f32 %v4495, %v4507
    %v4509 = vpop.f32.mrf.mxu0
    %4510 = vdwg.mxu0
    %4511 = vmatpush.bf16.msra.mxu0 %v3146
    %4512 = vmatpush.bf16.msra.mxu0 %v3140
    %4513 = vmatpush.bf16.msra.mxu0 %v3134
    %4514 = vmatpush.bf16.msra.mxu0 %v3128
    %4515 = vmatpush.bf16.msra.mxu0 %v3122
    %4516 = vmatpush.bf16.msra.mxu0 %v3116
    %4517 = vmatpush.bf16.msra.mxu0 %v3110
    %4518 = vmatpush.bf16.msra.mxu0 %v3104
    %4519 = vmatmul.bf16.gmra.mxu0 %v483
    %v4520 = vpop.f32.mrf.mxu0
    %v4521 = vadd.f32 %v4508, %v4520
    %v4522 = vpop.f32.mrf.mxu0
    %4523 = vdwg.mxu0
    %4524 = vmatpush.bf16.msra.mxu0 %v3194
    %4525 = vmatpush.bf16.msra.mxu0 %v3188
    %4526 = vmatpush.bf16.msra.mxu0 %v3182
    %4527 = vmatpush.bf16.msra.mxu0 %v3176
    %4528 = vmatpush.bf16.msra.mxu0 %v3170
    %4529 = vmatpush.bf16.msra.mxu0 %v3164
    %4530 = vmatpush.bf16.msra.mxu0 %v3158
    %4531 = vmatpush.bf16.msra.mxu0 %v3152
    %4532 = vmatmul.bf16.gmra.mxu0 %v484
    %v4533 = vpop.f32.mrf.mxu0
    %v4534 = vadd.f32 %v4521, %v4533
    %v4535 = vpop.f32.mrf.mxu0
    %4536 = vdwg.mxu0
    %4537 = vmatpush.bf16.msra.mxu0 %v3242
    %4538 = vmatpush.bf16.msra.mxu0 %v3236
    %4539 = vmatpush.bf16.msra.mxu0 %v3230
    %4540 = vmatpush.bf16.msra.mxu0 %v3224
    %4541 = vmatpush.bf16.msra.mxu0 %v3218
    %4542 = vmatpush.bf16.msra.mxu0 %v3212
    %4543 = vmatpush.bf16.msra.mxu0 %v3206
    %4544 = vmatpush.bf16.msra.mxu0 %v3200
    %4545 = vmatmul.bf16.gmra.mxu0 %v485
    %v4546 = vpop.f32.mrf.mxu0
    %v4547 = vadd.f32 %v4534, %v4546
    %v4548 = vpop.f32.mrf.mxu0
    %4549 = vdwg.mxu0
    %4550 = vmatpush.bf16.msra.mxu0 %v3290
    %4551 = vmatpush.bf16.msra.mxu0 %v3284
    %4552 = vmatpush.bf16.msra.mxu0 %v3278
    %4553 = vmatpush.bf16.msra.mxu0 %v3272
    %4554 = vmatpush.bf16.msra.mxu0 %v3266
    %4555 = vmatpush.bf16.msra.mxu0 %v3260
    %4556 = vmatpush.bf16.msra.mxu0 %v3254
    %4557 = vmatpush.bf16.msra.mxu0 %v3248
    %4558 = vmatmul.bf16.gmra.mxu0 %v486
    %v4559 = vpop.f32.mrf.mxu0
    %v4560 = vadd.f32 %v4547, %v4559
    %v4561 = vpop.f32.mrf.mxu0
    %4562 = vdwg.mxu0
    %4563 = vmatpush.bf16.msra.mxu0 %v3338
    %4564 = vmatpush.bf16.msra.mxu0 %v3332
    %4565 = vmatpush.bf16.msra.mxu0 %v3326
    %4566 = vmatpush.bf16.msra.mxu0 %v3320
    %4567 = vmatpush.bf16.msra.mxu0 %v3314
    %4568 = vmatpush.bf16.msra.mxu0 %v3308
    %4569 = vmatpush.bf16.msra.mxu0 %v3302
    %4570 = vmatpush.bf16.msra.mxu0 %v3296
    %4571 = vmatmul.bf16.gmra.mxu0 %v487
    %v4572 = vpop.f32.mrf.mxu0
    %v4573 = vadd.f32 %v4560, %v4572
    %v4574 = vpop.f32.mrf.mxu0
    %4575 = vdwg.mxu0
    %4576 = vmatpush.bf16.msra.mxu0 %v3386
    %4577 = vmatpush.bf16.msra.mxu0 %v3380
    %4578 = vmatpush.bf16.msra.mxu0 %v3374
    %4579 = vmatpush.bf16.msra.mxu0 %v3368
    %4580 = vmatpush.bf16.msra.mxu0 %v3362
    %4581 = vmatpush.bf16.msra.mxu0 %v3356
    %4582 = vmatpush.bf16.msra.mxu0 %v3350
    %4583 = vmatpush.bf16.msra.mxu0 %v3344
    %4584 = vmatmul.bf16.gmra.mxu0 %v488
    %v4585 = vpop.f32.mrf.mxu0
    %v4586 = vadd.f32 %v4573, %v4585
    %v4587 = vpop.f32.mrf.mxu0
    %4588 = vdwg.mxu0
    %4589 = vmatpush.bf16.msra.mxu0 %v2859
    %4590 = vmatpush.bf16.msra.mxu0 %v2853
    %4591 = vmatpush.bf16.msra.mxu0 %v2847
    %4592 = vmatpush.bf16.msra.mxu0 %v2841
    %4593 = vmatpush.bf16.msra.mxu0 %v2835
    %4594 = vmatpush.bf16.msra.mxu0 %v2829
    %4595 = vmatpush.bf16.msra.mxu0 %v2823
    %4596 = vmatpush.bf16.msra.mxu0 %v2817
    %4597 = vmatmul.bf16.gmra.mxu0 %v462
    %v4598 = vpop.f32.mrf.mxu0
    %v4599 = vadd.f32 %v1077, %v4598
    %v4600 = vpop.f32.mrf.mxu0
    %4601 = vdwg.mxu0
    %4602 = vmatpush.bf16.msra.mxu0 %v2907
    %4603 = vmatpush.bf16.msra.mxu0 %v2901
    %4604 = vmatpush.bf16.msra.mxu0 %v2895
    %4605 = vmatpush.bf16.msra.mxu0 %v2889
    %4606 = vmatpush.bf16.msra.mxu0 %v2883
    %4607 = vmatpush.bf16.msra.mxu0 %v2877
    %4608 = vmatpush.bf16.msra.mxu0 %v2871
    %4609 = vmatpush.bf16.msra.mxu0 %v2865
    %4610 = vmatmul.bf16.gmra.mxu0 %v463
    %v4611 = vpop.f32.mrf.mxu0
    %v4612 = vadd.f32 %v4599, %v4611
    %v4613 = vpop.f32.mrf.mxu0
    %4614 = vdwg.mxu0
    %4615 = vmatpush.bf16.msra.mxu0 %v2955
    %4616 = vmatpush.bf16.msra.mxu0 %v2949
    %4617 = vmatpush.bf16.msra.mxu0 %v2943
    %4618 = vmatpush.bf16.msra.mxu0 %v2937
    %4619 = vmatpush.bf16.msra.mxu0 %v2931
    %4620 = vmatpush.bf16.msra.mxu0 %v2925
    %4621 = vmatpush.bf16.msra.mxu0 %v2919
    %4622 = vmatpush.bf16.msra.mxu0 %v2913
    %4623 = vmatmul.bf16.gmra.mxu0 %v464
    %v4624 = vpop.f32.mrf.mxu0
    %v4625 = vadd.f32 %v4612, %v4624
    %v4626 = vpop.f32.mrf.mxu0
    %4627 = vdwg.mxu0
    %4628 = vmatpush.bf16.msra.mxu0 %v3003
    %4629 = vmatpush.bf16.msra.mxu0 %v2997
    %4630 = vmatpush.bf16.msra.mxu0 %v2991
    %4631 = vmatpush.bf16.msra.mxu0 %v2985
    %4632 = vmatpush.bf16.msra.mxu0 %v2979
    %4633 = vmatpush.bf16.msra.mxu0 %v2973
    %4634 = vmatpush.bf16.msra.mxu0 %v2967
    %4635 = vmatpush.bf16.msra.mxu0 %v2961
    %4636 = vmatmul.bf16.gmra.mxu0 %v465
    %v4637 = vpop.f32.mrf.mxu0
    %v4638 = vadd.f32 %v4625, %v4637
    %v4639 = vpop.f32.mrf.mxu0
    %4640 = vdwg.mxu0
    %4641 = vmatpush.bf16.msra.mxu0 %v3051
    %4642 = vmatpush.bf16.msra.mxu0 %v3045
    %4643 = vmatpush.bf16.msra.mxu0 %v3039
    %4644 = vmatpush.bf16.msra.mxu0 %v3033
    %4645 = vmatpush.bf16.msra.mxu0 %v3027
    %4646 = vmatpush.bf16.msra.mxu0 %v3021
    %4647 = vmatpush.bf16.msra.mxu0 %v3015
    %4648 = vmatpush.bf16.msra.mxu0 %v3009
    %4649 = vmatmul.bf16.gmra.mxu0 %v466
    %v4650 = vpop.f32.mrf.mxu0
    %v4651 = vadd.f32 %v4638, %v4650
    %v4652 = vpop.f32.mrf.mxu0
    %4653 = vdwg.mxu0
    %4654 = vmatpush.bf16.msra.mxu0 %v3099
    %4655 = vmatpush.bf16.msra.mxu0 %v3093
    %4656 = vmatpush.bf16.msra.mxu0 %v3087
    %4657 = vmatpush.bf16.msra.mxu0 %v3081
    %4658 = vmatpush.bf16.msra.mxu0 %v3075
    %4659 = vmatpush.bf16.msra.mxu0 %v3069
    %4660 = vmatpush.bf16.msra.mxu0 %v3063
    %4661 = vmatpush.bf16.msra.mxu0 %v3057
    %4662 = vmatmul.bf16.gmra.mxu0 %v467
    %v4663 = vpop.f32.mrf.mxu0
    %v4664 = vadd.f32 %v4651, %v4663
    %v4665 = vpop.f32.mrf.mxu0
    %4666 = vdwg.mxu0
    %4667 = vmatpush.bf16.msra.mxu0 %v3147
    %4668 = vmatpush.bf16.msra.mxu0 %v3141
    %4669 = vmatpush.bf16.msra.mxu0 %v3135
    %4670 = vmatpush.bf16.msra.mxu0 %v3129
    %4671 = vmatpush.bf16.msra.mxu0 %v3123
    %4672 = vmatpush.bf16.msra.mxu0 %v3117
    %4673 = vmatpush.bf16.msra.mxu0 %v3111
    %4674 = vmatpush.bf16.msra.mxu0 %v3105
    %4675 = vmatmul.bf16.gmra.mxu0 %v483
    %v4676 = vpop.f32.mrf.mxu0
    %v4677 = vadd.f32 %v4664, %v4676
    %v4678 = vpop.f32.mrf.mxu0
    %4679 = vdwg.mxu0
    %4680 = vmatpush.bf16.msra.mxu0 %v3195
    %4681 = vmatpush.bf16.msra.mxu0 %v3189
    %4682 = vmatpush.bf16.msra.mxu0 %v3183
    %4683 = vmatpush.bf16.msra.mxu0 %v3177
    %4684 = vmatpush.bf16.msra.mxu0 %v3171
    %4685 = vmatpush.bf16.msra.mxu0 %v3165
    %4686 = vmatpush.bf16.msra.mxu0 %v3159
    %4687 = vmatpush.bf16.msra.mxu0 %v3153
    %4688 = vmatmul.bf16.gmra.mxu0 %v484
    %v4689 = vpop.f32.mrf.mxu0
    %v4690 = vadd.f32 %v4677, %v4689
    %v4691 = vpop.f32.mrf.mxu0
    %4692 = vdwg.mxu0
    %4693 = vmatpush.bf16.msra.mxu0 %v3243
    %4694 = vmatpush.bf16.msra.mxu0 %v3237
    %4695 = vmatpush.bf16.msra.mxu0 %v3231
    %4696 = vmatpush.bf16.msra.mxu0 %v3225
    %4697 = vmatpush.bf16.msra.mxu0 %v3219
    %4698 = vmatpush.bf16.msra.mxu0 %v3213
    %4699 = vmatpush.bf16.msra.mxu0 %v3207
    %4700 = vmatpush.bf16.msra.mxu0 %v3201
    %4701 = vmatmul.bf16.gmra.mxu0 %v485
    %v4702 = vpop.f32.mrf.mxu0
    %v4703 = vadd.f32 %v4690, %v4702
    %v4704 = vpop.f32.mrf.mxu0
    %4705 = vdwg.mxu0
    %4706 = vmatpush.bf16.msra.mxu0 %v3291
    %4707 = vmatpush.bf16.msra.mxu0 %v3285
    %4708 = vmatpush.bf16.msra.mxu0 %v3279
    %4709 = vmatpush.bf16.msra.mxu0 %v3273
    %4710 = vmatpush.bf16.msra.mxu0 %v3267
    %4711 = vmatpush.bf16.msra.mxu0 %v3261
    %4712 = vmatpush.bf16.msra.mxu0 %v3255
    %4713 = vmatpush.bf16.msra.mxu0 %v3249
    %4714 = vmatmul.bf16.gmra.mxu0 %v486
    %v4715 = vpop.f32.mrf.mxu0
    %v4716 = vadd.f32 %v4703, %v4715
    %v4717 = vpop.f32.mrf.mxu0
    %4718 = vdwg.mxu0
    %4719 = vmatpush.bf16.msra.mxu0 %v3339
    %4720 = vmatpush.bf16.msra.mxu0 %v3333
    %4721 = vmatpush.bf16.msra.mxu0 %v3327
    %4722 = vmatpush.bf16.msra.mxu0 %v3321
    %4723 = vmatpush.bf16.msra.mxu0 %v3315
    %4724 = vmatpush.bf16.msra.mxu0 %v3309
    %4725 = vmatpush.bf16.msra.mxu0 %v3303
    %4726 = vmatpush.bf16.msra.mxu0 %v3297
    %4727 = vmatmul.bf16.gmra.mxu0 %v487
    %v4728 = vpop.f32.mrf.mxu0
    %v4729 = vadd.f32 %v4716, %v4728
    %v4730 = vpop.f32.mrf.mxu0
    %4731 = vdwg.mxu0
    %4732 = vmatpush.bf16.msra.mxu0 %v3387
    %4733 = vmatpush.bf16.msra.mxu0 %v3381
    %4734 = vmatpush.bf16.msra.mxu0 %v3375
    %4735 = vmatpush.bf16.msra.mxu0 %v3369
    %4736 = vmatpush.bf16.msra.mxu0 %v3363
    %4737 = vmatpush.bf16.msra.mxu0 %v3357
    %4738 = vmatpush.bf16.msra.mxu0 %v3351
    %4739 = vmatpush.bf16.msra.mxu0 %v3345
    %4740 = vmatmul.bf16.gmra.mxu0 %v488
    %v4741 = vpop.f32.mrf.mxu0
    %v4742 = vadd.f32 %v4729, %v4741
    %v4743 = vpop.f32.mrf.mxu0
    %4744 = vdwg.mxu0
    %4745 = vmatpush.bf16.msra.mxu0 %v2860
    %4746 = vmatpush.bf16.msra.mxu0 %v2854
    %4747 = vmatpush.bf16.msra.mxu0 %v2848
    %4748 = vmatpush.bf16.msra.mxu0 %v2842
    %4749 = vmatpush.bf16.msra.mxu0 %v2836
    %4750 = vmatpush.bf16.msra.mxu0 %v2830
    %4751 = vmatpush.bf16.msra.mxu0 %v2824
    %4752 = vmatpush.bf16.msra.mxu0 %v2818
    %4753 = vmatmul.bf16.gmra.mxu0 %v462
    %v4754 = vpop.f32.mrf.mxu0
    %v4755 = vadd.f32 %v1078, %v4754
    %v4756 = vpop.f32.mrf.mxu0
    %4757 = vdwg.mxu0
    %4758 = vmatpush.bf16.msra.mxu0 %v2908
    %4759 = vmatpush.bf16.msra.mxu0 %v2902
    %4760 = vmatpush.bf16.msra.mxu0 %v2896
    %4761 = vmatpush.bf16.msra.mxu0 %v2890
    %4762 = vmatpush.bf16.msra.mxu0 %v2884
    %4763 = vmatpush.bf16.msra.mxu0 %v2878
    %4764 = vmatpush.bf16.msra.mxu0 %v2872
    %4765 = vmatpush.bf16.msra.mxu0 %v2866
    %4766 = vmatmul.bf16.gmra.mxu0 %v463
    %v4767 = vpop.f32.mrf.mxu0
    %v4768 = vadd.f32 %v4755, %v4767
    %v4769 = vpop.f32.mrf.mxu0
    %4770 = vdwg.mxu0
    %4771 = vmatpush.bf16.msra.mxu0 %v2956
    %4772 = vmatpush.bf16.msra.mxu0 %v2950
    %4773 = vmatpush.bf16.msra.mxu0 %v2944
    %4774 = vmatpush.bf16.msra.mxu0 %v2938
    %4775 = vmatpush.bf16.msra.mxu0 %v2932
    %4776 = vmatpush.bf16.msra.mxu0 %v2926
    %4777 = vmatpush.bf16.msra.mxu0 %v2920
    %4778 = vmatpush.bf16.msra.mxu0 %v2914
    %4779 = vmatmul.bf16.gmra.mxu0 %v464
    %v4780 = vpop.f32.mrf.mxu0
    %v4781 = vadd.f32 %v4768, %v4780
    %v4782 = vpop.f32.mrf.mxu0
    %4783 = vdwg.mxu0
    %4784 = vmatpush.bf16.msra.mxu0 %v3004
    %4785 = vmatpush.bf16.msra.mxu0 %v2998
    %4786 = vmatpush.bf16.msra.mxu0 %v2992
    %4787 = vmatpush.bf16.msra.mxu0 %v2986
    %4788 = vmatpush.bf16.msra.mxu0 %v2980
    %4789 = vmatpush.bf16.msra.mxu0 %v2974
    %4790 = vmatpush.bf16.msra.mxu0 %v2968
    %4791 = vmatpush.bf16.msra.mxu0 %v2962
    %4792 = vmatmul.bf16.gmra.mxu0 %v465
    %v4793 = vpop.f32.mrf.mxu0
    %v4794 = vadd.f32 %v4781, %v4793
    %v4795 = vpop.f32.mrf.mxu0
    %4796 = vdwg.mxu0
    %4797 = vmatpush.bf16.msra.mxu0 %v3052
    %4798 = vmatpush.bf16.msra.mxu0 %v3046
    %4799 = vmatpush.bf16.msra.mxu0 %v3040
    %4800 = vmatpush.bf16.msra.mxu0 %v3034
    %4801 = vmatpush.bf16.msra.mxu0 %v3028
    %4802 = vmatpush.bf16.msra.mxu0 %v3022
    %4803 = vmatpush.bf16.msra.mxu0 %v3016
    %4804 = vmatpush.bf16.msra.mxu0 %v3010
    %4805 = vmatmul.bf16.gmra.mxu0 %v466
    %v4806 = vpop.f32.mrf.mxu0
    %v4807 = vadd.f32 %v4794, %v4806
    %v4808 = vpop.f32.mrf.mxu0
    %4809 = vdwg.mxu0
    %4810 = vmatpush.bf16.msra.mxu0 %v3100
    %4811 = vmatpush.bf16.msra.mxu0 %v3094
    %4812 = vmatpush.bf16.msra.mxu0 %v3088
    %4813 = vmatpush.bf16.msra.mxu0 %v3082
    %4814 = vmatpush.bf16.msra.mxu0 %v3076
    %4815 = vmatpush.bf16.msra.mxu0 %v3070
    %4816 = vmatpush.bf16.msra.mxu0 %v3064
    %4817 = vmatpush.bf16.msra.mxu0 %v3058
    %4818 = vmatmul.bf16.gmra.mxu0 %v467
    %v4819 = vpop.f32.mrf.mxu0
    %v4820 = vadd.f32 %v4807, %v4819
    %v4821 = vpop.f32.mrf.mxu0
    %4822 = vdwg.mxu0
    %4823 = vmatpush.bf16.msra.mxu0 %v3148
    %4824 = vmatpush.bf16.msra.mxu0 %v3142
    %4825 = vmatpush.bf16.msra.mxu0 %v3136
    %4826 = vmatpush.bf16.msra.mxu0 %v3130
    %4827 = vmatpush.bf16.msra.mxu0 %v3124
    %4828 = vmatpush.bf16.msra.mxu0 %v3118
    %4829 = vmatpush.bf16.msra.mxu0 %v3112
    %4830 = vmatpush.bf16.msra.mxu0 %v3106
    %4831 = vmatmul.bf16.gmra.mxu0 %v483
    %v4832 = vpop.f32.mrf.mxu0
    %v4833 = vadd.f32 %v4820, %v4832
    %v4834 = vpop.f32.mrf.mxu0
    %4835 = vdwg.mxu0
    %4836 = vmatpush.bf16.msra.mxu0 %v3196
    %4837 = vmatpush.bf16.msra.mxu0 %v3190
    %4838 = vmatpush.bf16.msra.mxu0 %v3184
    %4839 = vmatpush.bf16.msra.mxu0 %v3178
    %4840 = vmatpush.bf16.msra.mxu0 %v3172
    %4841 = vmatpush.bf16.msra.mxu0 %v3166
    %4842 = vmatpush.bf16.msra.mxu0 %v3160
    %4843 = vmatpush.bf16.msra.mxu0 %v3154
    %4844 = vmatmul.bf16.gmra.mxu0 %v484
    %v4845 = vpop.f32.mrf.mxu0
    %v4846 = vadd.f32 %v4833, %v4845
    %v4847 = vpop.f32.mrf.mxu0
    %4848 = vdwg.mxu0
    %4849 = vmatpush.bf16.msra.mxu0 %v3244
    %4850 = vmatpush.bf16.msra.mxu0 %v3238
    %4851 = vmatpush.bf16.msra.mxu0 %v3232
    %4852 = vmatpush.bf16.msra.mxu0 %v3226
    %4853 = vmatpush.bf16.msra.mxu0 %v3220
    %4854 = vmatpush.bf16.msra.mxu0 %v3214
    %4855 = vmatpush.bf16.msra.mxu0 %v3208
    %4856 = vmatpush.bf16.msra.mxu0 %v3202
    %4857 = vmatmul.bf16.gmra.mxu0 %v485
    %v4858 = vpop.f32.mrf.mxu0
    %v4859 = vadd.f32 %v4846, %v4858
    %v4860 = vpop.f32.mrf.mxu0
    %4861 = vdwg.mxu0
    %4862 = vmatpush.bf16.msra.mxu0 %v3292
    %4863 = vmatpush.bf16.msra.mxu0 %v3286
    %4864 = vmatpush.bf16.msra.mxu0 %v3280
    %4865 = vmatpush.bf16.msra.mxu0 %v3274
    %4866 = vmatpush.bf16.msra.mxu0 %v3268
    %4867 = vmatpush.bf16.msra.mxu0 %v3262
    %4868 = vmatpush.bf16.msra.mxu0 %v3256
    %4869 = vmatpush.bf16.msra.mxu0 %v3250
    %4870 = vmatmul.bf16.gmra.mxu0 %v486
    %v4871 = vpop.f32.mrf.mxu0
    %v4872 = vadd.f32 %v4859, %v4871
    %v4873 = vpop.f32.mrf.mxu0
    %4874 = vdwg.mxu0
    %4875 = vmatpush.bf16.msra.mxu0 %v3340
    %4876 = vmatpush.bf16.msra.mxu0 %v3334
    %4877 = vmatpush.bf16.msra.mxu0 %v3328
    %4878 = vmatpush.bf16.msra.mxu0 %v3322
    %4879 = vmatpush.bf16.msra.mxu0 %v3316
    %4880 = vmatpush.bf16.msra.mxu0 %v3310
    %4881 = vmatpush.bf16.msra.mxu0 %v3304
    %4882 = vmatpush.bf16.msra.mxu0 %v3298
    %4883 = vmatmul.bf16.gmra.mxu0 %v487
    %v4884 = vpop.f32.mrf.mxu0
    %v4885 = vadd.f32 %v4872, %v4884
    %v4886 = vpop.f32.mrf.mxu0
    %4887 = vdwg.mxu0
    %4888 = vmatpush.bf16.msra.mxu0 %v3388
    %4889 = vmatpush.bf16.msra.mxu0 %v3382
    %4890 = vmatpush.bf16.msra.mxu0 %v3376
    %4891 = vmatpush.bf16.msra.mxu0 %v3370
    %4892 = vmatpush.bf16.msra.mxu0 %v3364
    %4893 = vmatpush.bf16.msra.mxu0 %v3358
    %4894 = vmatpush.bf16.msra.mxu0 %v3352
    %4895 = vmatpush.bf16.msra.mxu0 %v3346
    %4896 = vmatmul.bf16.gmra.mxu0 %v488
    %v4897 = vpop.f32.mrf.mxu0
    %v4898 = vadd.f32 %v4885, %v4897
    %v4899 = vpop.f32.mrf.mxu0
    %4900 = vdwg.mxu0
    %v4901 = vtanh.pop %v4118
    %v4902 = vtanh.pop %v4274
    %v4903 = vtanh.pop %v4430
    %v4904 = vtanh.pop %v4586
    %v4905 = vtanh.pop %v4742
    %v4906 = vtanh.pop %v4898
    %v4907 = vpack.c.bf16 %v4901, %v4901
    %v4908 = vpack.c.bf16 %v4902, %v4902
    %v4909 = vpack.c.bf16 %v4903, %v4903
    %v4910 = vpack.c.bf16 %v4904, %v4904
    %v4911 = vpack.c.bf16 %v4905, %v4905
    %v4912 = vpack.c.bf16 %v4906, %v4906
    %v4913 = vld [vmem:[#allocation10] sm:$0xf]
    %v4914 = vld [vmem:[#allocation10 + $0x4] sm:$0xf]
    %v4915 = vld [vmem:[#allocation10 + $0x8] sm:$0xf]
    %v4916 = vld [vmem:[#allocation10 + $0xc] sm:$0xf]
    %v4917 = vld [vmem:[#allocation10 + $0x10] sm:$0xf]
    %v4918 = vld [vmem:[#allocation10 + $0x14] sm:$0xf]
    %v4919 = vld [vmem:[#allocation10 + $0x18] sm:$0xf]
    %v4920 = vld [vmem:[#allocation10 + $0x1c] sm:$0xf]
    %v4921 = vld [vmem:[#allocation10 + $0x20] sm:$0xf]
    %v4922 = vld [vmem:[#allocation10 + $0x24] sm:$0xf]
    %v4923 = vld [vmem:[#allocation10 + $0x28] sm:$0xf]
    %v4924 = vld [vmem:[#allocation10 + $0x2c] sm:$0xf]
    %v4925 = vld [vmem:[#allocation10 + $0x30] sm:$0xf]
    %v4926 = vld [vmem:[#allocation10 + $0x34] sm:$0xf]
    %v4927 = vld [vmem:[#allocation10 + $0x38] sm:$0xf]
    %v4928 = vld [vmem:[#allocation10 + $0x3c] sm:$0xf]
    %v4929 = vld [vmem:[#allocation10 + $0x40] sm:$0xf]
    %v4930 = vld [vmem:[#allocation10 + $0x44] sm:$0xf]
    %v4931 = vld [vmem:[#allocation10 + $0x48] sm:$0xf]
    %v4932 = vld [vmem:[#allocation10 + $0x4c] sm:$0xf]
    %v4933 = vld [vmem:[#allocation10 + $0x50] sm:$0xf]
    %v4934 = vld [vmem:[#allocation10 + $0x54] sm:$0xf]
    %v4935 = vld [vmem:[#allocation10 + $0x58] sm:$0xf]
    %v4936 = vld [vmem:[#allocation10 + $0x5c] sm:$0xf]
    %v4937 = vld [vmem:[#allocation10 + $0x60] sm:$0xf]
    %v4938 = vld [vmem:[#allocation10 + $0x64] sm:$0xf]
    %v4939 = vld [vmem:[#allocation10 + $0x68] sm:$0xf]
    %v4940 = vld [vmem:[#allocation10 + $0x6c] sm:$0xf]
    %v4941 = vld [vmem:[#allocation10 + $0x70] sm:$0xf]
    %v4942 = vld [vmem:[#allocation10 + $0x74] sm:$0xf]
    %v4943 = vld [vmem:[#allocation10 + $0x78] sm:$0xf]
    %v4944 = vld [vmem:[#allocation10 + $0x7c] sm:$0xf]
    %v4945 = vld [vmem:[#allocation10 + $0x80] sm:$0xf]
    %v4946 = vld [vmem:[#allocation10 + $0x84] sm:$0xf]
    %v4947 = vld [vmem:[#allocation10 + $0x88] sm:$0xf]
    %v4948 = vld [vmem:[#allocation10 + $0x8c] sm:$0xf]
    %v4949 = vld [vmem:[#allocation10 + $0x90] sm:$0xf]
    %v4950 = vld [vmem:[#allocation10 + $0x94] sm:$0xf]
    %v4951 = vld [vmem:[#allocation10 + $0x98] sm:$0xf]
    %v4952 = vld [vmem:[#allocation10 + $0x9c] sm:$0xf]
    %v4953 = vld [vmem:[#allocation10 + $0xa0] sm:$0xf]
    %v4954 = vld [vmem:[#allocation10 + $0xa4] sm:$0xf]
    %v4955 = vld [vmem:[#allocation10 + $0xa8] sm:$0xf]
    %v4956 = vld [vmem:[#allocation10 + $0xac] sm:$0xf]
    %v4957 = vld [vmem:[#allocation10 + $0xb0] sm:$0xf]
    %v4958 = vld [vmem:[#allocation10 + $0xb4] sm:$0xf]
    %v4959 = vld [vmem:[#allocation10 + $0xb8] sm:$0xf]
    %v4960 = vld [vmem:[#allocation10 + $0xbc] sm:$0xf]
    %v4961 = vld [vmem:[#allocation10 + $0xc0] sm:$0xf]
    %v4962 = vld [vmem:[#allocation10 + $0xc4] sm:$0xf]
    %v4963 = vld [vmem:[#allocation10 + $0xc8] sm:$0xf]
    %v4964 = vld [vmem:[#allocation10 + $0xcc] sm:$0xf]
    %v4965 = vld [vmem:[#allocation10 + $0xd0] sm:$0xf]
    %v4966 = vld [vmem:[#allocation10 + $0xd4] sm:$0xf]
    %v4967 = vld [vmem:[#allocation10 + $0xd8] sm:$0xf]
    %v4968 = vld [vmem:[#allocation10 + $0xdc] sm:$0xf]
    %v4969 = vld [vmem:[#allocation10 + $0xe0] sm:$0xf]
    %v4970 = vld [vmem:[#allocation10 + $0xe4] sm:$0xf]
    %v4971 = vld [vmem:[#allocation10 + $0xe8] sm:$0xf]
    %v4972 = vld [vmem:[#allocation10 + $0xec] sm:$0xf]
    %v4973 = vld [vmem:[#allocation10 + $0xf0] sm:$0xf]
    %v4974 = vld [vmem:[#allocation10 + $0xf4] sm:$0xf]
    %v4975 = vld [vmem:[#allocation10 + $0xf8] sm:$0xf]
    %v4976 = vld [vmem:[#allocation10 + $0xfc] sm:$0xf]
    %v4977 = vld [vmem:[#allocation10 + $0x100] sm:$0xf]
    %v4978 = vld [vmem:[#allocation10 + $0x104] sm:$0xf]
    %v4979 = vld [vmem:[#allocation10 + $0x108] sm:$0xf]
    %v4980 = vld [vmem:[#allocation10 + $0x10c] sm:$0xf]
    %v4981 = vld [vmem:[#allocation10 + $0x110] sm:$0xf]
    %v4982 = vld [vmem:[#allocation10 + $0x114] sm:$0xf]
    %v4983 = vld [vmem:[#allocation10 + $0x118] sm:$0xf]
    %v4984 = vld [vmem:[#allocation10 + $0x11c] sm:$0xf]
    %v4985 = vld [vmem:[#allocation10 + $0x120] sm:$0xf]
    %v4986 = vld [vmem:[#allocation10 + $0x124] sm:$0xf]
    %v4987 = vld [vmem:[#allocation10 + $0x128] sm:$0xf]
    %v4988 = vld [vmem:[#allocation10 + $0x12c] sm:$0xf]
    %v4989 = vld [vmem:[#allocation10 + $0x130] sm:$0xf]
    %v4990 = vld [vmem:[#allocation10 + $0x134] sm:$0xf]
    %v4991 = vld [vmem:[#allocation10 + $0x138] sm:$0xf]
    %v4992 = vld [vmem:[#allocation10 + $0x13c] sm:$0xf]
    %v4993 = vld [vmem:[#allocation10 + $0x140] sm:$0xf]
    %v4994 = vld [vmem:[#allocation10 + $0x144] sm:$0xf]
    %v4995 = vld [vmem:[#allocation10 + $0x148] sm:$0xf]
    %v4996 = vld [vmem:[#allocation10 + $0x14c] sm:$0xf]
    %v4997 = vld [vmem:[#allocation10 + $0x150] sm:$0xf]
    %v4998 = vld [vmem:[#allocation10 + $0x154] sm:$0xf]
    %v4999 = vld [vmem:[#allocation10 + $0x158] sm:$0xf]
    %v5000 = vld [vmem:[#allocation10 + $0x15c] sm:$0xf]
    %v5001 = vld [vmem:[#allocation10 + $0x160] sm:$0xf]
    %v5002 = vld [vmem:[#allocation10 + $0x164] sm:$0xf]
    %v5003 = vld [vmem:[#allocation10 + $0x168] sm:$0xf]
    %v5004 = vld [vmem:[#allocation10 + $0x16c] sm:$0xf]
    %v5005 = vld [vmem:[#allocation10 + $0x170] sm:$0xf]
    %v5006 = vld [vmem:[#allocation10 + $0x174] sm:$0xf]
    %v5007 = vld [vmem:[#allocation10 + $0x178] sm:$0xf]
    %v5008 = vld [vmem:[#allocation10 + $0x17c] sm:$0xf]
    %v5009 = vld [vmem:[#allocation11] sm:$0x1]
    %v5011 = vperm.slane %v5009, 0
    %v5109 = vunpack.c.l.b16 %v4913
    %v5110 = vunpack.c.l.b16 %v4914
    %v5111 = vunpack.c.l.b16 %v4915
    %v5112 = vunpack.c.l.b16 %v4916
    %v5113 = vunpack.c.l.b16 %v4917
    %v5114 = vunpack.c.l.b16 %v4918
    %v5115 = vunpack.c.l.b16 %v4919
    %v5116 = vunpack.c.l.b16 %v4920
    %v5117 = vunpack.c.l.b16 %v4921
    %v5118 = vunpack.c.l.b16 %v4922
    %v5119 = vunpack.c.l.b16 %v4923
    %v5120 = vunpack.c.l.b16 %v4924
    %v5121 = vunpack.c.l.b16 %v4925
    %v5122 = vunpack.c.l.b16 %v4926
    %v5123 = vunpack.c.l.b16 %v4927
    %v5124 = vunpack.c.l.b16 %v4928
    %v5125 = vunpack.c.l.b16 %v4929
    %v5126 = vunpack.c.l.b16 %v4930
    %v5127 = vunpack.c.l.b16 %v4931
    %v5128 = vunpack.c.l.b16 %v4932
    %v5129 = vunpack.c.l.b16 %v4933
    %v5130 = vunpack.c.l.b16 %v4934
    %v5131 = vunpack.c.l.b16 %v4935
    %v5132 = vunpack.c.l.b16 %v4936
    %v5133 = vunpack.c.l.b16 %v4937
    %v5134 = vunpack.c.l.b16 %v4938
    %v5135 = vunpack.c.l.b16 %v4939
    %v5136 = vunpack.c.l.b16 %v4940
    %v5137 = vunpack.c.l.b16 %v4941
    %v5138 = vunpack.c.l.b16 %v4942
    %v5139 = vunpack.c.l.b16 %v4943
    %v5140 = vunpack.c.l.b16 %v4944
    %v5141 = vunpack.c.l.b16 %v4945
    %v5142 = vunpack.c.l.b16 %v4946
    %v5143 = vunpack.c.l.b16 %v4947
    %v5144 = vunpack.c.l.b16 %v4948
    %v5145 = vunpack.c.l.b16 %v4949
    %v5146 = vunpack.c.l.b16 %v4950
    %v5147 = vunpack.c.l.b16 %v4951
    %v5148 = vunpack.c.l.b16 %v4952
    %v5149 = vunpack.c.l.b16 %v4953
    %v5150 = vunpack.c.l.b16 %v4954
    %v5151 = vunpack.c.l.b16 %v4955
    %v5152 = vunpack.c.l.b16 %v4956
    %v5153 = vunpack.c.l.b16 %v4957
    %v5154 = vunpack.c.l.b16 %v4958
    %v5155 = vunpack.c.l.b16 %v4959
    %v5156 = vunpack.c.l.b16 %v4960
    %v5157 = vunpack.c.l.b16 %v4961
    %v5158 = vunpack.c.l.b16 %v4962
    %v5159 = vunpack.c.l.b16 %v4963
    %v5160 = vunpack.c.l.b16 %v4964
    %v5161 = vunpack.c.l.b16 %v4965
    %v5162 = vunpack.c.l.b16 %v4966
    %v5163 = vunpack.c.l.b16 %v4967
    %v5164 = vunpack.c.l.b16 %v4968
    %v5165 = vunpack.c.l.b16 %v4969
    %v5166 = vunpack.c.l.b16 %v4970
    %v5167 = vunpack.c.l.b16 %v4971
    %v5168 = vunpack.c.l.b16 %v4972
    %v5169 = vunpack.c.l.b16 %v4973
    %v5170 = vunpack.c.l.b16 %v4974
    %v5171 = vunpack.c.l.b16 %v4975
    %v5172 = vunpack.c.l.b16 %v4976
    %v5173 = vunpack.c.l.b16 %v4977
    %v5174 = vunpack.c.l.b16 %v4978
    %v5175 = vunpack.c.l.b16 %v4979
    %v5176 = vunpack.c.l.b16 %v4980
    %v5177 = vunpack.c.l.b16 %v4981
    %v5178 = vunpack.c.l.b16 %v4982
    %v5179 = vunpack.c.l.b16 %v4983
    %v5180 = vunpack.c.l.b16 %v4984
    %v5181 = vunpack.c.l.b16 %v4985
    %v5182 = vunpack.c.l.b16 %v4986
    %v5183 = vunpack.c.l.b16 %v4987
    %v5184 = vunpack.c.l.b16 %v4988
    %v5185 = vunpack.c.l.b16 %v4989
    %v5186 = vunpack.c.l.b16 %v4990
    %v5187 = vunpack.c.l.b16 %v4991
    %v5188 = vunpack.c.l.b16 %v4992
    %v5189 = vunpack.c.l.b16 %v4993
    %v5190 = vunpack.c.l.b16 %v4994
    %v5191 = vunpack.c.l.b16 %v4995
    %v5192 = vunpack.c.l.b16 %v4996
    %v5193 = vunpack.c.l.b16 %v4997
    %v5194 = vunpack.c.l.b16 %v4998
    %v5195 = vunpack.c.l.b16 %v4999
    %v5196 = vunpack.c.l.b16 %v5000
    %v5197 = vunpack.c.l.b16 %v5001
    %v5198 = vunpack.c.l.b16 %v5002
    %v5199 = vunpack.c.l.b16 %v5003
    %v5200 = vunpack.c.l.b16 %v5004
    %v5201 = vunpack.c.l.b16 %v5005
    %v5202 = vunpack.c.l.b16 %v5006
    %v5203 = vunpack.c.l.b16 %v5007
    %v5204 = vunpack.c.l.b16 %v5008
    %v5205 = vpack.c.b16 %v5110, %v5109
    %v5206 = vpack.c.b16 %v5112, %v5111
    %v5207 = vpack.c.b16 %v5114, %v5113
    %v5208 = vpack.c.b16 %v5116, %v5115
    %v5209 = vpack.c.b16 %v5118, %v5117
    %v5210 = vpack.c.b16 %v5120, %v5119
    %v5211 = vpack.c.b16 %v5122, %v5121
    %v5212 = vpack.c.b16 %v5124, %v5123
    %v5213 = vpack.c.b16 %v5126, %v5125
    %v5214 = vpack.c.b16 %v5128, %v5127
    %v5215 = vpack.c.b16 %v5130, %v5129
    %v5216 = vpack.c.b16 %v5132, %v5131
    %v5217 = vpack.c.b16 %v5134, %v5133
    %v5218 = vpack.c.b16 %v5136, %v5135
    %v5219 = vpack.c.b16 %v5138, %v5137
    %v5220 = vpack.c.b16 %v5140, %v5139
    %v5221 = vpack.c.b16 %v5142, %v5141
    %v5222 = vpack.c.b16 %v5144, %v5143
    %v5223 = vpack.c.b16 %v5146, %v5145
    %v5224 = vpack.c.b16 %v5148, %v5147
    %v5225 = vpack.c.b16 %v5150, %v5149
    %v5226 = vpack.c.b16 %v5152, %v5151
    %v5227 = vpack.c.b16 %v5154, %v5153
    %v5228 = vpack.c.b16 %v5156, %v5155
    %v5229 = vpack.c.b16 %v5158, %v5157
    %v5230 = vpack.c.b16 %v5160, %v5159
    %v5231 = vpack.c.b16 %v5162, %v5161
    %v5232 = vpack.c.b16 %v5164, %v5163
    %v5233 = vpack.c.b16 %v5166, %v5165
    %v5234 = vpack.c.b16 %v5168, %v5167
    %v5235 = vpack.c.b16 %v5170, %v5169
    %v5236 = vpack.c.b16 %v5172, %v5171
    %v5237 = vpack.c.b16 %v5174, %v5173
    %v5238 = vpack.c.b16 %v5176, %v5175
    %v5239 = vpack.c.b16 %v5178, %v5177
    %v5240 = vpack.c.b16 %v5180, %v5179
    %v5241 = vpack.c.b16 %v5182, %v5181
    %v5242 = vpack.c.b16 %v5184, %v5183
    %v5243 = vpack.c.b16 %v5186, %v5185
    %v5244 = vpack.c.b16 %v5188, %v5187
    %v5245 = vpack.c.b16 %v5190, %v5189
    %v5246 = vpack.c.b16 %v5192, %v5191
    %v5247 = vpack.c.b16 %v5194, %v5193
    %v5248 = vpack.c.b16 %v5196, %v5195
    %v5249 = vpack.c.b16 %v5198, %v5197
    %v5250 = vpack.c.b16 %v5200, %v5199
    %v5251 = vpack.c.b16 %v5202, %v5201
    %v5252 = vpack.c.b16 %v5204, %v5203
    %5301 = vmatpush.bf16.msra.mxu0 %v5212
    %5302 = vmatpush.bf16.msra.mxu0 %v5211
    %5303 = vmatpush.bf16.msra.mxu0 %v5210
    %5304 = vmatpush.bf16.msra.mxu0 %v5209
    %5305 = vmatpush.bf16.msra.mxu0 %v5208
    %5306 = vmatpush.bf16.msra.mxu0 %v5207
    %5307 = vmatpush.bf16.msra.mxu0 %v5206
    %5308 = vmatpush.bf16.msra.mxu0 %v5205
    %5309 = vmatmul.bf16.gmra.mxu0 %v4907
    %v5310 = vpop.f32.mrf.mxu0
    %v5311 = vadd.f32 %v5011, %v5310
    %v5312 = vpop.f32.mrf.mxu0
    %5313 = vdwg.mxu0
    %5314 = vmatpush.bf16.msra.mxu0 %v5220
    %5315 = vmatpush.bf16.msra.mxu0 %v5219
    %5316 = vmatpush.bf16.msra.mxu0 %v5218
    %5317 = vmatpush.bf16.msra.mxu0 %v5217
    %5318 = vmatpush.bf16.msra.mxu0 %v5216
    %5319 = vmatpush.bf16.msra.mxu0 %v5215
    %5320 = vmatpush.bf16.msra.mxu0 %v5214
    %5321 = vmatpush.bf16.msra.mxu0 %v5213
    %5322 = vmatmul.bf16.gmra.mxu0 %v4908
    %v5323 = vpop.f32.mrf.mxu0
    %v5324 = vadd.f32 %v5311, %v5323
    %v5325 = vpop.f32.mrf.mxu0
    %5326 = vdwg.mxu0
    %5327 = vmatpush.bf16.msra.mxu0 %v5228
    %5328 = vmatpush.bf16.msra.mxu0 %v5227
    %5329 = vmatpush.bf16.msra.mxu0 %v5226
    %5330 = vmatpush.bf16.msra.mxu0 %v5225
    %5331 = vmatpush.bf16.msra.mxu0 %v5224
    %5332 = vmatpush.bf16.msra.mxu0 %v5223
    %5333 = vmatpush.bf16.msra.mxu0 %v5222
    %5334 = vmatpush.bf16.msra.mxu0 %v5221
    %5335 = vmatmul.bf16.gmra.mxu0 %v4909
    %v5336 = vpop.f32.mrf.mxu0
    %v5337 = vadd.f32 %v5324, %v5336
    %v5338 = vpop.f32.mrf.mxu0
    %5339 = vdwg.mxu0
    %5340 = vmatpush.bf16.msra.mxu0 %v5236
    %5341 = vmatpush.bf16.msra.mxu0 %v5235
    %5342 = vmatpush.bf16.msra.mxu0 %v5234
    %5343 = vmatpush.bf16.msra.mxu0 %v5233
    %5344 = vmatpush.bf16.msra.mxu0 %v5232
    %5345 = vmatpush.bf16.msra.mxu0 %v5231
    %5346 = vmatpush.bf16.msra.mxu0 %v5230
    %5347 = vmatpush.bf16.msra.mxu0 %v5229
    %5348 = vmatmul.bf16.gmra.mxu0 %v4910
    %v5349 = vpop.f32.mrf.mxu0
    %v5350 = vadd.f32 %v5337, %v5349
    %v5351 = vpop.f32.mrf.mxu0
    %5352 = vdwg.mxu0
    %5353 = vmatpush.bf16.msra.mxu0 %v5244
    %5354 = vmatpush.bf16.msra.mxu0 %v5243
    %5355 = vmatpush.bf16.msra.mxu0 %v5242
    %5356 = vmatpush.bf16.msra.mxu0 %v5241
    %5357 = vmatpush.bf16.msra.mxu0 %v5240
    %5358 = vmatpush.bf16.msra.mxu0 %v5239
    %5359 = vmatpush.bf16.msra.mxu0 %v5238
    %5360 = vmatpush.bf16.msra.mxu0 %v5237
    %5361 = vmatmul.bf16.gmra.mxu0 %v4911
    %v5362 = vpop.f32.mrf.mxu0
    %v5363 = vadd.f32 %v5350, %v5362
    %v5364 = vpop.f32.mrf.mxu0
    %5365 = vdwg.mxu0
    %5366 = vmatpush.bf16.msra.mxu0 %v5252
    %5367 = vmatpush.bf16.msra.mxu0 %v5251
    %5368 = vmatpush.bf16.msra.mxu0 %v5250
    %5369 = vmatpush.bf16.msra.mxu0 %v5249
    %5370 = vmatpush.bf16.msra.mxu0 %v5248
    %5371 = vmatpush.bf16.msra.mxu0 %v5247
    %5372 = vmatpush.bf16.msra.mxu0 %v5246
    %5373 = vmatpush.bf16.msra.mxu0 %v5245
    %5374 = vmatmul.bf16.gmra.mxu0 %v4912
    %v5375 = vpop.f32.mrf.mxu0
    %v5376 = vadd.f32 %v5363, %v5375
    %v5377 = vpop.f32.mrf.mxu0
    %5378 = vdwg.mxu0
    %5379 = vst [vmem:[#allocation13] sm:$0xff] %v5376
    // Predicated region
    $region50: #{tpu_custom_call.1} parent=1 // pred_check
      _
    $region51: #{tpu_custom_call.1} parent=1 // pred_check_branch
      %5381 = sbr.rel (0) target = $region53
    $region52: #{tpu_custom_call.1} parent=1 // pred_region
      %5383 = vsyncadd [#allocation4], 0
      %s5385 = sshll.u32 [#allocation13], 4
      %s5386 = int_to_ptr.vmem [resolvable:$true] %s5385
      %s5387 = sshll.u32 %s6, 4
      %s5388 = int_to_ptr.hbm [resolvable:$true] %s5387
      %5390 = dma.vmem_to_hbm [thread:$0]  %s5386, 128, %s5388, [#allocation4]
    $region53: #{tpu_custom_call.1} parent=1 // pred_fallthru
      _
    // Predicated region
    $region54: #{tpu_custom_call.1} parent=1 // pred_check
      _
    $region55: #{tpu_custom_call.1} parent=1 // pred_check_branch
      %5392 = sbr.rel (0) target = $region57
    $region56: #{tpu_custom_call.1} parent=1 // pred_region
      %5394 = dma.done [#allocation4], 128
    $region57: #{tpu_custom_call.1} parent=1 // pred_fallthru
      _
    %5395 = vsyncpa [#allocation3], 1
    %5396 = vsyncpa [#allocation6], 1
    %5397 = vsyncpa [#allocation9], 1
    %5398 = vsyncpa [#allocation12], 1
    %5399 = vsyncpa [#allocation4], 1

</llo_original>
